<compile_context>
chip_gen: v7x
topology: tpu7x:2x2x1
jax: 0.10.0
libtpu: 0.0.40
codegen_flags: <defaults>
</compile_context>

<pallas_src>
import jax
import jax.numpy as jnp
import numpy as np
from jax.experimental import pallas as pl
from jax.experimental.pallas import tpu as pltpu


def encoder_lstm_kernel(x_ref, wih_ref, whh_ref, b_ref, len_ref,
                        out_ref, h_ref, c_ref):
    B, T, H = x_ref.shape

    # ---- hoisted input projection: one big MXU matmul for all timesteps ----
    x_all = x_ref[...].reshape(B * T, H)                       # (B*T, H)
    pre = jnp.dot(x_all, wih_ref[...],
                  preferred_element_type=jnp.float32) + b_ref[...]   # (B*T, 4H)
    pre = pre.reshape(B, T, 4 * H)                             # (B, T, 4H)

    whh = whh_ref[...]                                         # (H, 4H)
    lengths = len_ref[...]                                     # (B, 1) int32

    h = jnp.zeros((B, H), jnp.float32)
    c = jnp.zeros((B, H), jnp.float32)

    # Statically unrolled recurrence (T is small and compile-time constant).
    # For large T this would become a lax.fori_loop over a VMEM scratch slab.
    for t in range(T):
        gates = pre[:, t, :] + jnp.dot(h, whh,
                                       preferred_element_type=jnp.float32)
        i_g = jax.nn.sigmoid(gates[:, 0 * H:1 * H])
        f_g = jax.nn.sigmoid(gates[:, 1 * H:2 * H])
        g_g = jnp.tanh(gates[:, 2 * H:3 * H])
        o_g = jax.nn.sigmoid(gates[:, 3 * H:4 * H])

        c_new = f_g * c + i_g * g_g
        h_new = o_g * jnp.tanh(c_new)

        # pack_padded_sequence semantics: freeze state, zero padded outputs.
        active = t < lengths                                   # (B, 1) bool
        h = jnp.where(active, h_new, h)
        c = jnp.where(active, c_new, c)
        out_t = jnp.where(active, h_new, jnp.zeros_like(h_new))
        out_ref[:, t:t + 1, :] = out_t[:, None, :]             # batch-major store

    h_ref[...] = h
    c_ref[...] = c


def encoder_forward(tokens, lengths, embedding, w_ih, w_hh, b_ih, b_hh):
    """tokens: (B, T) int32, lengths: (B,) int32 (sorted descending, max == T)."""
    B, T = tokens.shape
    H = embedding.shape[1]

    # Glue: embedding gather + weight layout (kept batch-major; no transpose
    # of activations needed anymore).
    embedded = jnp.take(embedding, tokens, axis=0).astype(jnp.float32)  # (B,T,H)
    wih_t = jnp.transpose(w_ih).astype(jnp.float32)                     # (H, 4H)
    whh_t = jnp.transpose(w_hh).astype(jnp.float32)                     # (H, 4H)
    bias = (b_ih + b_hh).reshape(1, 4 * H).astype(jnp.float32)          # (1, 4H)
    len2d = lengths.reshape(B, 1).astype(jnp.int32)                     # (B, 1)

    grid_spec = pltpu.PrefetchScalarGridSpec(
        num_scalar_prefetch=0,
        grid=(1,),                                   # single invocation
        in_specs=[
            pl.BlockSpec((B, T, H), lambda i: (0, 0, 0)),   # embedded x
            pl.BlockSpec((H, 4 * H), lambda i: (0, 0)),     # W_ih^T
            pl.BlockSpec((H, 4 * H), lambda i: (0, 0)),     # W_hh^T
            pl.BlockSpec((1, 4 * H), lambda i: (0, 0)),     # b_ih + b_hh
            pl.BlockSpec((B, 1), lambda i: (0, 0)),         # lengths
        ],
        out_specs=[
            pl.BlockSpec((B, T, H), lambda i: (0, 0, 0)),   # output (batch-major)
            pl.BlockSpec((B, H), lambda i: (0, 0)),         # h_final
            pl.BlockSpec((B, H), lambda i: (0, 0)),         # c_final
        ],
    )

    output, h_f, c_f = pl.pallas_call(
        encoder_lstm_kernel,
        out_shape=(
            jax.ShapeDtypeStruct((B, T, H), jnp.float32),
            jax.ShapeDtypeStruct((B, H), jnp.float32),
            jax.ShapeDtypeStruct((B, H), jnp.float32),
        ),
        grid_spec=grid_spec,
        compiler_params=pltpu.CompilerParams(
            dimension_semantics=("arbitrary",)),     # recurrence is sequential
    )(embedded, wih_t, whh_t, bias, len2d)

    # (1, B, H) final states to match PyTorch nn.LSTM (n_layers=1).
    return output, (h_f[None, :, :], c_f[None, :, :])


def encoder_reference(tokens, lengths, embedding, w_ih, w_hh, b_ih, b_hh):
    """Pure-JAX reference replicating PyTorch packed-LSTM semantics."""
    B, T = tokens.shape
    H = embedding.shape[1]
    x = jnp.take(embedding, tokens, axis=0)                   # (B, T, H)
    bias = b_ih + b_hh

    def step(carry, t):
        h, c = carry
        xt = x[:, t, :]
        gates = xt @ w_ih.T + h @ w_hh.T + bias
        i = jax.nn.sigmoid(gates[:, 0 * H:1 * H])
        f = jax.nn.sigmoid(gates[:, 1 * H:2 * H])
        g = jnp.tanh(gates[:, 2 * H:3 * H])
        o = jax.nn.sigmoid(gates[:, 3 * H:4 * H])
        c_new = f * c + i * g
        h_new = o * jnp.tanh(c_new)
        active = (t < lengths)[:, None]
        h = jnp.where(active, h_new, h)
        c = jnp.where(active, c_new, c)
        out_t = jnp.where(active, h_new, 0.0)
        return (h, c), out_t

    (h, c), outs = jax.lax.scan(
        step, (jnp.zeros((B, H)), jnp.zeros((B, H))), jnp.arange(T))
    return jnp.transpose(outs, (1, 0, 2)), (h[None], c[None])


if __name__ == "__main__":
    # Small shapes consistent with the module's forward.
    VOCAB, HIDDEN, BATCH, SEQ = 50, 128, 8, 8

    key = jax.random.PRNGKey(0)
    k_emb, k_wih, k_whh, k_bih, k_bhh, k_tok = jax.random.split(key, 6)

    # nn.Embedding default init ~ N(0, 1); nn.LSTM default init ~ U(-1/sqrt(H), 1/sqrt(H))
    bound = 1.0 / np.sqrt(HIDDEN)
    embedding = jax.random.normal(k_emb, (VOCAB, HIDDEN), dtype=jnp.float32)
    w_ih = jax.random.uniform(k_wih, (4 * HIDDEN, HIDDEN), jnp.float32, -bound, bound)
    w_hh = jax.random.uniform(k_whh, (4 * HIDDEN, HIDDEN), jnp.float32, -bound, bound)
    b_ih = jax.random.uniform(k_bih, (4 * HIDDEN,), jnp.float32, -bound, bound)
    b_hh = jax.random.uniform(k_bhh, (4 * HIDDEN,), jnp.float32, -bound, bound)

    tokens = jax.random.randint(k_tok, (BATCH, SEQ), 0, VOCAB, dtype=jnp.int32)
    # pack_padded_sequence expects lengths sorted descending; max length == SEQ
    # so the module's final .view(batch, seq_len, hidden) is valid.
    input_len = jnp.array([8, 7, 6, 5, 4, 3, 2, 1], dtype=jnp.int32)

    out, (h_n, c_n) = encoder_forward(tokens, input_len, embedding,
                                      w_ih, w_hh, b_ih, b_hh)
    jax.block_until_ready((out, h_n, c_n))

    ref_out, (ref_h, ref_c) = encoder_reference(tokens, input_len, embedding,
                                                w_ih, w_hh, b_ih, b_hh)
    np.testing.assert_allclose(np.asarray(out), np.asarray(ref_out),
                               rtol=1e-5, atol=1e-5)
    np.testing.assert_allclose(np.asarray(h_n), np.asarray(ref_h),
                               rtol=1e-5, atol=1e-5)
    np.testing.assert_allclose(np.asarray(c_n), np.asarray(ref_c),
                               rtol=1e-5, atol=1e-5)

    assert out.shape == (BATCH, SEQ, HIDDEN)
    assert h_n.shape == (1, BATCH, HIDDEN) and c_n.shape == (1, BATCH, HIDDEN)
    print("KERNEL_OK")
</pallas_src>

<mosaic_0001>
module attributes {stable_mosaic.version = 11 : i64} {
  func.func @encoder_lstm_kernel(%arg0: i32, %arg1: memref<8x8x128xf32, #tpu.memory_space<vmem>>, %arg2: memref<128x512xf32, #tpu.memory_space<vmem>>, %arg3: memref<128x512xf32, #tpu.memory_space<vmem>>, %arg4: memref<1x512xf32, #tpu.memory_space<vmem>>, %arg5: memref<8x1xi32, #tpu.memory_space<vmem>>, %arg6: memref<8x8x128xf32, #tpu.memory_space<vmem>>, %arg7: memref<8x128xf32, #tpu.memory_space<vmem>>, %arg8: memref<8x128xf32, #tpu.memory_space<vmem>>) attributes {dimension_semantics = [#tpu.dimension_semantics<arbitrary>], iteration_bounds = array<i64: 1>, scalar_prefetch = 0 : i64, scratch_operands = 0 : i64, tpu.core_type = #tpu.core_type<tc>, window_params = [{pipeline_mode = #tpu.pipeline_mode<synchronous>, transform_indices = @transform_0, window_bounds = array<i64: 8, 8, 128>}, {pipeline_mode = #tpu.pipeline_mode<synchronous>, transform_indices = @transform_1, window_bounds = array<i64: 128, 512>}, {pipeline_mode = #tpu.pipeline_mode<synchronous>, transform_indices = @transform_2, window_bounds = array<i64: 128, 512>}, {pipeline_mode = #tpu.pipeline_mode<synchronous>, transform_indices = @transform_3, window_bounds = array<i64: 1, 512>}, {pipeline_mode = #tpu.pipeline_mode<synchronous>, transform_indices = @transform_4, window_bounds = array<i64: 8, 1>}, {pipeline_mode = #tpu.pipeline_mode<synchronous>, transform_indices = @transform_5, window_bounds = array<i64: 8, 8, 128>}, {pipeline_mode = #tpu.pipeline_mode<synchronous>, transform_indices = @transform_6, window_bounds = array<i64: 8, 128>}, {pipeline_mode = #tpu.pipeline_mode<synchronous>, transform_indices = @transform_7, window_bounds = array<i64: 8, 128>}]} {
    %c0 = arith.constant 0 : index
    %c0_0 = arith.constant 0 : index
    %c0_1 = arith.constant 0 : index
    %0 = vector.load %arg1[%c0, %c0_0, %c0_1] : memref<8x8x128xf32, #tpu.memory_space<vmem>>, vector<8x8x128xf32>
    %1 = vector.shape_cast %0 : vector<8x8x128xf32> to vector<64x128xf32>
    %c0_2 = arith.constant 0 : index
    %c0_3 = arith.constant 0 : index
    %2 = vector.load %arg2[%c0_2, %c0_3] : memref<128x512xf32, #tpu.memory_space<vmem>>, vector<128x512xf32>
    %cst = arith.constant dense<0.000000e+00> : vector<64x512xf32>
    %3 = tpu.matmul %1, %2, %cst {dimension_numbers = #tpu.dot_dimension_numbers<[1], [0], [0], [1], [0, 0, 1, 1], [], []>} : vector<64x128xf32>, vector<128x512xf32>, vector<64x512xf32> -> vector<64x512xf32>
    %c0_4 = arith.constant 0 : index
    %c0_5 = arith.constant 0 : index
    %4 = vector.load %arg4[%c0_4, %c0_5] : memref<1x512xf32, #tpu.memory_space<vmem>>, vector<1x512xf32>
    %5 = vector.broadcast %4 : vector<1x512xf32> to vector<64x512xf32>
    %6 = arith.addf %3, %5 : vector<64x512xf32>
    %7 = vector.shape_cast %6 : vector<64x512xf32> to vector<8x8x512xf32>
    %c0_6 = arith.constant 0 : index
    %c0_7 = arith.constant 0 : index
    %8 = vector.load %arg3[%c0_6, %c0_7] : memref<128x512xf32, #tpu.memory_space<vmem>>, vector<128x512xf32>
    %c0_8 = arith.constant 0 : index
    %c0_9 = arith.constant 0 : index
    %9 = vector.load %arg5[%c0_8, %c0_9] : memref<8x1xi32, #tpu.memory_space<vmem>>, vector<8x1xi32>
    %cst_10 = arith.constant 0.000000e+00 : f32
    %10 = vector.broadcast %cst_10 : f32 to vector<8x128xf32>
    %cst_11 = arith.constant 0.000000e+00 : f32
    %11 = vector.broadcast %cst_11 : f32 to vector<8x128xf32>
    %12 = vector.extract_strided_slice %7 {offsets = [0, 0, 0], sizes = [8, 1, 512], strides = [1, 1, 1]} : vector<8x8x512xf32> to vector<8x1x512xf32>
    %13 = vector.shape_cast %12 : vector<8x1x512xf32> to vector<8x512xf32>
    %cst_12 = arith.constant dense<0.000000e+00> : vector<8x512xf32>
    %14 = tpu.matmul %10, %8, %cst_12 {dimension_numbers = #tpu.dot_dimension_numbers<[1], [0], [0], [1], [0, 0, 1, 1], [], []>} : vector<8x128xf32>, vector<128x512xf32>, vector<8x512xf32> -> vector<8x512xf32>
    %15 = arith.addf %13, %14 : vector<8x512xf32>
    %16 = vector.extract_strided_slice %15 {offsets = [0, 0], sizes = [8, 128], strides = [1, 1]} : vector<8x512xf32> to vector<8x128xf32>
    %17 = arith.negf %16 : vector<8x128xf32>
    %18 = math.exp %17 : vector<8x128xf32>
    %cst_13 = arith.constant 1.000000e+00 : f32
    %19 = vector.broadcast %cst_13 : f32 to vector<8x128xf32>
    %20 = arith.addf %19, %18 : vector<8x128xf32>
    %21 = arith.divf %19, %20 : vector<8x128xf32>
    %22 = vector.extract_strided_slice %15 {offsets = [0, 128], sizes = [8, 128], strides = [1, 1]} : vector<8x512xf32> to vector<8x128xf32>
    %23 = arith.negf %22 : vector<8x128xf32>
    %24 = math.exp %23 : vector<8x128xf32>
    %cst_14 = arith.constant 1.000000e+00 : f32
    %25 = vector.broadcast %cst_14 : f32 to vector<8x128xf32>
    %26 = arith.addf %25, %24 : vector<8x128xf32>
    %27 = arith.divf %25, %26 : vector<8x128xf32>
    %28 = vector.extract_strided_slice %15 {offsets = [0, 256], sizes = [8, 128], strides = [1, 1]} : vector<8x512xf32> to vector<8x128xf32>
    %29 = math.tanh %28 : vector<8x128xf32>
    %30 = vector.extract_strided_slice %15 {offsets = [0, 384], sizes = [8, 128], strides = [1, 1]} : vector<8x512xf32> to vector<8x128xf32>
    %31 = arith.negf %30 : vector<8x128xf32>
    %32 = math.exp %31 : vector<8x128xf32>
    %cst_15 = arith.constant 1.000000e+00 : f32
    %33 = vector.broadcast %cst_15 : f32 to vector<8x128xf32>
    %34 = arith.addf %33, %32 : vector<8x128xf32>
    %35 = arith.divf %33, %34 : vector<8x128xf32>
    %36 = arith.mulf %27, %11 : vector<8x128xf32>
    %37 = arith.mulf %21, %29 : vector<8x128xf32>
    %38 = arith.addf %36, %37 : vector<8x128xf32>
    %39 = math.tanh %38 : vector<8x128xf32>
    %40 = arith.mulf %35, %39 : vector<8x128xf32>
    %c0_i32 = arith.constant 0 : i32
    %41 = vector.broadcast %c0_i32 : i32 to vector<8x1xi32>
    %42 = arith.cmpi sgt, %9, %41 : vector<8x1xi32>
    %43 = vector.shape_cast %42 : vector<8x1xi1> to vector<8x1xi1>
    %44 = vector.broadcast %43 : vector<8x1xi1> to vector<8x128xi1>
    %45 = arith.select %44, %40, %10 : vector<8x128xi1>, vector<8x128xf32>
    %46 = vector.shape_cast %42 : vector<8x1xi1> to vector<8x1xi1>
    %47 = vector.broadcast %46 : vector<8x1xi1> to vector<8x128xi1>
    %48 = arith.select %47, %38, %11 : vector<8x128xi1>, vector<8x128xf32>
    %cst_16 = arith.constant 0.000000e+00 : f32
    %49 = vector.broadcast %cst_16 : f32 to vector<8x128xf32>
    %50 = vector.shape_cast %42 : vector<8x1xi1> to vector<8x1xi1>
    %51 = vector.broadcast %50 : vector<8x1xi1> to vector<8x128xi1>
    %52 = arith.select %51, %40, %49 : vector<8x128xi1>, vector<8x128xf32>
    %53 = vector.shape_cast %52 : vector<8x128xf32> to vector<8x1x128xf32>
    %c0_17 = arith.constant 0 : index
    %c0_18 = arith.constant 0 : index
    %c0_19 = arith.constant 0 : index
    %54 = vector.load %arg6[%c0_17, %c0_18, %c0_19] : memref<8x8x128xf32, #tpu.memory_space<vmem>>, vector<8x1x128xf32>
    tpu.vector_store %arg6[%c0_17, %c0_18, %c0_19], %53 {strides = array<i32>} : memref<8x8x128xf32, #tpu.memory_space<vmem>>, vector<8x1x128xf32>,
    %55 = vector.extract_strided_slice %7 {offsets = [0, 1, 0], sizes = [8, 1, 512], strides = [1, 1, 1]} : vector<8x8x512xf32> to vector<8x1x512xf32>
    %56 = vector.shape_cast %55 : vector<8x1x512xf32> to vector<8x512xf32>
    %cst_20 = arith.constant dense<0.000000e+00> : vector<8x512xf32>
    %57 = tpu.matmul %45, %8, %cst_20 {dimension_numbers = #tpu.dot_dimension_numbers<[1], [0], [0], [1], [0, 0, 1, 1], [], []>} : vector<8x128xf32>, vector<128x512xf32>, vector<8x512xf32> -> vector<8x512xf32>
    %58 = arith.addf %56, %57 : vector<8x512xf32>
    %59 = vector.extract_strided_slice %58 {offsets = [0, 0], sizes = [8, 128], strides = [1, 1]} : vector<8x512xf32> to vector<8x128xf32>
    %60 = arith.negf %59 : vector<8x128xf32>
    %61 = math.exp %60 : vector<8x128xf32>
    %cst_21 = arith.constant 1.000000e+00 : f32
    %62 = vector.broadcast %cst_21 : f32 to vector<8x128xf32>
    %63 = arith.addf %62, %61 : vector<8x128xf32>
    %64 = arith.divf %62, %63 : vector<8x128xf32>
    %65 = vector.extract_strided_slice %58 {offsets = [0, 128], sizes = [8, 128], strides = [1, 1]} : vector<8x512xf32> to vector<8x128xf32>
    %66 = arith.negf %65 : vector<8x128xf32>
    %67 = math.exp %66 : vector<8x128xf32>
    %cst_22 = arith.constant 1.000000e+00 : f32
    %68 = vector.broadcast %cst_22 : f32 to vector<8x128xf32>
    %69 = arith.addf %68, %67 : vector<8x128xf32>
    %70 = arith.divf %68, %69 : vector<8x128xf32>
    %71 = vector.extract_strided_slice %58 {offsets = [0, 256], sizes = [8, 128], strides = [1, 1]} : vector<8x512xf32> to vector<8x128xf32>
    %72 = math.tanh %71 : vector<8x128xf32>
    %73 = vector.extract_strided_slice %58 {offsets = [0, 384], sizes = [8, 128], strides = [1, 1]} : vector<8x512xf32> to vector<8x128xf32>
    %74 = arith.negf %73 : vector<8x128xf32>
    %75 = math.exp %74 : vector<8x128xf32>
    %cst_23 = arith.constant 1.000000e+00 : f32
    %76 = vector.broadcast %cst_23 : f32 to vector<8x128xf32>
    %77 = arith.addf %76, %75 : vector<8x128xf32>
    %78 = arith.divf %76, %77 : vector<8x128xf32>
    %79 = arith.mulf %70, %48 : vector<8x128xf32>
    %80 = arith.mulf %64, %72 : vector<8x128xf32>
    %81 = arith.addf %79, %80 : vector<8x128xf32>
    %82 = math.tanh %81 : vector<8x128xf32>
    %83 = arith.mulf %78, %82 : vector<8x128xf32>
    %c1_i32 = arith.constant 1 : i32
    %84 = vector.broadcast %c1_i32 : i32 to vector<8x1xi32>
    %85 = arith.cmpi sgt, %9, %84 : vector<8x1xi32>
    %86 = vector.shape_cast %85 : vector<8x1xi1> to vector<8x1xi1>
    %87 = vector.broadcast %86 : vector<8x1xi1> to vector<8x128xi1>
    %88 = arith.select %87, %83, %45 : vector<8x128xi1>, vector<8x128xf32>
    %89 = vector.shape_cast %85 : vector<8x1xi1> to vector<8x1xi1>
    %90 = vector.broadcast %89 : vector<8x1xi1> to vector<8x128xi1>
    %91 = arith.select %90, %81, %48 : vector<8x128xi1>, vector<8x128xf32>
    %cst_24 = arith.constant 0.000000e+00 : f32
    %92 = vector.broadcast %cst_24 : f32 to vector<8x128xf32>
    %93 = vector.shape_cast %85 : vector<8x1xi1> to vector<8x1xi1>
    %94 = vector.broadcast %93 : vector<8x1xi1> to vector<8x128xi1>
    %95 = arith.select %94, %83, %92 : vector<8x128xi1>, vector<8x128xf32>
    %96 = vector.shape_cast %95 : vector<8x128xf32> to vector<8x1x128xf32>
    %c0_25 = arith.constant 0 : index
    %c1 = arith.constant 1 : index
    %c0_26 = arith.constant 0 : index
    %97 = vector.load %arg6[%c0_25, %c1, %c0_26] : memref<8x8x128xf32, #tpu.memory_space<vmem>>, vector<8x1x128xf32>
    tpu.vector_store %arg6[%c0_25, %c1, %c0_26], %96 {strides = array<i32>} : memref<8x8x128xf32, #tpu.memory_space<vmem>>, vector<8x1x128xf32>,
    %98 = vector.extract_strided_slice %7 {offsets = [0, 2, 0], sizes = [8, 1, 512], strides = [1, 1, 1]} : vector<8x8x512xf32> to vector<8x1x512xf32>
    %99 = vector.shape_cast %98 : vector<8x1x512xf32> to vector<8x512xf32>
    %cst_27 = arith.constant dense<0.000000e+00> : vector<8x512xf32>
    %100 = tpu.matmul %88, %8, %cst_27 {dimension_numbers = #tpu.dot_dimension_numbers<[1], [0], [0], [1], [0, 0, 1, 1], [], []>} : vector<8x128xf32>, vector<128x512xf32>, vector<8x512xf32> -> vector<8x512xf32>
    %101 = arith.addf %99, %100 : vector<8x512xf32>
    %102 = vector.extract_strided_slice %101 {offsets = [0, 0], sizes = [8, 128], strides = [1, 1]} : vector<8x512xf32> to vector<8x128xf32>
    %103 = arith.negf %102 : vector<8x128xf32>
    %104 = math.exp %103 : vector<8x128xf32>
    %cst_28 = arith.constant 1.000000e+00 : f32
    %105 = vector.broadcast %cst_28 : f32 to vector<8x128xf32>
    %106 = arith.addf %105, %104 : vector<8x128xf32>
    %107 = arith.divf %105, %106 : vector<8x128xf32>
    %108 = vector.extract_strided_slice %101 {offsets = [0, 128], sizes = [8, 128], strides = [1, 1]} : vector<8x512xf32> to vector<8x128xf32>
    %109 = arith.negf %108 : vector<8x128xf32>
    %110 = math.exp %109 : vector<8x128xf32>
    %cst_29 = arith.constant 1.000000e+00 : f32
    %111 = vector.broadcast %cst_29 : f32 to vector<8x128xf32>
    %112 = arith.addf %111, %110 : vector<8x128xf32>
    %113 = arith.divf %111, %112 : vector<8x128xf32>
    %114 = vector.extract_strided_slice %101 {offsets = [0, 256], sizes = [8, 128], strides = [1, 1]} : vector<8x512xf32> to vector<8x128xf32>
    %115 = math.tanh %114 : vector<8x128xf32>
    %116 = vector.extract_strided_slice %101 {offsets = [0, 384], sizes = [8, 128], strides = [1, 1]} : vector<8x512xf32> to vector<8x128xf32>
    %117 = arith.negf %116 : vector<8x128xf32>
    %118 = math.exp %117 : vector<8x128xf32>
    %cst_30 = arith.constant 1.000000e+00 : f32
    %119 = vector.broadcast %cst_30 : f32 to vector<8x128xf32>
    %120 = arith.addf %119, %118 : vector<8x128xf32>
    %121 = arith.divf %119, %120 : vector<8x128xf32>
    %122 = arith.mulf %113, %91 : vector<8x128xf32>
    %123 = arith.mulf %107, %115 : vector<8x128xf32>
    %124 = arith.addf %122, %123 : vector<8x128xf32>
    %125 = math.tanh %124 : vector<8x128xf32>
    %126 = arith.mulf %121, %125 : vector<8x128xf32>
    %c2_i32 = arith.constant 2 : i32
    %127 = vector.broadcast %c2_i32 : i32 to vector<8x1xi32>
    %128 = arith.cmpi sgt, %9, %127 : vector<8x1xi32>
    %129 = vector.shape_cast %128 : vector<8x1xi1> to vector<8x1xi1>
    %130 = vector.broadcast %129 : vector<8x1xi1> to vector<8x128xi1>
    %131 = arith.select %130, %126, %88 : vector<8x128xi1>, vector<8x128xf32>
    %132 = vector.shape_cast %128 : vector<8x1xi1> to vector<8x1xi1>
    %133 = vector.broadcast %132 : vector<8x1xi1> to vector<8x128xi1>
    %134 = arith.select %133, %124, %91 : vector<8x128xi1>, vector<8x128xf32>
    %cst_31 = arith.constant 0.000000e+00 : f32
    %135 = vector.broadcast %cst_31 : f32 to vector<8x128xf32>
    %136 = vector.shape_cast %128 : vector<8x1xi1> to vector<8x1xi1>
    %137 = vector.broadcast %136 : vector<8x1xi1> to vector<8x128xi1>
    %138 = arith.select %137, %126, %135 : vector<8x128xi1>, vector<8x128xf32>
    %139 = vector.shape_cast %138 : vector<8x128xf32> to vector<8x1x128xf32>
    %c0_32 = arith.constant 0 : index
    %c2 = arith.constant 2 : index
    %c0_33 = arith.constant 0 : index
    %140 = vector.load %arg6[%c0_32, %c2, %c0_33] : memref<8x8x128xf32, #tpu.memory_space<vmem>>, vector<8x1x128xf32>
    tpu.vector_store %arg6[%c0_32, %c2, %c0_33], %139 {strides = array<i32>} : memref<8x8x128xf32, #tpu.memory_space<vmem>>, vector<8x1x128xf32>,
    %141 = vector.extract_strided_slice %7 {offsets = [0, 3, 0], sizes = [8, 1, 512], strides = [1, 1, 1]} : vector<8x8x512xf32> to vector<8x1x512xf32>
    %142 = vector.shape_cast %141 : vector<8x1x512xf32> to vector<8x512xf32>
    %cst_34 = arith.constant dense<0.000000e+00> : vector<8x512xf32>
    %143 = tpu.matmul %131, %8, %cst_34 {dimension_numbers = #tpu.dot_dimension_numbers<[1], [0], [0], [1], [0, 0, 1, 1], [], []>} : vector<8x128xf32>, vector<128x512xf32>, vector<8x512xf32> -> vector<8x512xf32>
    %144 = arith.addf %142, %143 : vector<8x512xf32>
    %145 = vector.extract_strided_slice %144 {offsets = [0, 0], sizes = [8, 128], strides = [1, 1]} : vector<8x512xf32> to vector<8x128xf32>
    %146 = arith.negf %145 : vector<8x128xf32>
    %147 = math.exp %146 : vector<8x128xf32>
    %cst_35 = arith.constant 1.000000e+00 : f32
    %148 = vector.broadcast %cst_35 : f32 to vector<8x128xf32>
    %149 = arith.addf %148, %147 : vector<8x128xf32>
    %150 = arith.divf %148, %149 : vector<8x128xf32>
    %151 = vector.extract_strided_slice %144 {offsets = [0, 128], sizes = [8, 128], strides = [1, 1]} : vector<8x512xf32> to vector<8x128xf32>
    %152 = arith.negf %151 : vector<8x128xf32>
    %153 = math.exp %152 : vector<8x128xf32>
    %cst_36 = arith.constant 1.000000e+00 : f32
    %154 = vector.broadcast %cst_36 : f32 to vector<8x128xf32>
    %155 = arith.addf %154, %153 : vector<8x128xf32>
    %156 = arith.divf %154, %155 : vector<8x128xf32>
    %157 = vector.extract_strided_slice %144 {offsets = [0, 256], sizes = [8, 128], strides = [1, 1]} : vector<8x512xf32> to vector<8x128xf32>
    %158 = math.tanh %157 : vector<8x128xf32>
    %159 = vector.extract_strided_slice %144 {offsets = [0, 384], sizes = [8, 128], strides = [1, 1]} : vector<8x512xf32> to vector<8x128xf32>
    %160 = arith.negf %159 : vector<8x128xf32>
    %161 = math.exp %160 : vector<8x128xf32>
    %cst_37 = arith.constant 1.000000e+00 : f32
    %162 = vector.broadcast %cst_37 : f32 to vector<8x128xf32>
    %163 = arith.addf %162, %161 : vector<8x128xf32>
    %164 = arith.divf %162, %163 : vector<8x128xf32>
    %165 = arith.mulf %156, %134 : vector<8x128xf32>
    %166 = arith.mulf %150, %158 : vector<8x128xf32>
    %167 = arith.addf %165, %166 : vector<8x128xf32>
    %168 = math.tanh %167 : vector<8x128xf32>
    %169 = arith.mulf %164, %168 : vector<8x128xf32>
    %c3_i32 = arith.constant 3 : i32
    %170 = vector.broadcast %c3_i32 : i32 to vector<8x1xi32>
    %171 = arith.cmpi sgt, %9, %170 : vector<8x1xi32>
    %172 = vector.shape_cast %171 : vector<8x1xi1> to vector<8x1xi1>
    %173 = vector.broadcast %172 : vector<8x1xi1> to vector<8x128xi1>
    %174 = arith.select %173, %169, %131 : vector<8x128xi1>, vector<8x128xf32>
    %175 = vector.shape_cast %171 : vector<8x1xi1> to vector<8x1xi1>
    %176 = vector.broadcast %175 : vector<8x1xi1> to vector<8x128xi1>
    %177 = arith.select %176, %167, %134 : vector<8x128xi1>, vector<8x128xf32>
    %cst_38 = arith.constant 0.000000e+00 : f32
    %178 = vector.broadcast %cst_38 : f32 to vector<8x128xf32>
    %179 = vector.shape_cast %171 : vector<8x1xi1> to vector<8x1xi1>
    %180 = vector.broadcast %179 : vector<8x1xi1> to vector<8x128xi1>
    %181 = arith.select %180, %169, %178 : vector<8x128xi1>, vector<8x128xf32>
    %182 = vector.shape_cast %181 : vector<8x128xf32> to vector<8x1x128xf32>
    %c0_39 = arith.constant 0 : index
    %c3 = arith.constant 3 : index
    %c0_40 = arith.constant 0 : index
    %183 = vector.load %arg6[%c0_39, %c3, %c0_40] : memref<8x8x128xf32, #tpu.memory_space<vmem>>, vector<8x1x128xf32>
    tpu.vector_store %arg6[%c0_39, %c3, %c0_40], %182 {strides = array<i32>} : memref<8x8x128xf32, #tpu.memory_space<vmem>>, vector<8x1x128xf32>,
    %184 = vector.extract_strided_slice %7 {offsets = [0, 4, 0], sizes = [8, 1, 512], strides = [1, 1, 1]} : vector<8x8x512xf32> to vector<8x1x512xf32>
    %185 = vector.shape_cast %184 : vector<8x1x512xf32> to vector<8x512xf32>
    %cst_41 = arith.constant dense<0.000000e+00> : vector<8x512xf32>
    %186 = tpu.matmul %174, %8, %cst_41 {dimension_numbers = #tpu.dot_dimension_numbers<[1], [0], [0], [1], [0, 0, 1, 1], [], []>} : vector<8x128xf32>, vector<128x512xf32>, vector<8x512xf32> -> vector<8x512xf32>
    %187 = arith.addf %185, %186 : vector<8x512xf32>
    %188 = vector.extract_strided_slice %187 {offsets = [0, 0], sizes = [8, 128], strides = [1, 1]} : vector<8x512xf32> to vector<8x128xf32>
    %189 = arith.negf %188 : vector<8x128xf32>
    %190 = math.exp %189 : vector<8x128xf32>
    %cst_42 = arith.constant 1.000000e+00 : f32
    %191 = vector.broadcast %cst_42 : f32 to vector<8x128xf32>
    %192 = arith.addf %191, %190 : vector<8x128xf32>
    %193 = arith.divf %191, %192 : vector<8x128xf32>
    %194 = vector.extract_strided_slice %187 {offsets = [0, 128], sizes = [8, 128], strides = [1, 1]} : vector<8x512xf32> to vector<8x128xf32>
    %195 = arith.negf %194 : vector<8x128xf32>
    %196 = math.exp %195 : vector<8x128xf32>
    %cst_43 = arith.constant 1.000000e+00 : f32
    %197 = vector.broadcast %cst_43 : f32 to vector<8x128xf32>
    %198 = arith.addf %197, %196 : vector<8x128xf32>
    %199 = arith.divf %197, %198 : vector<8x128xf32>
    %200 = vector.extract_strided_slice %187 {offsets = [0, 256], sizes = [8, 128], strides = [1, 1]} : vector<8x512xf32> to vector<8x128xf32>
    %201 = math.tanh %200 : vector<8x128xf32>
    %202 = vector.extract_strided_slice %187 {offsets = [0, 384], sizes = [8, 128], strides = [1, 1]} : vector<8x512xf32> to vector<8x128xf32>
    %203 = arith.negf %202 : vector<8x128xf32>
    %204 = math.exp %203 : vector<8x128xf32>
    %cst_44 = arith.constant 1.000000e+00 : f32
    %205 = vector.broadcast %cst_44 : f32 to vector<8x128xf32>
    %206 = arith.addf %205, %204 : vector<8x128xf32>
    %207 = arith.divf %205, %206 : vector<8x128xf32>
    %208 = arith.mulf %199, %177 : vector<8x128xf32>
    %209 = arith.mulf %193, %201 : vector<8x128xf32>
    %210 = arith.addf %208, %209 : vector<8x128xf32>
    %211 = math.tanh %210 : vector<8x128xf32>
    %212 = arith.mulf %207, %211 : vector<8x128xf32>
    %c4_i32 = arith.constant 4 : i32
    %213 = vector.broadcast %c4_i32 : i32 to vector<8x1xi32>
    %214 = arith.cmpi sgt, %9, %213 : vector<8x1xi32>
    %215 = vector.shape_cast %214 : vector<8x1xi1> to vector<8x1xi1>
    %216 = vector.broadcast %215 : vector<8x1xi1> to vector<8x128xi1>
    %217 = arith.select %216, %212, %174 : vector<8x128xi1>, vector<8x128xf32>
    %218 = vector.shape_cast %214 : vector<8x1xi1> to vector<8x1xi1>
    %219 = vector.broadcast %218 : vector<8x1xi1> to vector<8x128xi1>
    %220 = arith.select %219, %210, %177 : vector<8x128xi1>, vector<8x128xf32>
    %cst_45 = arith.constant 0.000000e+00 : f32
    %221 = vector.broadcast %cst_45 : f32 to vector<8x128xf32>
    %222 = vector.shape_cast %214 : vector<8x1xi1> to vector<8x1xi1>
    %223 = vector.broadcast %222 : vector<8x1xi1> to vector<8x128xi1>
    %224 = arith.select %223, %212, %221 : vector<8x128xi1>, vector<8x128xf32>
    %225 = vector.shape_cast %224 : vector<8x128xf32> to vector<8x1x128xf32>
    %c0_46 = arith.constant 0 : index
    %c4 = arith.constant 4 : index
    %c0_47 = arith.constant 0 : index
    %226 = vector.load %arg6[%c0_46, %c4, %c0_47] : memref<8x8x128xf32, #tpu.memory_space<vmem>>, vector<8x1x128xf32>
    tpu.vector_store %arg6[%c0_46, %c4, %c0_47], %225 {strides = array<i32>} : memref<8x8x128xf32, #tpu.memory_space<vmem>>, vector<8x1x128xf32>,
    %227 = vector.extract_strided_slice %7 {offsets = [0, 5, 0], sizes = [8, 1, 512], strides = [1, 1, 1]} : vector<8x8x512xf32> to vector<8x1x512xf32>
    %228 = vector.shape_cast %227 : vector<8x1x512xf32> to vector<8x512xf32>
    %cst_48 = arith.constant dense<0.000000e+00> : vector<8x512xf32>
    %229 = tpu.matmul %217, %8, %cst_48 {dimension_numbers = #tpu.dot_dimension_numbers<[1], [0], [0], [1], [0, 0, 1, 1], [], []>} : vector<8x128xf32>, vector<128x512xf32>, vector<8x512xf32> -> vector<8x512xf32>
    %230 = arith.addf %228, %229 : vector<8x512xf32>
    %231 = vector.extract_strided_slice %230 {offsets = [0, 0], sizes = [8, 128], strides = [1, 1]} : vector<8x512xf32> to vector<8x128xf32>
    %232 = arith.negf %231 : vector<8x128xf32>
    %233 = math.exp %232 : vector<8x128xf32>
    %cst_49 = arith.constant 1.000000e+00 : f32
    %234 = vector.broadcast %cst_49 : f32 to vector<8x128xf32>
    %235 = arith.addf %234, %233 : vector<8x128xf32>
    %236 = arith.divf %234, %235 : vector<8x128xf32>
    %237 = vector.extract_strided_slice %230 {offsets = [0, 128], sizes = [8, 128], strides = [1, 1]} : vector<8x512xf32> to vector<8x128xf32>
    %238 = arith.negf %237 : vector<8x128xf32>
    %239 = math.exp %238 : vector<8x128xf32>
    %cst_50 = arith.constant 1.000000e+00 : f32
    %240 = vector.broadcast %cst_50 : f32 to vector<8x128xf32>
    %241 = arith.addf %240, %239 : vector<8x128xf32>
    %242 = arith.divf %240, %241 : vector<8x128xf32>
    %243 = vector.extract_strided_slice %230 {offsets = [0, 256], sizes = [8, 128], strides = [1, 1]} : vector<8x512xf32> to vector<8x128xf32>
    %244 = math.tanh %243 : vector<8x128xf32>
    %245 = vector.extract_strided_slice %230 {offsets = [0, 384], sizes = [8, 128], strides = [1, 1]} : vector<8x512xf32> to vector<8x128xf32>
    %246 = arith.negf %245 : vector<8x128xf32>
    %247 = math.exp %246 : vector<8x128xf32>
    %cst_51 = arith.constant 1.000000e+00 : f32
    %248 = vector.broadcast %cst_51 : f32 to vector<8x128xf32>
    %249 = arith.addf %248, %247 : vector<8x128xf32>
    %250 = arith.divf %248, %249 : vector<8x128xf32>
    %251 = arith.mulf %242, %220 : vector<8x128xf32>
    %252 = arith.mulf %236, %244 : vector<8x128xf32>
    %253 = arith.addf %251, %252 : vector<8x128xf32>
    %254 = math.tanh %253 : vector<8x128xf32>
    %255 = arith.mulf %250, %254 : vector<8x128xf32>
    %c5_i32 = arith.constant 5 : i32
    %256 = vector.broadcast %c5_i32 : i32 to vector<8x1xi32>
    %257 = arith.cmpi sgt, %9, %256 : vector<8x1xi32>
    %258 = vector.shape_cast %257 : vector<8x1xi1> to vector<8x1xi1>
    %259 = vector.broadcast %258 : vector<8x1xi1> to vector<8x128xi1>
    %260 = arith.select %259, %255, %217 : vector<8x128xi1>, vector<8x128xf32>
    %261 = vector.shape_cast %257 : vector<8x1xi1> to vector<8x1xi1>
    %262 = vector.broadcast %261 : vector<8x1xi1> to vector<8x128xi1>
    %263 = arith.select %262, %253, %220 : vector<8x128xi1>, vector<8x128xf32>
    %cst_52 = arith.constant 0.000000e+00 : f32
    %264 = vector.broadcast %cst_52 : f32 to vector<8x128xf32>
    %265 = vector.shape_cast %257 : vector<8x1xi1> to vector<8x1xi1>
    %266 = vector.broadcast %265 : vector<8x1xi1> to vector<8x128xi1>
    %267 = arith.select %266, %255, %264 : vector<8x128xi1>, vector<8x128xf32>
    %268 = vector.shape_cast %267 : vector<8x128xf32> to vector<8x1x128xf32>
    %c0_53 = arith.constant 0 : index
    %c5 = arith.constant 5 : index
    %c0_54 = arith.constant 0 : index
    %269 = vector.load %arg6[%c0_53, %c5, %c0_54] : memref<8x8x128xf32, #tpu.memory_space<vmem>>, vector<8x1x128xf32>
    tpu.vector_store %arg6[%c0_53, %c5, %c0_54], %268 {strides = array<i32>} : memref<8x8x128xf32, #tpu.memory_space<vmem>>, vector<8x1x128xf32>,
    %270 = vector.extract_strided_slice %7 {offsets = [0, 6, 0], sizes = [8, 1, 512], strides = [1, 1, 1]} : vector<8x8x512xf32> to vector<8x1x512xf32>
    %271 = vector.shape_cast %270 : vector<8x1x512xf32> to vector<8x512xf32>
    %cst_55 = arith.constant dense<0.000000e+00> : vector<8x512xf32>
    %272 = tpu.matmul %260, %8, %cst_55 {dimension_numbers = #tpu.dot_dimension_numbers<[1], [0], [0], [1], [0, 0, 1, 1], [], []>} : vector<8x128xf32>, vector<128x512xf32>, vector<8x512xf32> -> vector<8x512xf32>
    %273 = arith.addf %271, %272 : vector<8x512xf32>
    %274 = vector.extract_strided_slice %273 {offsets = [0, 0], sizes = [8, 128], strides = [1, 1]} : vector<8x512xf32> to vector<8x128xf32>
    %275 = arith.negf %274 : vector<8x128xf32>
    %276 = math.exp %275 : vector<8x128xf32>
    %cst_56 = arith.constant 1.000000e+00 : f32
    %277 = vector.broadcast %cst_56 : f32 to vector<8x128xf32>
    %278 = arith.addf %277, %276 : vector<8x128xf32>
    %279 = arith.divf %277, %278 : vector<8x128xf32>
    %280 = vector.extract_strided_slice %273 {offsets = [0, 128], sizes = [8, 128], strides = [1, 1]} : vector<8x512xf32> to vector<8x128xf32>
    %281 = arith.negf %280 : vector<8x128xf32>
    %282 = math.exp %281 : vector<8x128xf32>
    %cst_57 = arith.constant 1.000000e+00 : f32
    %283 = vector.broadcast %cst_57 : f32 to vector<8x128xf32>
    %284 = arith.addf %283, %282 : vector<8x128xf32>
    %285 = arith.divf %283, %284 : vector<8x128xf32>
    %286 = vector.extract_strided_slice %273 {offsets = [0, 256], sizes = [8, 128], strides = [1, 1]} : vector<8x512xf32> to vector<8x128xf32>
    %287 = math.tanh %286 : vector<8x128xf32>
    %288 = vector.extract_strided_slice %273 {offsets = [0, 384], sizes = [8, 128], strides = [1, 1]} : vector<8x512xf32> to vector<8x128xf32>
    %289 = arith.negf %288 : vector<8x128xf32>
    %290 = math.exp %289 : vector<8x128xf32>
    %cst_58 = arith.constant 1.000000e+00 : f32
    %291 = vector.broadcast %cst_58 : f32 to vector<8x128xf32>
    %292 = arith.addf %291, %290 : vector<8x128xf32>
    %293 = arith.divf %291, %292 : vector<8x128xf32>
    %294 = arith.mulf %285, %263 : vector<8x128xf32>
    %295 = arith.mulf %279, %287 : vector<8x128xf32>
    %296 = arith.addf %294, %295 : vector<8x128xf32>
    %297 = math.tanh %296 : vector<8x128xf32>
    %298 = arith.mulf %293, %297 : vector<8x128xf32>
    %c6_i32 = arith.constant 6 : i32
    %299 = vector.broadcast %c6_i32 : i32 to vector<8x1xi32>
    %300 = arith.cmpi sgt, %9, %299 : vector<8x1xi32>
    %301 = vector.shape_cast %300 : vector<8x1xi1> to vector<8x1xi1>
    %302 = vector.broadcast %301 : vector<8x1xi1> to vector<8x128xi1>
    %303 = arith.select %302, %298, %260 : vector<8x128xi1>, vector<8x128xf32>
    %304 = vector.shape_cast %300 : vector<8x1xi1> to vector<8x1xi1>
    %305 = vector.broadcast %304 : vector<8x1xi1> to vector<8x128xi1>
    %306 = arith.select %305, %296, %263 : vector<8x128xi1>, vector<8x128xf32>
    %cst_59 = arith.constant 0.000000e+00 : f32
    %307 = vector.broadcast %cst_59 : f32 to vector<8x128xf32>
    %308 = vector.shape_cast %300 : vector<8x1xi1> to vector<8x1xi1>
    %309 = vector.broadcast %308 : vector<8x1xi1> to vector<8x128xi1>
    %310 = arith.select %309, %298, %307 : vector<8x128xi1>, vector<8x128xf32>
    %311 = vector.shape_cast %310 : vector<8x128xf32> to vector<8x1x128xf32>
    %c0_60 = arith.constant 0 : index
    %c6 = arith.constant 6 : index
    %c0_61 = arith.constant 0 : index
    %312 = vector.load %arg6[%c0_60, %c6, %c0_61] : memref<8x8x128xf32, #tpu.memory_space<vmem>>, vector<8x1x128xf32>
    tpu.vector_store %arg6[%c0_60, %c6, %c0_61], %311 {strides = array<i32>} : memref<8x8x128xf32, #tpu.memory_space<vmem>>, vector<8x1x128xf32>,
    %313 = vector.extract_strided_slice %7 {offsets = [0, 7, 0], sizes = [8, 1, 512], strides = [1, 1, 1]} : vector<8x8x512xf32> to vector<8x1x512xf32>
    %314 = vector.shape_cast %313 : vector<8x1x512xf32> to vector<8x512xf32>
    %cst_62 = arith.constant dense<0.000000e+00> : vector<8x512xf32>
    %315 = tpu.matmul %303, %8, %cst_62 {dimension_numbers = #tpu.dot_dimension_numbers<[1], [0], [0], [1], [0, 0, 1, 1], [], []>} : vector<8x128xf32>, vector<128x512xf32>, vector<8x512xf32> -> vector<8x512xf32>
    %316 = arith.addf %314, %315 : vector<8x512xf32>
    %317 = vector.extract_strided_slice %316 {offsets = [0, 0], sizes = [8, 128], strides = [1, 1]} : vector<8x512xf32> to vector<8x128xf32>
    %318 = arith.negf %317 : vector<8x128xf32>
    %319 = math.exp %318 : vector<8x128xf32>
    %cst_63 = arith.constant 1.000000e+00 : f32
    %320 = vector.broadcast %cst_63 : f32 to vector<8x128xf32>
    %321 = arith.addf %320, %319 : vector<8x128xf32>
    %322 = arith.divf %320, %321 : vector<8x128xf32>
    %323 = vector.extract_strided_slice %316 {offsets = [0, 128], sizes = [8, 128], strides = [1, 1]} : vector<8x512xf32> to vector<8x128xf32>
    %324 = arith.negf %323 : vector<8x128xf32>
    %325 = math.exp %324 : vector<8x128xf32>
    %cst_64 = arith.constant 1.000000e+00 : f32
    %326 = vector.broadcast %cst_64 : f32 to vector<8x128xf32>
    %327 = arith.addf %326, %325 : vector<8x128xf32>
    %328 = arith.divf %326, %327 : vector<8x128xf32>
    %329 = vector.extract_strided_slice %316 {offsets = [0, 256], sizes = [8, 128], strides = [1, 1]} : vector<8x512xf32> to vector<8x128xf32>
    %330 = math.tanh %329 : vector<8x128xf32>
    %331 = vector.extract_strided_slice %316 {offsets = [0, 384], sizes = [8, 128], strides = [1, 1]} : vector<8x512xf32> to vector<8x128xf32>
    %332 = arith.negf %331 : vector<8x128xf32>
    %333 = math.exp %332 : vector<8x128xf32>
    %cst_65 = arith.constant 1.000000e+00 : f32
    %334 = vector.broadcast %cst_65 : f32 to vector<8x128xf32>
    %335 = arith.addf %334, %333 : vector<8x128xf32>
    %336 = arith.divf %334, %335 : vector<8x128xf32>
    %337 = arith.mulf %328, %306 : vector<8x128xf32>
    %338 = arith.mulf %322, %330 : vector<8x128xf32>
    %339 = arith.addf %337, %338 : vector<8x128xf32>
    %340 = math.tanh %339 : vector<8x128xf32>
    %341 = arith.mulf %336, %340 : vector<8x128xf32>
    %c7_i32 = arith.constant 7 : i32
    %342 = vector.broadcast %c7_i32 : i32 to vector<8x1xi32>
    %343 = arith.cmpi sgt, %9, %342 : vector<8x1xi32>
    %344 = vector.shape_cast %343 : vector<8x1xi1> to vector<8x1xi1>
    %345 = vector.broadcast %344 : vector<8x1xi1> to vector<8x128xi1>
    %346 = arith.select %345, %341, %303 : vector<8x128xi1>, vector<8x128xf32>
    %347 = vector.shape_cast %343 : vector<8x1xi1> to vector<8x1xi1>
    %348 = vector.broadcast %347 : vector<8x1xi1> to vector<8x128xi1>
    %349 = arith.select %348, %339, %306 : vector<8x128xi1>, vector<8x128xf32>
    %cst_66 = arith.constant 0.000000e+00 : f32
    %350 = vector.broadcast %cst_66 : f32 to vector<8x128xf32>
    %351 = vector.shape_cast %343 : vector<8x1xi1> to vector<8x1xi1>
    %352 = vector.broadcast %351 : vector<8x1xi1> to vector<8x128xi1>
    %353 = arith.select %352, %341, %350 : vector<8x128xi1>, vector<8x128xf32>
    %354 = vector.shape_cast %353 : vector<8x128xf32> to vector<8x1x128xf32>
    %c0_67 = arith.constant 0 : index
    %c7 = arith.constant 7 : index
    %c0_68 = arith.constant 0 : index
    %355 = vector.load %arg6[%c0_67, %c7, %c0_68] : memref<8x8x128xf32, #tpu.memory_space<vmem>>, vector<8x1x128xf32>
    tpu.vector_store %arg6[%c0_67, %c7, %c0_68], %354 {strides = array<i32>} : memref<8x8x128xf32, #tpu.memory_space<vmem>>, vector<8x1x128xf32>,
    %c0_69 = arith.constant 0 : index
    %c0_70 = arith.constant 0 : index
    %356 = vector.load %arg7[%c0_69, %c0_70] : memref<8x128xf32, #tpu.memory_space<vmem>>, vector<8x128xf32>
    tpu.vector_store %arg7[%c0_69, %c0_70], %346 {strides = array<i32>} : memref<8x128xf32, #tpu.memory_space<vmem>>, vector<8x128xf32>,
    %c0_71 = arith.constant 0 : index
    %c0_72 = arith.constant 0 : index
    %357 = vector.load %arg8[%c0_71, %c0_72] : memref<8x128xf32, #tpu.memory_space<vmem>>, vector<8x128xf32>
    tpu.vector_store %arg8[%c0_71, %c0_72], %349 {strides = array<i32>} : memref<8x128xf32, #tpu.memory_space<vmem>>, vector<8x128xf32>,
    return
  }
  func.func @transform_0(%arg0: i32) -> (i32, i32, i32) {
    %c0_i32 = arith.constant 0 : i32
    %c0_i32_0 = arith.constant 0 : i32
    %c0_i32_1 = arith.constant 0 : i32
    %c0_i32_2 = arith.constant 0 : i32
    return %c0_i32, %c0_i32_0, %c0_i32_1 : i32, i32, i32
  }
  func.func @transform_1(%arg0: i32) -> (i32, i32) {
    %c0_i32 = arith.constant 0 : i32
    %c0_i32_0 = arith.constant 0 : i32
    %c0_i32_1 = arith.constant 0 : i32
    return %c0_i32, %c0_i32_0 : i32, i32
  }
  func.func @transform_2(%arg0: i32) -> (i32, i32) {
    %c0_i32 = arith.constant 0 : i32
    %c0_i32_0 = arith.constant 0 : i32
    %c0_i32_1 = arith.constant 0 : i32
    return %c0_i32, %c0_i32_0 : i32, i32
  }
  func.func @transform_3(%arg0: i32) -> (i32, i32) {
    %c0_i32 = arith.constant 0 : i32
    %c0_i32_0 = arith.constant 0 : i32
    %c0_i32_1 = arith.constant 0 : i32
    return %c0_i32, %c0_i32_0 : i32, i32
  }
  func.func @transform_4(%arg0: i32) -> (i32, i32) {
    %c0_i32 = arith.constant 0 : i32
    %c0_i32_0 = arith.constant 0 : i32
    %c0_i32_1 = arith.constant 0 : i32
    return %c0_i32, %c0_i32_0 : i32, i32
  }
  func.func @transform_5(%arg0: i32) -> (i32, i32, i32) {
    %c0_i32 = arith.constant 0 : i32
    %c0_i32_0 = arith.constant 0 : i32
    %c0_i32_1 = arith.constant 0 : i32
    %c0_i32_2 = arith.constant 0 : i32
    return %c0_i32, %c0_i32_0, %c0_i32_1 : i32, i32, i32
  }
  func.func @transform_6(%arg0: i32) -> (i32, i32) {
    %c0_i32 = arith.constant 0 : i32
    %c0_i32_0 = arith.constant 0 : i32
    %c0_i32_1 = arith.constant 0 : i32
    return %c0_i32, %c0_i32_0 : i32, i32
  }
  func.func @transform_7(%arg0: i32) -> (i32, i32) {
    %c0_i32 = arith.constant 0 : i32
    %c0_i32_0 = arith.constant 0 : i32
    %c0_i32_1 = arith.constant 0 : i32
    return %c0_i32, %c0_i32_0 : i32, i32
  }
}

</mosaic_0001>

<llo_original>
// kernel: tpu_custom_call.1
$region0: #{tpu_custom_call.1}
  #allocation0 [shape = 'u32[]', space=smem, size = 0x4, offset = 0x4, fixed_abs, tag = 'smem constant byte address 0x4 - core index']
  #allocation1 [shape = 'u32[144,128]{1,0:T(1,128)}', space=vmem, size = 0x12000, scoped, tag = 'internal scratch']
  %s0 = inlined_call_operand.hbm [shape: f32[8,8,128], index: 0, kind: input, shape index: {}]
  %s1 = inlined_call_operand.hbm [shape: f32[128,512], index: 1, kind: input, shape index: {}]
  %s2 = inlined_call_operand.hbm [shape: f32[128,512], index: 2, kind: input, shape index: {}]
  %s3 = inlined_call_operand.vmem [shape: f32[1,512], index: 3, kind: input, shape index: {}]
  %s4 = inlined_call_operand.vmem [shape: s32[8,1], index: 4, kind: input, shape index: {}]
  %s5 = inlined_call_operand.hbm [shape: f32[8,8,128], index: 5, kind: output, shape index: {0}]
  %s6 = inlined_call_operand.hbm [shape: f32[8,128], index: 6, kind: output, shape index: {1}]
  %s7 = inlined_call_operand.hbm [shape: f32[8,128], index: 7, kind: output, shape index: {2}]
  %8 = xla_tuple %s5, %s6, %s7
  %s9 = sld [smem:[#allocation0]]
  $region58: #{tpu_custom_call.1} parent=0
    _
  %s11 = ssub.s32 1, %s9
  %s12 = scalar_select 0, %s11, %s9
  $region1: #{tpu_custom_call.1} parent=0
    #allocation2 [shape = 'u8[32768]{0}', space=vmem, size = 0x8000, scoped, tag = 'input window, operand 0, single buffered']
    #allocation3 [shape = 's32[1]{0}', space=sflag, size = 0x4, scoped, tag = 'scoped memory for tpu_custom_call.1']
    #allocation4 [shape = 's32[1]{0}', space=sflag, size = 0x4, scoped, tag = 'scoped memory for tpu_custom_call.1']
    #allocation5 [shape = 'u8[262144]{0}', space=vmem, size = 0x40000, scoped, tag = 'input window, operand 1, single buffered']
    #allocation6 [shape = 's32[1]{0}', space=sflag, size = 0x4, scoped, tag = 'scoped memory for tpu_custom_call.1']
    #allocation7 [shape = 'u8[262144]{0}', space=vmem, size = 0x40000, scoped, tag = 'input window, operand 2, single buffered']
    #allocation8 [shape = 'u8[32768]{0}', space=vmem, size = 0x8000, scoped, tag = 'output window, operand 0, single buffered']
    #allocation9 [shape = 'u8[4096]{0}', space=vmem, size = 0x1000, scoped, tag = 'output window, operand 1, single buffered']
    #allocation10 [shape = 's32[1]{0}', space=sflag, size = 0x4, scoped, tag = 'scoped memory for tpu_custom_call.1']
    #allocation11 [shape = 'u8[4096]{0}', space=vmem, size = 0x1000, scoped, tag = 'output window, operand 2, single buffered']
    %13 = vsyncpa [#allocation3], 0
    %14 = vsyncpa [#allocation6], 0
    %15 = vsyncpa [#allocation4], 0
    %16 = vsyncpa [#allocation10], 0
    // Predicated region
    $region2: #{tpu_custom_call.1} parent=1 // pred_check
      _
    $region3: #{tpu_custom_call.1} parent=1 // pred_check_branch
      %18 = sbr.rel (0) target = $region5
    $region4: #{tpu_custom_call.1} parent=1 // pred_region
      %s20 = ssub.s32 1024, 1024
      %21 = vsyncadd [#allocation3], %s20
      %s22 = sshll.u32 [#allocation2], 4
      %s23 = int_to_ptr.vmem [resolvable:$true] %s22
      %28 = dma.hbm_to_vmem [thread:$0]  %s0, 1024, %s23, [#allocation3], 128, 128, 8
    $region5: #{tpu_custom_call.1} parent=1 // pred_fallthru
      _
    // Predicated region
    $region6: #{tpu_custom_call.1} parent=1 // pred_check
      _
    $region7: #{tpu_custom_call.1} parent=1 // pred_check_branch
      %30 = sbr.rel (0) target = $region9
    $region8: #{tpu_custom_call.1} parent=1 // pred_region
      %s32 = ssub.s32 8192, 8192
      %33 = vsyncadd [#allocation6], %s32
      %s34 = sshll.u32 [#allocation5], 4
      %s35 = int_to_ptr.vmem [resolvable:$true] %s34
      %40 = dma.hbm_to_vmem [thread:$0]  %s1, 8192, %s35, [#allocation6], 512, 512, 32
    $region9: #{tpu_custom_call.1} parent=1 // pred_fallthru
      _
    // Predicated region
    $region10: #{tpu_custom_call.1} parent=1 // pred_check
      _
    $region11: #{tpu_custom_call.1} parent=1 // pred_check_branch
      %42 = sbr.rel (0) target = $region13
    $region12: #{tpu_custom_call.1} parent=1 // pred_region
      %s44 = ssub.s32 8192, 8192
      %45 = vsyncadd [#allocation6], %s44
      %s46 = sshll.u32 [#allocation7], 4
      %s47 = int_to_ptr.vmem [resolvable:$true] %s46
      %52 = dma.hbm_to_vmem [thread:$0]  %s2, 8192, %s47, [#allocation6], 512, 512, 32
    $region13: #{tpu_custom_call.1} parent=1 // pred_fallthru
      _
    // Predicated region
    $region14: #{tpu_custom_call.1} parent=1 // pred_check
      _
    $region15: #{tpu_custom_call.1} parent=1 // pred_check_branch
      %54 = sbr.rel (0) target = $region17
    $region16: #{tpu_custom_call.1} parent=1 // pred_region
      _
    $region17: #{tpu_custom_call.1} parent=1 // pred_fallthru
      _
    // Predicated region
    $region18: #{tpu_custom_call.1} parent=1 // pred_check
      _
    $region19: #{tpu_custom_call.1} parent=1 // pred_check_branch
      %56 = sbr.rel (0) target = $region21
    $region20: #{tpu_custom_call.1} parent=1 // pred_region
      _
    $region21: #{tpu_custom_call.1} parent=1 // pred_fallthru
      _
    // Predicated region
    $region22: #{tpu_custom_call.1} parent=1 // pred_check
      _
    $region23: #{tpu_custom_call.1} parent=1 // pred_check_branch
      %58 = sbr.rel (0) target = $region25
    $region24: #{tpu_custom_call.1} parent=1 // pred_region
      %59 = dma.done [#allocation3], 1024
    $region25: #{tpu_custom_call.1} parent=1 // pred_fallthru
      _
    // Predicated region
    $region26: #{tpu_custom_call.1} parent=1 // pred_check
      _
    $region27: #{tpu_custom_call.1} parent=1 // pred_check_branch
      %61 = sbr.rel (0) target = $region29
    $region28: #{tpu_custom_call.1} parent=1 // pred_region
      %62 = dma.done [#allocation6], 8192
    $region29: #{tpu_custom_call.1} parent=1 // pred_fallthru
      _
    // Predicated region
    $region30: #{tpu_custom_call.1} parent=1 // pred_check
      _
    $region31: #{tpu_custom_call.1} parent=1 // pred_check_branch
      %64 = sbr.rel (0) target = $region33
    $region32: #{tpu_custom_call.1} parent=1 // pred_region
      %65 = dma.done [#allocation6], 8192
    $region33: #{tpu_custom_call.1} parent=1 // pred_fallthru
      _
    %v66 = vld [vmem:[#allocation2] sm:$0xff]
    %v67 = vld [vmem:[#allocation2 + $0x8] sm:$0xff]
    %v68 = vld [vmem:[#allocation2 + $0x10] sm:$0xff]
    %v69 = vld [vmem:[#allocation2 + $0x18] sm:$0xff]
    %v70 = vld [vmem:[#allocation2 + $0x20] sm:$0xff]
    %v71 = vld [vmem:[#allocation2 + $0x28] sm:$0xff]
    %v72 = vld [vmem:[#allocation2 + $0x30] sm:$0xff]
    %v73 = vld [vmem:[#allocation2 + $0x38] sm:$0xff]
    %v74 = vld [vmem:[#allocation5] sm:$0xff]
    %v75 = vld [vmem:[#allocation5 + $0x8] sm:$0xff]
    %v76 = vld [vmem:[#allocation5 + $0x10] sm:$0xff]
    %v77 = vld [vmem:[#allocation5 + $0x18] sm:$0xff]
    %v78 = vld [vmem:[#allocation5 + $0x20] sm:$0xff]
    %v79 = vld [vmem:[#allocation5 + $0x28] sm:$0xff]
    %v80 = vld [vmem:[#allocation5 + $0x30] sm:$0xff]
    %v81 = vld [vmem:[#allocation5 + $0x38] sm:$0xff]
    %v82 = vld [vmem:[#allocation5 + $0x40] sm:$0xff]
    %v83 = vld [vmem:[#allocation5 + $0x48] sm:$0xff]
    %v84 = vld [vmem:[#allocation5 + $0x50] sm:$0xff]
    %v85 = vld [vmem:[#allocation5 + $0x58] sm:$0xff]
    %v86 = vld [vmem:[#allocation5 + $0x60] sm:$0xff]
    %v87 = vld [vmem:[#allocation5 + $0x68] sm:$0xff]
    %v88 = vld [vmem:[#allocation5 + $0x70] sm:$0xff]
    %v89 = vld [vmem:[#allocation5 + $0x78] sm:$0xff]
    %v90 = vld [vmem:[#allocation5 + $0x80] sm:$0xff]
    %v91 = vld [vmem:[#allocation5 + $0x88] sm:$0xff]
    %v92 = vld [vmem:[#allocation5 + $0x90] sm:$0xff]
    %v93 = vld [vmem:[#allocation5 + $0x98] sm:$0xff]
    %v94 = vld [vmem:[#allocation5 + $0xa0] sm:$0xff]
    %v95 = vld [vmem:[#allocation5 + $0xa8] sm:$0xff]
    %v96 = vld [vmem:[#allocation5 + $0xb0] sm:$0xff]
    %v97 = vld [vmem:[#allocation5 + $0xb8] sm:$0xff]
    %v98 = vld [vmem:[#allocation5 + $0xc0] sm:$0xff]
    %v99 = vld [vmem:[#allocation5 + $0xc8] sm:$0xff]
    %v100 = vld [vmem:[#allocation5 + $0xd0] sm:$0xff]
    %v101 = vld [vmem:[#allocation5 + $0xd8] sm:$0xff]
    %v102 = vld [vmem:[#allocation5 + $0xe0] sm:$0xff]
    %v103 = vld [vmem:[#allocation5 + $0xe8] sm:$0xff]
    %v104 = vld [vmem:[#allocation5 + $0xf0] sm:$0xff]
    %v105 = vld [vmem:[#allocation5 + $0xf8] sm:$0xff]
    %v106 = vld [vmem:[#allocation5 + $0x100] sm:$0xff]
    %v107 = vld [vmem:[#allocation5 + $0x108] sm:$0xff]
    %v108 = vld [vmem:[#allocation5 + $0x110] sm:$0xff]
    %v109 = vld [vmem:[#allocation5 + $0x118] sm:$0xff]
    %v110 = vld [vmem:[#allocation5 + $0x120] sm:$0xff]
    %v111 = vld [vmem:[#allocation5 + $0x128] sm:$0xff]
    %v112 = vld [vmem:[#allocation5 + $0x130] sm:$0xff]
    %v113 = vld [vmem:[#allocation5 + $0x138] sm:$0xff]
    %v114 = vld [vmem:[#allocation5 + $0x140] sm:$0xff]
    %v115 = vld [vmem:[#allocation5 + $0x148] sm:$0xff]
    %v116 = vld [vmem:[#allocation5 + $0x150] sm:$0xff]
    %v117 = vld [vmem:[#allocation5 + $0x158] sm:$0xff]
    %v118 = vld [vmem:[#allocation5 + $0x160] sm:$0xff]
    %v119 = vld [vmem:[#allocation5 + $0x168] sm:$0xff]
    %v120 = vld [vmem:[#allocation5 + $0x170] sm:$0xff]
    %v121 = vld [vmem:[#allocation5 + $0x178] sm:$0xff]
    %v122 = vld [vmem:[#allocation5 + $0x180] sm:$0xff]
    %v123 = vld [vmem:[#allocation5 + $0x188] sm:$0xff]
    %v124 = vld [vmem:[#allocation5 + $0x190] sm:$0xff]
    %v125 = vld [vmem:[#allocation5 + $0x198] sm:$0xff]
    %v126 = vld [vmem:[#allocation5 + $0x1a0] sm:$0xff]
    %v127 = vld [vmem:[#allocation5 + $0x1a8] sm:$0xff]
    %v128 = vld [vmem:[#allocation5 + $0x1b0] sm:$0xff]
    %v129 = vld [vmem:[#allocation5 + $0x1b8] sm:$0xff]
    %v130 = vld [vmem:[#allocation5 + $0x1c0] sm:$0xff]
    %v131 = vld [vmem:[#allocation5 + $0x1c8] sm:$0xff]
    %v132 = vld [vmem:[#allocation5 + $0x1d0] sm:$0xff]
    %v133 = vld [vmem:[#allocation5 + $0x1d8] sm:$0xff]
    %v134 = vld [vmem:[#allocation5 + $0x1e0] sm:$0xff]
    %v135 = vld [vmem:[#allocation5 + $0x1e8] sm:$0xff]
    %v136 = vld [vmem:[#allocation5 + $0x1f0] sm:$0xff]
    %v137 = vld [vmem:[#allocation5 + $0x1f8] sm:$0xff]
    %v138 = vld [vmem:[%s3] sm:$0xf]
    %v140 = vlaneseq
    %v141 = vshrl.u32 %v140, 7
    %v142 = vsub.s32 0, %v141
    %v143 = vrot.slane %v138, %v142
    %v144 = vlaneseq
    %v145 = vshrl.u32 %v144, 7
    %v146 = vsub.s32 1, %v145
    %v147 = vrot.slane %v138, %v146
    %v148 = vlaneseq
    %v149 = vshrl.u32 %v148, 7
    %v150 = vsub.s32 2, %v149
    %v151 = vrot.slane %v138, %v150
    %v152 = vlaneseq
    %v153 = vshrl.u32 %v152, 7
    %v154 = vsub.s32 3, %v153
    %v155 = vrot.slane %v138, %v154
    %160 = vmatprep.subr.mxu0 %v75
    %161 = vmatpush1.msra.mxu0 %v74
    %162 = vmatprep.subr.mxu0 %v79
    %163 = vmatpush1.msra.mxu0 %v78
    %164 = vmatprep.subr.mxu0 %v83
    %165 = vmatpush1.msra.mxu0 %v82
    %166 = vmatprep.subr.mxu0 %v87
    %167 = vmatpush1.msra.mxu0 %v86
    %168 = vmatprep.subr.mxu0 %v91
    %169 = vmatpush1.msra.mxu0 %v90
    %170 = vmatprep.subr.mxu0 %v95
    %171 = vmatpush1.msra.mxu0 %v94
    %172 = vmatprep.subr.mxu0 %v99
    %173 = vmatpush1.msra.mxu0 %v98
    %174 = vmatprep.subr.mxu0 %v103
    %175 = vmatpush1.msra.mxu0 %v102
    %176 = vmatprep.subr.mxu0 %v107
    %177 = vmatpush1.msra.mxu0 %v106
    %178 = vmatprep.subr.mxu0 %v111
    %179 = vmatpush1.msra.mxu0 %v110
    %180 = vmatprep.subr.mxu0 %v115
    %181 = vmatpush1.msra.mxu0 %v114
    %182 = vmatprep.subr.mxu0 %v119
    %183 = vmatpush1.msra.mxu0 %v118
    %184 = vmatprep.subr.mxu0 %v123
    %185 = vmatpush1.msra.mxu0 %v122
    %186 = vmatprep.subr.mxu0 %v127
    %187 = vmatpush1.msra.mxu0 %v126
    %188 = vmatprep.subr.mxu0 %v131
    %189 = vmatpush1.msra.mxu0 %v130
    %190 = vmatprep.subr.mxu0 %v135
    %191 = vmatpush1.msra.mxu0 %v134
    %192 = vmatprep.subr.mxu0 0.0
    %193 = vmatpush1.msra.mxu0 0.0
    %194 = vmatprep.subr.mxu0 0.0
    %195 = vmatpush1.msra.mxu0 0.0
    %196 = vmatprep.subr.mxu0 0.0
    %197 = vmatpush1.msra.mxu0 0.0
    %198 = vmatprep.subr.mxu0 0.0
    %199 = vmatpush1.msra.mxu0 0.0
    %200 = vmatprep.subr.mxu0 0.0
    %201 = vmatpush1.msra.mxu0 0.0
    %202 = vmatprep.subr.mxu0 0.0
    %203 = vmatpush1.msra.mxu0 0.0
    %204 = vmatprep.subr.mxu0 0.0
    %205 = vmatpush1.msra.mxu0 0.0
    %206 = vmatprep.subr.mxu0 0.0
    %207 = vmatpush1.msra.mxu0 0.0
    %208 = vmatprep.subr.mxu0 0.0
    %209 = vmatpush1.msra.mxu0 0.0
    %210 = vmatprep.subr.mxu0 0.0
    %211 = vmatpush1.msra.mxu0 0.0
    %212 = vmatprep.subr.mxu0 0.0
    %213 = vmatpush1.msra.mxu0 0.0
    %214 = vmatprep.subr.mxu0 0.0
    %215 = vmatpush1.msra.mxu0 0.0
    %216 = vmatprep.subr.mxu0 0.0
    %217 = vmatpush1.msra.mxu0 0.0
    %218 = vmatprep.subr.mxu0 0.0
    %219 = vmatpush1.msra.mxu0 0.0
    %220 = vmatprep.subr.mxu0 0.0
    %221 = vmatpush1.msra.mxu0 0.0
    %222 = vmatprep.subr.mxu0 0.0
    %223 = vmatpush1.msra.mxu0 0.0
    %224 = vmatprep.mubr.f32.mxu0 0.0
    %225 = vmatmul.mubr.f32.gmra.mrb[0].mxu0 %v66
    %v226 = vpop.f32.mrb[0].mxu0
    %v227 = vadd.f32 %v143, %v226
    %v228 = vpop.f32.mrb[0].mxu0
    %v229 = vadd.f32 %v147, %v228
    %230 = vmatprep.mubr.f32.mxu0 0.0
    %231 = vmatmul.mubr.f32.gmra.mrb[0].mxu0 %v67
    %v232 = vpop.f32.mrb[0].mxu0
    %v233 = vadd.f32 %v143, %v232
    %v234 = vpop.f32.mrb[0].mxu0
    %v235 = vadd.f32 %v147, %v234
    %236 = vmatprep.mubr.f32.mxu0 0.0
    %237 = vmatmul.mubr.f32.gmra.mrb[0].mxu0 %v68
    %v238 = vpop.f32.mrb[0].mxu0
    %v239 = vadd.f32 %v143, %v238
    %v240 = vpop.f32.mrb[0].mxu0
    %v241 = vadd.f32 %v147, %v240
    %242 = vmatprep.mubr.f32.mxu0 0.0
    %243 = vmatmul.mubr.f32.gmra.mrb[0].mxu0 %v69
    %v244 = vpop.f32.mrb[0].mxu0
    %v245 = vadd.f32 %v143, %v244
    %v246 = vpop.f32.mrb[0].mxu0
    %v247 = vadd.f32 %v147, %v246
    %248 = vmatprep.mubr.f32.mxu0 0.0
    %249 = vmatmul.mubr.f32.gmra.mrb[0].mxu0 %v70
    %v250 = vpop.f32.mrb[0].mxu0
    %v251 = vadd.f32 %v143, %v250
    %v252 = vpop.f32.mrb[0].mxu0
    %v253 = vadd.f32 %v147, %v252
    %254 = vmatprep.mubr.f32.mxu0 0.0
    %255 = vmatmul.mubr.f32.gmra.mrb[0].mxu0 %v71
    %v256 = vpop.f32.mrb[0].mxu0
    %v257 = vadd.f32 %v143, %v256
    %v258 = vpop.f32.mrb[0].mxu0
    %v259 = vadd.f32 %v147, %v258
    %260 = vmatprep.mubr.f32.mxu0 0.0
    %261 = vmatmul.mubr.f32.gmra.mrb[0].mxu0 %v72
    %v262 = vpop.f32.mrb[0].mxu0
    %v263 = vadd.f32 %v143, %v262
    %v264 = vpop.f32.mrb[0].mxu0
    %v265 = vadd.f32 %v147, %v264
    %266 = vmatprep.mubr.f32.mxu0 0.0
    %267 = vmatmul.mubr.f32.gmra.mrb[0].mxu0 %v73
    %v268 = vpop.f32.mrb[0].mxu0
    %v269 = vadd.f32 %v143, %v268
    %v270 = vpop.f32.mrb[0].mxu0
    %v271 = vadd.f32 %v147, %v270
    %272 = vdwg.mxu0
    %273 = vmatprep.subr.mxu0 %v77
    %274 = vmatpush1.msra.mxu0 %v76
    %275 = vmatprep.subr.mxu0 %v81
    %276 = vmatpush1.msra.mxu0 %v80
    %277 = vmatprep.subr.mxu0 %v85
    %278 = vmatpush1.msra.mxu0 %v84
    %279 = vmatprep.subr.mxu0 %v89
    %280 = vmatpush1.msra.mxu0 %v88
    %281 = vmatprep.subr.mxu0 %v93
    %282 = vmatpush1.msra.mxu0 %v92
    %283 = vmatprep.subr.mxu0 %v97
    %284 = vmatpush1.msra.mxu0 %v96
    %285 = vmatprep.subr.mxu0 %v101
    %286 = vmatpush1.msra.mxu0 %v100
    %287 = vmatprep.subr.mxu0 %v105
    %288 = vmatpush1.msra.mxu0 %v104
    %289 = vmatprep.subr.mxu0 %v109
    %290 = vmatpush1.msra.mxu0 %v108
    %291 = vmatprep.subr.mxu0 %v113
    %292 = vmatpush1.msra.mxu0 %v112
    %293 = vmatprep.subr.mxu0 %v117
    %294 = vmatpush1.msra.mxu0 %v116
    %295 = vmatprep.subr.mxu0 %v121
    %296 = vmatpush1.msra.mxu0 %v120
    %297 = vmatprep.subr.mxu0 %v125
    %298 = vmatpush1.msra.mxu0 %v124
    %299 = vmatprep.subr.mxu0 %v129
    %300 = vmatpush1.msra.mxu0 %v128
    %301 = vmatprep.subr.mxu0 %v133
    %302 = vmatpush1.msra.mxu0 %v132
    %303 = vmatprep.subr.mxu0 %v137
    %304 = vmatpush1.msra.mxu0 %v136
    %305 = vmatprep.subr.mxu0 0.0
    %306 = vmatpush1.msra.mxu0 0.0
    %307 = vmatprep.subr.mxu0 0.0
    %308 = vmatpush1.msra.mxu0 0.0
    %309 = vmatprep.subr.mxu0 0.0
    %310 = vmatpush1.msra.mxu0 0.0
    %311 = vmatprep.subr.mxu0 0.0
    %312 = vmatpush1.msra.mxu0 0.0
    %313 = vmatprep.subr.mxu0 0.0
    %314 = vmatpush1.msra.mxu0 0.0
    %315 = vmatprep.subr.mxu0 0.0
    %316 = vmatpush1.msra.mxu0 0.0
    %317 = vmatprep.subr.mxu0 0.0
    %318 = vmatpush1.msra.mxu0 0.0
    %319 = vmatprep.subr.mxu0 0.0
    %320 = vmatpush1.msra.mxu0 0.0
    %321 = vmatprep.subr.mxu0 0.0
    %322 = vmatpush1.msra.mxu0 0.0
    %323 = vmatprep.subr.mxu0 0.0
    %324 = vmatpush1.msra.mxu0 0.0
    %325 = vmatprep.subr.mxu0 0.0
    %326 = vmatpush1.msra.mxu0 0.0
    %327 = vmatprep.subr.mxu0 0.0
    %328 = vmatpush1.msra.mxu0 0.0
    %329 = vmatprep.subr.mxu0 0.0
    %330 = vmatpush1.msra.mxu0 0.0
    %331 = vmatprep.subr.mxu0 0.0
    %332 = vmatpush1.msra.mxu0 0.0
    %333 = vmatprep.subr.mxu0 0.0
    %334 = vmatpush1.msra.mxu0 0.0
    %335 = vmatprep.subr.mxu0 0.0
    %336 = vmatpush1.msra.mxu0 0.0
    %337 = vmatprep.mubr.f32.mxu0 0.0
    %338 = vmatmul.mubr.f32.gmra.mrb[0].mxu0 %v66
    %v339 = vpop.f32.mrb[0].mxu0
    %v340 = vadd.f32 %v151, %v339
    %v341 = vpop.f32.mrb[0].mxu0
    %v342 = vadd.f32 %v155, %v341
    %343 = vmatprep.mubr.f32.mxu0 0.0
    %344 = vmatmul.mubr.f32.gmra.mrb[0].mxu0 %v67
    %v345 = vpop.f32.mrb[0].mxu0
    %v346 = vadd.f32 %v151, %v345
    %v347 = vpop.f32.mrb[0].mxu0
    %v348 = vadd.f32 %v155, %v347
    %349 = vmatprep.mubr.f32.mxu0 0.0
    %350 = vmatmul.mubr.f32.gmra.mrb[0].mxu0 %v68
    %v351 = vpop.f32.mrb[0].mxu0
    %v352 = vadd.f32 %v151, %v351
    %v353 = vpop.f32.mrb[0].mxu0
    %v354 = vadd.f32 %v155, %v353
    %355 = vmatprep.mubr.f32.mxu0 0.0
    %356 = vmatmul.mubr.f32.gmra.mrb[0].mxu0 %v69
    %v357 = vpop.f32.mrb[0].mxu0
    %v358 = vadd.f32 %v151, %v357
    %v359 = vpop.f32.mrb[0].mxu0
    %v360 = vadd.f32 %v155, %v359
    %361 = vmatprep.mubr.f32.mxu0 0.0
    %362 = vmatmul.mubr.f32.gmra.mrb[0].mxu0 %v70
    %v363 = vpop.f32.mrb[0].mxu0
    %v364 = vadd.f32 %v151, %v363
    %v365 = vpop.f32.mrb[0].mxu0
    %v366 = vadd.f32 %v155, %v365
    %367 = vmatprep.mubr.f32.mxu0 0.0
    %368 = vmatmul.mubr.f32.gmra.mrb[0].mxu0 %v71
    %v369 = vpop.f32.mrb[0].mxu0
    %v370 = vadd.f32 %v151, %v369
    %v371 = vpop.f32.mrb[0].mxu0
    %v372 = vadd.f32 %v155, %v371
    %373 = vmatprep.mubr.f32.mxu0 0.0
    %374 = vmatmul.mubr.f32.gmra.mrb[0].mxu0 %v72
    %v375 = vpop.f32.mrb[0].mxu0
    %v376 = vadd.f32 %v151, %v375
    %v377 = vpop.f32.mrb[0].mxu0
    %v378 = vadd.f32 %v155, %v377
    %379 = vmatprep.mubr.f32.mxu0 0.0
    %380 = vmatmul.mubr.f32.gmra.mrb[0].mxu0 %v73
    %v381 = vpop.f32.mrb[0].mxu0
    %v382 = vadd.f32 %v151, %v381
    %v383 = vpop.f32.mrb[0].mxu0
    %v384 = vadd.f32 %v155, %v383
    %385 = vdwg.mxu0
    %v386 = vld [vmem:[#allocation7] sm:$0xff]
    %v387 = vld [vmem:[#allocation7 + $0x8] sm:$0xff]
    %v388 = vld [vmem:[#allocation7 + $0x10] sm:$0xff]
    %v389 = vld [vmem:[#allocation7 + $0x18] sm:$0xff]
    %v390 = vld [vmem:[#allocation7 + $0x20] sm:$0xff]
    %v391 = vld [vmem:[#allocation7 + $0x28] sm:$0xff]
    %v392 = vld [vmem:[#allocation7 + $0x30] sm:$0xff]
    %v393 = vld [vmem:[#allocation7 + $0x38] sm:$0xff]
    %v394 = vld [vmem:[#allocation7 + $0x40] sm:$0xff]
    %v395 = vld [vmem:[#allocation7 + $0x48] sm:$0xff]
    %v396 = vld [vmem:[#allocation7 + $0x50] sm:$0xff]
    %v397 = vld [vmem:[#allocation7 + $0x58] sm:$0xff]
    %v398 = vld [vmem:[#allocation7 + $0x60] sm:$0xff]
    %v399 = vld [vmem:[#allocation7 + $0x68] sm:$0xff]
    %v400 = vld [vmem:[#allocation7 + $0x70] sm:$0xff]
    %v401 = vld [vmem:[#allocation7 + $0x78] sm:$0xff]
    %v402 = vld [vmem:[#allocation7 + $0x80] sm:$0xff]
    %v403 = vld [vmem:[#allocation7 + $0x88] sm:$0xff]
    %v404 = vld [vmem:[#allocation7 + $0x90] sm:$0xff]
    %v405 = vld [vmem:[#allocation7 + $0x98] sm:$0xff]
    %v406 = vld [vmem:[#allocation7 + $0xa0] sm:$0xff]
    %v407 = vld [vmem:[#allocation7 + $0xa8] sm:$0xff]
    %v408 = vld [vmem:[#allocation7 + $0xb0] sm:$0xff]
    %v409 = vld [vmem:[#allocation7 + $0xb8] sm:$0xff]
    %v410 = vld [vmem:[#allocation7 + $0xc0] sm:$0xff]
    %v411 = vld [vmem:[#allocation7 + $0xc8] sm:$0xff]
    %v412 = vld [vmem:[#allocation7 + $0xd0] sm:$0xff]
    %v413 = vld [vmem:[#allocation7 + $0xd8] sm:$0xff]
    %v414 = vld [vmem:[#allocation7 + $0xe0] sm:$0xff]
    %v415 = vld [vmem:[#allocation7 + $0xe8] sm:$0xff]
    %v416 = vld [vmem:[#allocation7 + $0xf0] sm:$0xff]
    %v417 = vld [vmem:[#allocation7 + $0xf8] sm:$0xff]
    %v418 = vld [vmem:[#allocation7 + $0x100] sm:$0xff]
    %v419 = vld [vmem:[#allocation7 + $0x108] sm:$0xff]
    %v420 = vld [vmem:[#allocation7 + $0x110] sm:$0xff]
    %v421 = vld [vmem:[#allocation7 + $0x118] sm:$0xff]
    %v422 = vld [vmem:[#allocation7 + $0x120] sm:$0xff]
    %v423 = vld [vmem:[#allocation7 + $0x128] sm:$0xff]
    %v424 = vld [vmem:[#allocation7 + $0x130] sm:$0xff]
    %v425 = vld [vmem:[#allocation7 + $0x138] sm:$0xff]
    %v426 = vld [vmem:[#allocation7 + $0x140] sm:$0xff]
    %v427 = vld [vmem:[#allocation7 + $0x148] sm:$0xff]
    %v428 = vld [vmem:[#allocation7 + $0x150] sm:$0xff]
    %v429 = vld [vmem:[#allocation7 + $0x158] sm:$0xff]
    %v430 = vld [vmem:[#allocation7 + $0x160] sm:$0xff]
    %v431 = vld [vmem:[#allocation7 + $0x168] sm:$0xff]
    %v432 = vld [vmem:[#allocation7 + $0x170] sm:$0xff]
    %v433 = vld [vmem:[#allocation7 + $0x178] sm:$0xff]
    %v434 = vld [vmem:[#allocation7 + $0x180] sm:$0xff]
    %v435 = vld [vmem:[#allocation7 + $0x188] sm:$0xff]
    %v436 = vld [vmem:[#allocation7 + $0x190] sm:$0xff]
    %v437 = vld [vmem:[#allocation7 + $0x198] sm:$0xff]
    %v438 = vld [vmem:[#allocation7 + $0x1a0] sm:$0xff]
    %v439 = vld [vmem:[#allocation7 + $0x1a8] sm:$0xff]
    %v440 = vld [vmem:[#allocation7 + $0x1b0] sm:$0xff]
    %v441 = vld [vmem:[#allocation7 + $0x1b8] sm:$0xff]
    %v442 = vld [vmem:[#allocation7 + $0x1c0] sm:$0xff]
    %v443 = vld [vmem:[#allocation7 + $0x1c8] sm:$0xff]
    %v444 = vld [vmem:[#allocation7 + $0x1d0] sm:$0xff]
    %v445 = vld [vmem:[#allocation7 + $0x1d8] sm:$0xff]
    %v446 = vld [vmem:[#allocation7 + $0x1e0] sm:$0xff]
    %v447 = vld [vmem:[#allocation7 + $0x1e8] sm:$0xff]
    %v448 = vld [vmem:[#allocation7 + $0x1f0] sm:$0xff]
    %v449 = vld [vmem:[#allocation7 + $0x1f8] sm:$0xff]
    %v450 = vld [vmem:[%s4] sm:$0xff]
    %451 = vmatprep.subr.mxu0 %v387
    %452 = vmatpush1.msra.mxu0 %v386
    %453 = vmatprep.subr.mxu0 %v391
    %454 = vmatpush1.msra.mxu0 %v390
    %455 = vmatprep.subr.mxu0 %v395
    %456 = vmatpush1.msra.mxu0 %v394
    %457 = vmatprep.subr.mxu0 %v399
    %458 = vmatpush1.msra.mxu0 %v398
    %459 = vmatprep.subr.mxu0 %v403
    %460 = vmatpush1.msra.mxu0 %v402
    %461 = vmatprep.subr.mxu0 %v407
    %462 = vmatpush1.msra.mxu0 %v406
    %463 = vmatprep.subr.mxu0 %v411
    %464 = vmatpush1.msra.mxu0 %v410
    %465 = vmatprep.subr.mxu0 %v415
    %466 = vmatpush1.msra.mxu0 %v414
    %467 = vmatprep.subr.mxu0 %v419
    %468 = vmatpush1.msra.mxu0 %v418
    %469 = vmatprep.subr.mxu0 %v423
    %470 = vmatpush1.msra.mxu0 %v422
    %471 = vmatprep.subr.mxu0 %v427
    %472 = vmatpush1.msra.mxu0 %v426
    %473 = vmatprep.subr.mxu0 %v431
    %474 = vmatpush1.msra.mxu0 %v430
    %475 = vmatprep.subr.mxu0 %v435
    %476 = vmatpush1.msra.mxu0 %v434
    %477 = vmatprep.subr.mxu0 %v439
    %478 = vmatpush1.msra.mxu0 %v438
    %479 = vmatprep.subr.mxu0 %v443
    %480 = vmatpush1.msra.mxu0 %v442
    %481 = vmatprep.subr.mxu0 %v447
    %482 = vmatpush1.msra.mxu0 %v446
    %483 = vmatprep.subr.mxu0 0.0
    %484 = vmatpush1.msra.mxu0 0.0
    %485 = vmatprep.subr.mxu0 0.0
    %486 = vmatpush1.msra.mxu0 0.0
    %487 = vmatprep.subr.mxu0 0.0
    %488 = vmatpush1.msra.mxu0 0.0
    %489 = vmatprep.subr.mxu0 0.0
    %490 = vmatpush1.msra.mxu0 0.0
    %491 = vmatprep.subr.mxu0 0.0
    %492 = vmatpush1.msra.mxu0 0.0
    %493 = vmatprep.subr.mxu0 0.0
    %494 = vmatpush1.msra.mxu0 0.0
    %495 = vmatprep.subr.mxu0 0.0
    %496 = vmatpush1.msra.mxu0 0.0
    %497 = vmatprep.subr.mxu0 0.0
    %498 = vmatpush1.msra.mxu0 0.0
    %499 = vmatprep.subr.mxu0 0.0
    %500 = vmatpush1.msra.mxu0 0.0
    %501 = vmatprep.subr.mxu0 0.0
    %502 = vmatpush1.msra.mxu0 0.0
    %503 = vmatprep.subr.mxu0 0.0
    %504 = vmatpush1.msra.mxu0 0.0
    %505 = vmatprep.subr.mxu0 0.0
    %506 = vmatpush1.msra.mxu0 0.0
    %507 = vmatprep.subr.mxu0 0.0
    %508 = vmatpush1.msra.mxu0 0.0
    %509 = vmatprep.subr.mxu0 0.0
    %510 = vmatpush1.msra.mxu0 0.0
    %511 = vmatprep.subr.mxu0 0.0
    %512 = vmatpush1.msra.mxu0 0.0
    %513 = vmatprep.subr.mxu0 0.0
    %514 = vmatpush1.msra.mxu0 0.0
    %515 = vmatprep.mubr.f32.mxu0 0.0
    %516 = vmatmul.mubr.f32.gmra.mrb[0].mxu0 0.0
    %v517 = vpop.f32.mrb[0].mxu0
    %v518 = vadd.f32 0.0, %v517
    %v519 = vpop.f32.mrb[0].mxu0
    %v520 = vadd.f32 0.0, %v519
    %521 = vdwg.mxu0
    %522 = vmatprep.subr.mxu0 %v389
    %523 = vmatpush1.msra.mxu0 %v388
    %524 = vmatprep.subr.mxu0 %v393
    %525 = vmatpush1.msra.mxu0 %v392
    %526 = vmatprep.subr.mxu0 %v397
    %527 = vmatpush1.msra.mxu0 %v396
    %528 = vmatprep.subr.mxu0 %v401
    %529 = vmatpush1.msra.mxu0 %v400
    %530 = vmatprep.subr.mxu0 %v405
    %531 = vmatpush1.msra.mxu0 %v404
    %532 = vmatprep.subr.mxu0 %v409
    %533 = vmatpush1.msra.mxu0 %v408
    %534 = vmatprep.subr.mxu0 %v413
    %535 = vmatpush1.msra.mxu0 %v412
    %536 = vmatprep.subr.mxu0 %v417
    %537 = vmatpush1.msra.mxu0 %v416
    %538 = vmatprep.subr.mxu0 %v421
    %539 = vmatpush1.msra.mxu0 %v420
    %540 = vmatprep.subr.mxu0 %v425
    %541 = vmatpush1.msra.mxu0 %v424
    %542 = vmatprep.subr.mxu0 %v429
    %543 = vmatpush1.msra.mxu0 %v428
    %544 = vmatprep.subr.mxu0 %v433
    %545 = vmatpush1.msra.mxu0 %v432
    %546 = vmatprep.subr.mxu0 %v437
    %547 = vmatpush1.msra.mxu0 %v436
    %548 = vmatprep.subr.mxu0 %v441
    %549 = vmatpush1.msra.mxu0 %v440
    %550 = vmatprep.subr.mxu0 %v445
    %551 = vmatpush1.msra.mxu0 %v444
    %552 = vmatprep.subr.mxu0 %v449
    %553 = vmatpush1.msra.mxu0 %v448
    %554 = vmatprep.subr.mxu0 0.0
    %555 = vmatpush1.msra.mxu0 0.0
    %556 = vmatprep.subr.mxu0 0.0
    %557 = vmatpush1.msra.mxu0 0.0
    %558 = vmatprep.subr.mxu0 0.0
    %559 = vmatpush1.msra.mxu0 0.0
    %560 = vmatprep.subr.mxu0 0.0
    %561 = vmatpush1.msra.mxu0 0.0
    %562 = vmatprep.subr.mxu0 0.0
    %563 = vmatpush1.msra.mxu0 0.0
    %564 = vmatprep.subr.mxu0 0.0
    %565 = vmatpush1.msra.mxu0 0.0
    %566 = vmatprep.subr.mxu0 0.0
    %567 = vmatpush1.msra.mxu0 0.0
    %568 = vmatprep.subr.mxu0 0.0
    %569 = vmatpush1.msra.mxu0 0.0
    %570 = vmatprep.subr.mxu0 0.0
    %571 = vmatpush1.msra.mxu0 0.0
    %572 = vmatprep.subr.mxu0 0.0
    %573 = vmatpush1.msra.mxu0 0.0
    %574 = vmatprep.subr.mxu0 0.0
    %575 = vmatpush1.msra.mxu0 0.0
    %576 = vmatprep.subr.mxu0 0.0
    %577 = vmatpush1.msra.mxu0 0.0
    %578 = vmatprep.subr.mxu0 0.0
    %579 = vmatpush1.msra.mxu0 0.0
    %580 = vmatprep.subr.mxu0 0.0
    %581 = vmatpush1.msra.mxu0 0.0
    %582 = vmatprep.subr.mxu0 0.0
    %583 = vmatpush1.msra.mxu0 0.0
    %584 = vmatprep.subr.mxu0 0.0
    %585 = vmatpush1.msra.mxu0 0.0
    %586 = vmatprep.mubr.f32.mxu0 0.0
    %587 = vmatmul.mubr.f32.gmra.mrb[0].mxu0 0.0
    %v588 = vpop.f32.mrb[0].mxu0
    %v589 = vadd.f32 0.0, %v588
    %v590 = vpop.f32.mrb[0].mxu0
    %v591 = vadd.f32 0.0, %v590
    %592 = vdwg.mxu0
    %v597 = vrot.slane %v518, 1
    %v598 = vrot.slane %v520, 1
    %v599 = vrot.slane %v589, 1
    %v600 = vrot.slane %v591, 1
    %v601 = vrot.slane %v518, 2
    %v602 = vrot.slane %v520, 2
    %v603 = vrot.slane %v589, 2
    %v604 = vrot.slane %v591, 2
    %v605 = vrot.slane %v518, 3
    %v606 = vrot.slane %v520, 3
    %v607 = vrot.slane %v589, 3
    %v608 = vrot.slane %v591, 3
    %v609 = vrot.slane %v518, 4
    %v610 = vrot.slane %v520, 4
    %v611 = vrot.slane %v589, 4
    %v612 = vrot.slane %v591, 4
    %v613 = vrot.slane %v518, 5
    %v614 = vrot.slane %v520, 5
    %v615 = vrot.slane %v589, 5
    %v616 = vrot.slane %v591, 5
    %v617 = vrot.slane %v518, 6
    %v618 = vrot.slane %v520, 6
    %v619 = vrot.slane %v589, 6
    %v620 = vrot.slane %v591, 6
    %v621 = vrot.slane %v518, 7
    %v622 = vrot.slane %v520, 7
    %v623 = vrot.slane %v589, 7
    %v624 = vrot.slane %v591, 7
    %v657 = vadd.f32 %v227, %v518
    %v658 = vadd.f32 %v229, %v520
    %v659 = vadd.f32 %v340, %v589
    %v660 = vadd.f32 %v342, %v591
    %v661 = vadd.f32 %v233, %v597
    %v662 = vadd.f32 %v235, %v598
    %v663 = vadd.f32 %v346, %v599
    %v664 = vadd.f32 %v348, %v600
    %v665 = vadd.f32 %v239, %v601
    %v666 = vadd.f32 %v241, %v602
    %v667 = vadd.f32 %v352, %v603
    %v668 = vadd.f32 %v354, %v604
    %v669 = vadd.f32 %v245, %v605
    %v670 = vadd.f32 %v247, %v606
    %v671 = vadd.f32 %v358, %v607
    %v672 = vadd.f32 %v360, %v608
    %v673 = vadd.f32 %v251, %v609
    %v674 = vadd.f32 %v253, %v610
    %v675 = vadd.f32 %v364, %v611
    %v676 = vadd.f32 %v366, %v612
    %v677 = vadd.f32 %v257, %v613
    %v678 = vadd.f32 %v259, %v614
    %v679 = vadd.f32 %v370, %v615
    %v680 = vadd.f32 %v372, %v616
    %v681 = vadd.f32 %v263, %v617
    %v682 = vadd.f32 %v265, %v618
    %v683 = vadd.f32 %v376, %v619
    %v684 = vadd.f32 %v378, %v620
    %v685 = vadd.f32 %v269, %v621
    %v686 = vadd.f32 %v271, %v622
    %v687 = vadd.f32 %v382, %v623
    %v688 = vadd.f32 %v384, %v624
    %v689 = vxor.u32 %v657, 2147483648
    %v690 = vxor.u32 %v661, 2147483648
    %v691 = vxor.u32 %v665, 2147483648
    %v692 = vxor.u32 %v669, 2147483648
    %v693 = vxor.u32 %v673, 2147483648
    %v694 = vxor.u32 %v677, 2147483648
    %v695 = vxor.u32 %v681, 2147483648
    %v696 = vxor.u32 %v685, 2147483648
    %v697 = vmul.f32 %v689, 1.442695
    %v698 = vpow.pop %v697
    %v699 = vmul.f32 %v690, 1.442695
    %v700 = vpow.pop %v699
    %v701 = vmul.f32 %v691, 1.442695
    %v702 = vpow.pop %v701
    %v703 = vmul.f32 %v692, 1.442695
    %v704 = vpow.pop %v703
    %v705 = vmul.f32 %v693, 1.442695
    %v706 = vpow.pop %v705
    %v707 = vmul.f32 %v694, 1.442695
    %v708 = vpow.pop %v707
    %v709 = vmul.f32 %v695, 1.442695
    %v710 = vpow.pop %v709
    %v711 = vmul.f32 %v696, 1.442695
    %v712 = vpow.pop %v711
    %v713 = vadd.f32 %v698, 1.0
    %v714 = vadd.f32 %v700, 1.0
    %v715 = vadd.f32 %v702, 1.0
    %v716 = vadd.f32 %v704, 1.0
    %v717 = vadd.f32 %v706, 1.0
    %v718 = vadd.f32 %v708, 1.0
    %v719 = vadd.f32 %v710, 1.0
    %v720 = vadd.f32 %v712, 1.0
    %v721 = vrcp.pop %v713
    %v722 = vmul.f32 1.0, %v721
    %v723 = vrcp.pop %v714
    %v724 = vmul.f32 1.0, %v723
    %v725 = vrcp.pop %v715
    %v726 = vmul.f32 1.0, %v725
    %v727 = vrcp.pop %v716
    %v728 = vmul.f32 1.0, %v727
    %v729 = vrcp.pop %v717
    %v730 = vmul.f32 1.0, %v729
    %v731 = vrcp.pop %v718
    %v732 = vmul.f32 1.0, %v731
    %v733 = vrcp.pop %v719
    %v734 = vmul.f32 1.0, %v733
    %v735 = vrcp.pop %v720
    %v736 = vmul.f32 1.0, %v735
    %v737 = vxor.u32 %v658, 2147483648
    %v738 = vxor.u32 %v662, 2147483648
    %v739 = vxor.u32 %v666, 2147483648
    %v740 = vxor.u32 %v670, 2147483648
    %v741 = vxor.u32 %v674, 2147483648
    %v742 = vxor.u32 %v678, 2147483648
    %v743 = vxor.u32 %v682, 2147483648
    %v744 = vxor.u32 %v686, 2147483648
    %v745 = vmul.f32 %v737, 1.442695
    %v746 = vpow.pop %v745
    %v747 = vmul.f32 %v738, 1.442695
    %v748 = vpow.pop %v747
    %v749 = vmul.f32 %v739, 1.442695
    %v750 = vpow.pop %v749
    %v751 = vmul.f32 %v740, 1.442695
    %v752 = vpow.pop %v751
    %v753 = vmul.f32 %v741, 1.442695
    %v754 = vpow.pop %v753
    %v755 = vmul.f32 %v742, 1.442695
    %v756 = vpow.pop %v755
    %v757 = vmul.f32 %v743, 1.442695
    %v758 = vpow.pop %v757
    %v759 = vmul.f32 %v744, 1.442695
    %v760 = vpow.pop %v759
    %v761 = vadd.f32 %v746, 1.0
    %v762 = vadd.f32 %v748, 1.0
    %v763 = vadd.f32 %v750, 1.0
    %v764 = vadd.f32 %v752, 1.0
    %v765 = vadd.f32 %v754, 1.0
    %v766 = vadd.f32 %v756, 1.0
    %v767 = vadd.f32 %v758, 1.0
    %v768 = vadd.f32 %v760, 1.0
    %v769 = vrcp.pop %v761
    %v770 = vmul.f32 1.0, %v769
    %v771 = vrcp.pop %v762
    %v772 = vmul.f32 1.0, %v771
    %v773 = vrcp.pop %v763
    %v774 = vmul.f32 1.0, %v773
    %v775 = vrcp.pop %v764
    %v776 = vmul.f32 1.0, %v775
    %v777 = vrcp.pop %v765
    %v778 = vmul.f32 1.0, %v777
    %v779 = vrcp.pop %v766
    %v780 = vmul.f32 1.0, %v779
    %v781 = vrcp.pop %v767
    %v782 = vmul.f32 1.0, %v781
    %v783 = vrcp.pop %v768
    %v784 = vmul.f32 1.0, %v783
    %v785 = vtanh.pop %v659
    %v786 = vtanh.pop %v663
    %v787 = vtanh.pop %v667
    %v788 = vtanh.pop %v671
    %v789 = vtanh.pop %v675
    %v790 = vtanh.pop %v679
    %v791 = vtanh.pop %v683
    %v792 = vtanh.pop %v687
    %v793 = vxor.u32 %v660, 2147483648
    %v794 = vxor.u32 %v664, 2147483648
    %v795 = vxor.u32 %v668, 2147483648
    %v796 = vxor.u32 %v672, 2147483648
    %v797 = vxor.u32 %v676, 2147483648
    %v798 = vxor.u32 %v680, 2147483648
    %v799 = vxor.u32 %v684, 2147483648
    %v800 = vxor.u32 %v688, 2147483648
    %v801 = vmul.f32 %v793, 1.442695
    %v802 = vpow.pop %v801
    %v803 = vmul.f32 %v794, 1.442695
    %v804 = vpow.pop %v803
    %v805 = vmul.f32 %v795, 1.442695
    %v806 = vpow.pop %v805
    %v807 = vmul.f32 %v796, 1.442695
    %v808 = vpow.pop %v807
    %v809 = vmul.f32 %v797, 1.442695
    %v810 = vpow.pop %v809
    %v811 = vmul.f32 %v798, 1.442695
    %v812 = vpow.pop %v811
    %v813 = vmul.f32 %v799, 1.442695
    %v814 = vpow.pop %v813
    %v815 = vmul.f32 %v800, 1.442695
    %v816 = vpow.pop %v815
    %v817 = vadd.f32 %v802, 1.0
    %v818 = vadd.f32 %v804, 1.0
    %v819 = vadd.f32 %v806, 1.0
    %v820 = vadd.f32 %v808, 1.0
    %v821 = vadd.f32 %v810, 1.0
    %v822 = vadd.f32 %v812, 1.0
    %v823 = vadd.f32 %v814, 1.0
    %v824 = vadd.f32 %v816, 1.0
    %v825 = vrcp.pop %v817
    %v826 = vmul.f32 1.0, %v825
    %v827 = vrcp.pop %v818
    %v828 = vmul.f32 1.0, %v827
    %v829 = vrcp.pop %v819
    %v830 = vmul.f32 1.0, %v829
    %v831 = vrcp.pop %v820
    %v832 = vmul.f32 1.0, %v831
    %v833 = vrcp.pop %v821
    %v834 = vmul.f32 1.0, %v833
    %v835 = vrcp.pop %v822
    %v836 = vmul.f32 1.0, %v835
    %v837 = vrcp.pop %v823
    %v838 = vmul.f32 1.0, %v837
    %v839 = vrcp.pop %v824
    %v840 = vmul.f32 1.0, %v839
    %v841 = vmul.f32 %v770, 0.0
    %v842 = vmul.f32 %v772, 0.0
    %v843 = vmul.f32 %v774, 0.0
    %v844 = vmul.f32 %v776, 0.0
    %v845 = vmul.f32 %v778, 0.0
    %v846 = vmul.f32 %v780, 0.0
    %v847 = vmul.f32 %v782, 0.0
    %v848 = vmul.f32 %v784, 0.0
    %v849 = vmul.f32 %v722, %v785
    %v850 = vmul.f32 %v724, %v786
    %v851 = vmul.f32 %v726, %v787
    %v852 = vmul.f32 %v728, %v788
    %v853 = vmul.f32 %v730, %v789
    %v854 = vmul.f32 %v732, %v790
    %v855 = vmul.f32 %v734, %v791
    %v856 = vmul.f32 %v736, %v792
    %v857 = vadd.f32 %v841, %v849
    %v858 = vadd.f32 %v842, %v850
    %v859 = vadd.f32 %v843, %v851
    %v860 = vadd.f32 %v844, %v852
    %v861 = vadd.f32 %v845, %v853
    %v862 = vadd.f32 %v846, %v854
    %v863 = vadd.f32 %v847, %v855
    %v864 = vadd.f32 %v848, %v856
    %v865 = vtanh.pop %v857
    %v866 = vtanh.pop %v858
    %v867 = vtanh.pop %v859
    %v868 = vtanh.pop %v860
    %v869 = vtanh.pop %v861
    %v870 = vtanh.pop %v862
    %v871 = vtanh.pop %v863
    %v872 = vtanh.pop %v864
    %v873 = vmul.f32 %v826, %v865
    %v874 = vmul.f32 %v828, %v866
    %v875 = vmul.f32 %v830, %v867
    %v876 = vmul.f32 %v832, %v868
    %v877 = vmul.f32 %v834, %v869
    %v878 = vmul.f32 %v836, %v870
    %v879 = vmul.f32 %v838, %v871
    %v880 = vmul.f32 %v840, %v872
    %vm881 = vcmp.gt.s32.totalorder %v450, 0
    %v882 = vsel %vm881, 1, 0
    %883 = vset.pattern.permute.xlu0 0
    %884 = vperm.xlu0 %883, %v882
    %v885 = vpop.permute.xlu0 %884
    %vm886 = vcmp.eq.s32.totalorder %v885, 1
    %v895 = vrot.slane %v874, 7
    %vm896 = vcmask 1041409
    %v897 = vsel %vm896, %v895, %v873
    %v898 = vrot.slane %v875, 6
    %vm899 = vcmask 1042434
    %v900 = vsel %vm899, %v898, %v897
    %v901 = vrot.slane %v876, 5
    %vm902 = vcmask 1043459
    %v903 = vsel %vm902, %v901, %v900
    %v904 = vrot.slane %v877, 4
    %vm905 = vcmask 1044484
    %v906 = vsel %vm905, %v904, %v903
    %v907 = vrot.slane %v878, 3
    %vm908 = vcmask 1045509
    %v909 = vsel %vm908, %v907, %v906
    %v910 = vrot.slane %v879, 2
    %vm911 = vcmask 1046534
    %v912 = vsel %vm911, %v910, %v909
    %v913 = vrot.slane %v880, 1
    %vm914 = vcmask 1047559
    %v915 = vsel %vm914, %v913, %v912
    %v917 = vsel %vm886, %v915, 0.0
    %v926 = vrot.slane %v858, 7
    %v927 = vsel %vm896, %v926, %v857
    %v928 = vrot.slane %v859, 6
    %v929 = vsel %vm899, %v928, %v927
    %v930 = vrot.slane %v860, 5
    %v931 = vsel %vm902, %v930, %v929
    %v932 = vrot.slane %v861, 4
    %v933 = vsel %vm905, %v932, %v931
    %v934 = vrot.slane %v862, 3
    %v935 = vsel %vm908, %v934, %v933
    %v936 = vrot.slane %v863, 2
    %v937 = vsel %vm911, %v936, %v935
    %v938 = vrot.slane %v864, 1
    %v939 = vsel %vm914, %v938, %v937
    %v941 = vsel %vm886, %v939, 0.0
    %v943 = vcombine.high %v917, %v917
    %v945 = vunpack.c.l.s4 1966171168
    %v946 = vunpack.c.0.s8 %v945
    %v947 = vlaneseq
    %v948 = vshrl.u32 %v947, 7
    %v949 = vsub.s32 %v946, %v948
    %v950 = vrot.slane %v917, %v949
    %v952 = vunpack.c.l.s4 1966171168
    %v953 = vunpack.c.0.s8 %v952
    %v954 = vlaneseq
    %v955 = vshrl.u32 %v954, 7
    %v956 = vsub.s32 %v953, %v955
    %v957 = vrot.slane %v943, %v956
    %v958 = vcombine.high %v950, %v950
    %v959 = vcombine.high %v957, %v957
    %v961 = vunpack.c.l.s4 1966171168
    %v962 = vunpack.c.0.s8 %v961
    %v963 = vlaneseq
    %v964 = vshrl.u32 %v963, 7
    %v965 = vsub.s32 %v962, %v964
    %v966 = vrot.slane %v950, %v965
    %v968 = vunpack.c.l.s4 1966171168
    %v969 = vunpack.c.0.s8 %v968
    %v970 = vlaneseq
    %v971 = vshrl.u32 %v970, 7
    %v972 = vsub.s32 %v969, %v971
    %v973 = vrot.slane %v957, %v972
    %v975 = vunpack.c.l.s4 1966171168
    %v976 = vunpack.c.0.s8 %v975
    %v977 = vlaneseq
    %v978 = vshrl.u32 %v977, 7
    %v979 = vsub.s32 %v976, %v978
    %v980 = vrot.slane %v958, %v979
    %v982 = vunpack.c.l.s4 1966171168
    %v983 = vunpack.c.0.s8 %v982
    %v984 = vlaneseq
    %v985 = vshrl.u32 %v984, 7
    %v986 = vsub.s32 %v983, %v985
    %v987 = vrot.slane %v959, %v986
    %v988 = vcombine.high %v966, %v966
    %v989 = vcombine.high %v973, %v973
    %v990 = vcombine.high %v980, %v980
    %v991 = vcombine.high %v987, %v987
    %1000 = vst [vmem:[#allocation8] sm:$0x1] %v966
    %1001 = vst [vmem:[#allocation8 + $0x8] sm:$0x1] %v980
    %1002 = vst [vmem:[#allocation8 + $0x10] sm:$0x1] %v988
    %1003 = vst [vmem:[#allocation8 + $0x18] sm:$0x1] %v990
    %1004 = vst [vmem:[#allocation8 + $0x20] sm:$0x1] %v973
    %1005 = vst [vmem:[#allocation8 + $0x28] sm:$0x1] %v987
    %1006 = vst [vmem:[#allocation8 + $0x30] sm:$0x1] %v989
    %1007 = vst [vmem:[#allocation8 + $0x38] sm:$0x1] %v991
    %1008 = vmatprep.subr.mxu0 %v387
    %1009 = vmatpush1.msra.mxu0 %v386
    %1010 = vmatprep.subr.mxu0 %v391
    %1011 = vmatpush1.msra.mxu0 %v390
    %1012 = vmatprep.subr.mxu0 %v395
    %1013 = vmatpush1.msra.mxu0 %v394
    %1014 = vmatprep.subr.mxu0 %v399
    %1015 = vmatpush1.msra.mxu0 %v398
    %1016 = vmatprep.subr.mxu0 %v403
    %1017 = vmatpush1.msra.mxu0 %v402
    %1018 = vmatprep.subr.mxu0 %v407
    %1019 = vmatpush1.msra.mxu0 %v406
    %1020 = vmatprep.subr.mxu0 %v411
    %1021 = vmatpush1.msra.mxu0 %v410
    %1022 = vmatprep.subr.mxu0 %v415
    %1023 = vmatpush1.msra.mxu0 %v414
    %1024 = vmatprep.subr.mxu0 %v419
    %1025 = vmatpush1.msra.mxu0 %v418
    %1026 = vmatprep.subr.mxu0 %v423
    %1027 = vmatpush1.msra.mxu0 %v422
    %1028 = vmatprep.subr.mxu0 %v427
    %1029 = vmatpush1.msra.mxu0 %v426
    %1030 = vmatprep.subr.mxu0 %v431
    %1031 = vmatpush1.msra.mxu0 %v430
    %1032 = vmatprep.subr.mxu0 %v435
    %1033 = vmatpush1.msra.mxu0 %v434
    %1034 = vmatprep.subr.mxu0 %v439
    %1035 = vmatpush1.msra.mxu0 %v438
    %1036 = vmatprep.subr.mxu0 %v443
    %1037 = vmatpush1.msra.mxu0 %v442
    %1038 = vmatprep.subr.mxu0 %v447
    %1039 = vmatpush1.msra.mxu0 %v446
    %1040 = vmatprep.subr.mxu0 0.0
    %1041 = vmatpush1.msra.mxu0 0.0
    %1042 = vmatprep.subr.mxu0 0.0
    %1043 = vmatpush1.msra.mxu0 0.0
    %1044 = vmatprep.subr.mxu0 0.0
    %1045 = vmatpush1.msra.mxu0 0.0
    %1046 = vmatprep.subr.mxu0 0.0
    %1047 = vmatpush1.msra.mxu0 0.0
    %1048 = vmatprep.subr.mxu0 0.0
    %1049 = vmatpush1.msra.mxu0 0.0
    %1050 = vmatprep.subr.mxu0 0.0
    %1051 = vmatpush1.msra.mxu0 0.0
    %1052 = vmatprep.subr.mxu0 0.0
    %1053 = vmatpush1.msra.mxu0 0.0
    %1054 = vmatprep.subr.mxu0 0.0
    %1055 = vmatpush1.msra.mxu0 0.0
    %1056 = vmatprep.subr.mxu0 0.0
    %1057 = vmatpush1.msra.mxu0 0.0
    %1058 = vmatprep.subr.mxu0 0.0
    %1059 = vmatpush1.msra.mxu0 0.0
    %1060 = vmatprep.subr.mxu0 0.0
    %1061 = vmatpush1.msra.mxu0 0.0
    %1062 = vmatprep.subr.mxu0 0.0
    %1063 = vmatpush1.msra.mxu0 0.0
    %1064 = vmatprep.subr.mxu0 0.0
    %1065 = vmatpush1.msra.mxu0 0.0
    %1066 = vmatprep.subr.mxu0 0.0
    %1067 = vmatpush1.msra.mxu0 0.0
    %1068 = vmatprep.subr.mxu0 0.0
    %1069 = vmatpush1.msra.mxu0 0.0
    %1070 = vmatprep.subr.mxu0 0.0
    %1071 = vmatpush1.msra.mxu0 0.0
    %1072 = vmatprep.mubr.f32.mxu0 0.0
    %1073 = vmatmul.mubr.f32.gmra.mrb[0].mxu0 %v917
    %v1074 = vpop.f32.mrb[0].mxu0
    %v1075 = vadd.f32 0.0, %v1074
    %v1076 = vpop.f32.mrb[0].mxu0
    %v1077 = vadd.f32 0.0, %v1076
    %1078 = vdwg.mxu0
    %1079 = vmatprep.subr.mxu0 %v389
    %1080 = vmatpush1.msra.mxu0 %v388
    %1081 = vmatprep.subr.mxu0 %v393
    %1082 = vmatpush1.msra.mxu0 %v392
    %1083 = vmatprep.subr.mxu0 %v397
    %1084 = vmatpush1.msra.mxu0 %v396
    %1085 = vmatprep.subr.mxu0 %v401
    %1086 = vmatpush1.msra.mxu0 %v400
    %1087 = vmatprep.subr.mxu0 %v405
    %1088 = vmatpush1.msra.mxu0 %v404
    %1089 = vmatprep.subr.mxu0 %v409
    %1090 = vmatpush1.msra.mxu0 %v408
    %1091 = vmatprep.subr.mxu0 %v413
    %1092 = vmatpush1.msra.mxu0 %v412
    %1093 = vmatprep.subr.mxu0 %v417
    %1094 = vmatpush1.msra.mxu0 %v416
    %1095 = vmatprep.subr.mxu0 %v421
    %1096 = vmatpush1.msra.mxu0 %v420
    %1097 = vmatprep.subr.mxu0 %v425
    %1098 = vmatpush1.msra.mxu0 %v424
    %1099 = vmatprep.subr.mxu0 %v429
    %1100 = vmatpush1.msra.mxu0 %v428
    %1101 = vmatprep.subr.mxu0 %v433
    %1102 = vmatpush1.msra.mxu0 %v432
    %1103 = vmatprep.subr.mxu0 %v437
    %1104 = vmatpush1.msra.mxu0 %v436
    %1105 = vmatprep.subr.mxu0 %v441
    %1106 = vmatpush1.msra.mxu0 %v440
    %1107 = vmatprep.subr.mxu0 %v445
    %1108 = vmatpush1.msra.mxu0 %v444
    %1109 = vmatprep.subr.mxu0 %v449
    %1110 = vmatpush1.msra.mxu0 %v448
    %1111 = vmatprep.subr.mxu0 0.0
    %1112 = vmatpush1.msra.mxu0 0.0
    %1113 = vmatprep.subr.mxu0 0.0
    %1114 = vmatpush1.msra.mxu0 0.0
    %1115 = vmatprep.subr.mxu0 0.0
    %1116 = vmatpush1.msra.mxu0 0.0
    %1117 = vmatprep.subr.mxu0 0.0
    %1118 = vmatpush1.msra.mxu0 0.0
    %1119 = vmatprep.subr.mxu0 0.0
    %1120 = vmatpush1.msra.mxu0 0.0
    %1121 = vmatprep.subr.mxu0 0.0
    %1122 = vmatpush1.msra.mxu0 0.0
    %1123 = vmatprep.subr.mxu0 0.0
    %1124 = vmatpush1.msra.mxu0 0.0
    %1125 = vmatprep.subr.mxu0 0.0
    %1126 = vmatpush1.msra.mxu0 0.0
    %1127 = vmatprep.subr.mxu0 0.0
    %1128 = vmatpush1.msra.mxu0 0.0
    %1129 = vmatprep.subr.mxu0 0.0
    %1130 = vmatpush1.msra.mxu0 0.0
    %1131 = vmatprep.subr.mxu0 0.0
    %1132 = vmatpush1.msra.mxu0 0.0
    %1133 = vmatprep.subr.mxu0 0.0
    %1134 = vmatpush1.msra.mxu0 0.0
    %1135 = vmatprep.subr.mxu0 0.0
    %1136 = vmatpush1.msra.mxu0 0.0
    %1137 = vmatprep.subr.mxu0 0.0
    %1138 = vmatpush1.msra.mxu0 0.0
    %1139 = vmatprep.subr.mxu0 0.0
    %1140 = vmatpush1.msra.mxu0 0.0
    %1141 = vmatprep.subr.mxu0 0.0
    %1142 = vmatpush1.msra.mxu0 0.0
    %1143 = vmatprep.mubr.f32.mxu0 0.0
    %1144 = vmatmul.mubr.f32.gmra.mrb[0].mxu0 %v917
    %v1145 = vpop.f32.mrb[0].mxu0
    %v1146 = vadd.f32 0.0, %v1145
    %v1147 = vpop.f32.mrb[0].mxu0
    %v1148 = vadd.f32 0.0, %v1147
    %1149 = vdwg.mxu0
    %v1154 = vrot.slane %v1075, 7
    %v1155 = vrot.slane %v1077, 7
    %v1156 = vrot.slane %v1146, 7
    %v1157 = vrot.slane %v1148, 7
    %v1158 = vrot.slane %v1075, 1
    %v1159 = vrot.slane %v1077, 1
    %v1160 = vrot.slane %v1146, 1
    %v1161 = vrot.slane %v1148, 1
    %v1162 = vrot.slane %v1075, 2
    %v1163 = vrot.slane %v1077, 2
    %v1164 = vrot.slane %v1146, 2
    %v1165 = vrot.slane %v1148, 2
    %v1166 = vrot.slane %v1075, 3
    %v1167 = vrot.slane %v1077, 3
    %v1168 = vrot.slane %v1146, 3
    %v1169 = vrot.slane %v1148, 3
    %v1170 = vrot.slane %v1075, 4
    %v1171 = vrot.slane %v1077, 4
    %v1172 = vrot.slane %v1146, 4
    %v1173 = vrot.slane %v1148, 4
    %v1174 = vrot.slane %v1075, 5
    %v1175 = vrot.slane %v1077, 5
    %v1176 = vrot.slane %v1146, 5
    %v1177 = vrot.slane %v1148, 5
    %v1178 = vrot.slane %v1075, 6
    %v1179 = vrot.slane %v1077, 6
    %v1180 = vrot.slane %v1146, 6
    %v1181 = vrot.slane %v1148, 6
    %v1214 = vadd.f32 %v227, %v1154
    %v1215 = vadd.f32 %v229, %v1155
    %v1216 = vadd.f32 %v340, %v1156
    %v1217 = vadd.f32 %v342, %v1157
    %v1218 = vadd.f32 %v233, %v1075
    %v1219 = vadd.f32 %v235, %v1077
    %v1220 = vadd.f32 %v346, %v1146
    %v1221 = vadd.f32 %v348, %v1148
    %v1222 = vadd.f32 %v239, %v1158
    %v1223 = vadd.f32 %v241, %v1159
    %v1224 = vadd.f32 %v352, %v1160
    %v1225 = vadd.f32 %v354, %v1161
    %v1226 = vadd.f32 %v245, %v1162
    %v1227 = vadd.f32 %v247, %v1163
    %v1228 = vadd.f32 %v358, %v1164
    %v1229 = vadd.f32 %v360, %v1165
    %v1230 = vadd.f32 %v251, %v1166
    %v1231 = vadd.f32 %v253, %v1167
    %v1232 = vadd.f32 %v364, %v1168
    %v1233 = vadd.f32 %v366, %v1169
    %v1234 = vadd.f32 %v257, %v1170
    %v1235 = vadd.f32 %v259, %v1171
    %v1236 = vadd.f32 %v370, %v1172
    %v1237 = vadd.f32 %v372, %v1173
    %v1238 = vadd.f32 %v263, %v1174
    %v1239 = vadd.f32 %v265, %v1175
    %v1240 = vadd.f32 %v376, %v1176
    %v1241 = vadd.f32 %v378, %v1177
    %v1242 = vadd.f32 %v269, %v1178
    %v1243 = vadd.f32 %v271, %v1179
    %v1244 = vadd.f32 %v382, %v1180
    %v1245 = vadd.f32 %v384, %v1181
    %v1246 = vxor.u32 %v1214, 2147483648
    %v1247 = vxor.u32 %v1218, 2147483648
    %v1248 = vxor.u32 %v1222, 2147483648
    %v1249 = vxor.u32 %v1226, 2147483648
    %v1250 = vxor.u32 %v1230, 2147483648
    %v1251 = vxor.u32 %v1234, 2147483648
    %v1252 = vxor.u32 %v1238, 2147483648
    %v1253 = vxor.u32 %v1242, 2147483648
    %v1254 = vmul.f32 %v1246, 1.442695
    %v1255 = vpow.pop %v1254
    %v1256 = vmul.f32 %v1247, 1.442695
    %v1257 = vpow.pop %v1256
    %v1258 = vmul.f32 %v1248, 1.442695
    %v1259 = vpow.pop %v1258
    %v1260 = vmul.f32 %v1249, 1.442695
    %v1261 = vpow.pop %v1260
    %v1262 = vmul.f32 %v1250, 1.442695
    %v1263 = vpow.pop %v1262
    %v1264 = vmul.f32 %v1251, 1.442695
    %v1265 = vpow.pop %v1264
    %v1266 = vmul.f32 %v1252, 1.442695
    %v1267 = vpow.pop %v1266
    %v1268 = vmul.f32 %v1253, 1.442695
    %v1269 = vpow.pop %v1268
    %v1270 = vadd.f32 %v1255, 1.0
    %v1271 = vadd.f32 %v1257, 1.0
    %v1272 = vadd.f32 %v1259, 1.0
    %v1273 = vadd.f32 %v1261, 1.0
    %v1274 = vadd.f32 %v1263, 1.0
    %v1275 = vadd.f32 %v1265, 1.0
    %v1276 = vadd.f32 %v1267, 1.0
    %v1277 = vadd.f32 %v1269, 1.0
    %v1278 = vrcp.pop %v1270
    %v1279 = vmul.f32 1.0, %v1278
    %v1280 = vrcp.pop %v1271
    %v1281 = vmul.f32 1.0, %v1280
    %v1282 = vrcp.pop %v1272
    %v1283 = vmul.f32 1.0, %v1282
    %v1284 = vrcp.pop %v1273
    %v1285 = vmul.f32 1.0, %v1284
    %v1286 = vrcp.pop %v1274
    %v1287 = vmul.f32 1.0, %v1286
    %v1288 = vrcp.pop %v1275
    %v1289 = vmul.f32 1.0, %v1288
    %v1290 = vrcp.pop %v1276
    %v1291 = vmul.f32 1.0, %v1290
    %v1292 = vrcp.pop %v1277
    %v1293 = vmul.f32 1.0, %v1292
    %v1294 = vxor.u32 %v1215, 2147483648
    %v1295 = vxor.u32 %v1219, 2147483648
    %v1296 = vxor.u32 %v1223, 2147483648
    %v1297 = vxor.u32 %v1227, 2147483648
    %v1298 = vxor.u32 %v1231, 2147483648
    %v1299 = vxor.u32 %v1235, 2147483648
    %v1300 = vxor.u32 %v1239, 2147483648
    %v1301 = vxor.u32 %v1243, 2147483648
    %v1302 = vmul.f32 %v1294, 1.442695
    %v1303 = vpow.pop %v1302
    %v1304 = vmul.f32 %v1295, 1.442695
    %v1305 = vpow.pop %v1304
    %v1306 = vmul.f32 %v1296, 1.442695
    %v1307 = vpow.pop %v1306
    %v1308 = vmul.f32 %v1297, 1.442695
    %v1309 = vpow.pop %v1308
    %v1310 = vmul.f32 %v1298, 1.442695
    %v1311 = vpow.pop %v1310
    %v1312 = vmul.f32 %v1299, 1.442695
    %v1313 = vpow.pop %v1312
    %v1314 = vmul.f32 %v1300, 1.442695
    %v1315 = vpow.pop %v1314
    %v1316 = vmul.f32 %v1301, 1.442695
    %v1317 = vpow.pop %v1316
    %v1318 = vadd.f32 %v1303, 1.0
    %v1319 = vadd.f32 %v1305, 1.0
    %v1320 = vadd.f32 %v1307, 1.0
    %v1321 = vadd.f32 %v1309, 1.0
    %v1322 = vadd.f32 %v1311, 1.0
    %v1323 = vadd.f32 %v1313, 1.0
    %v1324 = vadd.f32 %v1315, 1.0
    %v1325 = vadd.f32 %v1317, 1.0
    %v1326 = vrcp.pop %v1318
    %v1327 = vmul.f32 1.0, %v1326
    %v1328 = vrcp.pop %v1319
    %v1329 = vmul.f32 1.0, %v1328
    %v1330 = vrcp.pop %v1320
    %v1331 = vmul.f32 1.0, %v1330
    %v1332 = vrcp.pop %v1321
    %v1333 = vmul.f32 1.0, %v1332
    %v1334 = vrcp.pop %v1322
    %v1335 = vmul.f32 1.0, %v1334
    %v1336 = vrcp.pop %v1323
    %v1337 = vmul.f32 1.0, %v1336
    %v1338 = vrcp.pop %v1324
    %v1339 = vmul.f32 1.0, %v1338
    %v1340 = vrcp.pop %v1325
    %v1341 = vmul.f32 1.0, %v1340
    %v1342 = vtanh.pop %v1216
    %v1343 = vtanh.pop %v1220
    %v1344 = vtanh.pop %v1224
    %v1345 = vtanh.pop %v1228
    %v1346 = vtanh.pop %v1232
    %v1347 = vtanh.pop %v1236
    %v1348 = vtanh.pop %v1240
    %v1349 = vtanh.pop %v1244
    %v1350 = vxor.u32 %v1217, 2147483648
    %v1351 = vxor.u32 %v1221, 2147483648
    %v1352 = vxor.u32 %v1225, 2147483648
    %v1353 = vxor.u32 %v1229, 2147483648
    %v1354 = vxor.u32 %v1233, 2147483648
    %v1355 = vxor.u32 %v1237, 2147483648
    %v1356 = vxor.u32 %v1241, 2147483648
    %v1357 = vxor.u32 %v1245, 2147483648
    %v1358 = vmul.f32 %v1350, 1.442695
    %v1359 = vpow.pop %v1358
    %v1360 = vmul.f32 %v1351, 1.442695
    %v1361 = vpow.pop %v1360
    %v1362 = vmul.f32 %v1352, 1.442695
    %v1363 = vpow.pop %v1362
    %v1364 = vmul.f32 %v1353, 1.442695
    %v1365 = vpow.pop %v1364
    %v1366 = vmul.f32 %v1354, 1.442695
    %v1367 = vpow.pop %v1366
    %v1368 = vmul.f32 %v1355, 1.442695
    %v1369 = vpow.pop %v1368
    %v1370 = vmul.f32 %v1356, 1.442695
    %v1371 = vpow.pop %v1370
    %v1372 = vmul.f32 %v1357, 1.442695
    %v1373 = vpow.pop %v1372
    %v1374 = vadd.f32 %v1359, 1.0
    %v1375 = vadd.f32 %v1361, 1.0
    %v1376 = vadd.f32 %v1363, 1.0
    %v1377 = vadd.f32 %v1365, 1.0
    %v1378 = vadd.f32 %v1367, 1.0
    %v1379 = vadd.f32 %v1369, 1.0
    %v1380 = vadd.f32 %v1371, 1.0
    %v1381 = vadd.f32 %v1373, 1.0
    %v1382 = vrcp.pop %v1374
    %v1383 = vmul.f32 1.0, %v1382
    %v1384 = vrcp.pop %v1375
    %v1385 = vmul.f32 1.0, %v1384
    %v1386 = vrcp.pop %v1376
    %v1387 = vmul.f32 1.0, %v1386
    %v1388 = vrcp.pop %v1377
    %v1389 = vmul.f32 1.0, %v1388
    %v1390 = vrcp.pop %v1378
    %v1391 = vmul.f32 1.0, %v1390
    %v1392 = vrcp.pop %v1379
    %v1393 = vmul.f32 1.0, %v1392
    %v1394 = vrcp.pop %v1380
    %v1395 = vmul.f32 1.0, %v1394
    %v1396 = vrcp.pop %v1381
    %v1397 = vmul.f32 1.0, %v1396
    %v1399 = vrot.slane %v941, 7
    %v1400 = vrot.slane %v941, 1
    %v1401 = vrot.slane %v941, 2
    %v1402 = vrot.slane %v941, 3
    %v1403 = vrot.slane %v941, 4
    %v1404 = vrot.slane %v941, 5
    %v1405 = vrot.slane %v941, 6
    %v1414 = vmul.f32 %v1327, %v1399
    %v1415 = vmul.f32 %v1329, %v941
    %v1416 = vmul.f32 %v1331, %v1400
    %v1417 = vmul.f32 %v1333, %v1401
    %v1418 = vmul.f32 %v1335, %v1402
    %v1419 = vmul.f32 %v1337, %v1403
    %v1420 = vmul.f32 %v1339, %v1404
    %v1421 = vmul.f32 %v1341, %v1405
    %v1422 = vmul.f32 %v1279, %v1342
    %v1423 = vmul.f32 %v1281, %v1343
    %v1424 = vmul.f32 %v1283, %v1344
    %v1425 = vmul.f32 %v1285, %v1345
    %v1426 = vmul.f32 %v1287, %v1346
    %v1427 = vmul.f32 %v1289, %v1347
    %v1428 = vmul.f32 %v1291, %v1348
    %v1429 = vmul.f32 %v1293, %v1349
    %v1430 = vadd.f32 %v1414, %v1422
    %v1431 = vadd.f32 %v1415, %v1423
    %v1432 = vadd.f32 %v1416, %v1424
    %v1433 = vadd.f32 %v1417, %v1425
    %v1434 = vadd.f32 %v1418, %v1426
    %v1435 = vadd.f32 %v1419, %v1427
    %v1436 = vadd.f32 %v1420, %v1428
    %v1437 = vadd.f32 %v1421, %v1429
    %v1438 = vtanh.pop %v1430
    %v1439 = vtanh.pop %v1431
    %v1440 = vtanh.pop %v1432
    %v1441 = vtanh.pop %v1433
    %v1442 = vtanh.pop %v1434
    %v1443 = vtanh.pop %v1435
    %v1444 = vtanh.pop %v1436
    %v1445 = vtanh.pop %v1437
    %v1446 = vmul.f32 %v1383, %v1438
    %v1447 = vmul.f32 %v1385, %v1439
    %v1448 = vmul.f32 %v1387, %v1440
    %v1449 = vmul.f32 %v1389, %v1441
    %v1450 = vmul.f32 %v1391, %v1442
    %v1451 = vmul.f32 %v1393, %v1443
    %v1452 = vmul.f32 %v1395, %v1444
    %v1453 = vmul.f32 %v1397, %v1445
    %vm1454 = vcmp.gt.s32.totalorder %v450, 1
    %v1455 = vsel %vm1454, 1, 0
    %1456 = vset.pattern.permute.xlu0 0
    %1457 = vperm.xlu0 %1456, %v1455
    %v1458 = vpop.permute.xlu0 %1457
    %vm1459 = vcmp.eq.s32.totalorder %v1458, 1
    %v1468 = vrot.slane %v1446, 1
    %v1469 = vsel %vm896, %v1447, %v1468
    %v1470 = vrot.slane %v1448, 7
    %v1471 = vsel %vm899, %v1470, %v1469
    %v1472 = vrot.slane %v1449, 6
    %v1473 = vsel %vm902, %v1472, %v1471
    %v1474 = vrot.slane %v1450, 5
    %v1475 = vsel %vm905, %v1474, %v1473
    %v1476 = vrot.slane %v1451, 4
    %v1477 = vsel %vm908, %v1476, %v1475
    %v1478 = vrot.slane %v1452, 3
    %v1479 = vsel %vm911, %v1478, %v1477
    %v1480 = vrot.slane %v1453, 2
    %v1481 = vsel %vm914, %v1480, %v1479
    %v1483 = vsel %vm1459, %v1481, %v917
    %v1492 = vrot.slane %v1430, 1
    %v1493 = vsel %vm896, %v1431, %v1492
    %v1494 = vrot.slane %v1432, 7
    %v1495 = vsel %vm899, %v1494, %v1493
    %v1496 = vrot.slane %v1433, 6
    %v1497 = vsel %vm902, %v1496, %v1495
    %v1498 = vrot.slane %v1434, 5
    %v1499 = vsel %vm905, %v1498, %v1497
    %v1500 = vrot.slane %v1435, 4
    %v1501 = vsel %vm908, %v1500, %v1499
    %v1502 = vrot.slane %v1436, 3
    %v1503 = vsel %vm911, %v1502, %v1501
    %v1504 = vrot.slane %v1437, 2
    %v1505 = vsel %vm914, %v1504, %v1503
    %v1507 = vsel %vm1459, %v1505, %v941
    %v1508 = vsel %vm1459, %v1481, 0.0
    %v1510 = vcombine.high %v1508, %v1508
    %v1512 = vunpack.c.l.s4 1966171168
    %v1513 = vunpack.c.0.s8 %v1512
    %v1514 = vlaneseq
    %v1515 = vshrl.u32 %v1514, 7
    %v1516 = vsub.s32 %v1513, %v1515
    %v1517 = vrot.slane %v1508, %v1516
    %v1519 = vunpack.c.l.s4 1966171168
    %v1520 = vunpack.c.0.s8 %v1519
    %v1521 = vlaneseq
    %v1522 = vshrl.u32 %v1521, 7
    %v1523 = vsub.s32 %v1520, %v1522
    %v1524 = vrot.slane %v1510, %v1523
    %v1525 = vcombine.high %v1517, %v1517
    %v1526 = vcombine.high %v1524, %v1524
    %v1528 = vunpack.c.l.s4 1966171168
    %v1529 = vunpack.c.0.s8 %v1528
    %v1530 = vlaneseq
    %v1531 = vshrl.u32 %v1530, 7
    %v1532 = vsub.s32 %v1529, %v1531
    %v1533 = vrot.slane %v1517, %v1532
    %v1535 = vunpack.c.l.s4 1966171168
    %v1536 = vunpack.c.0.s8 %v1535
    %v1537 = vlaneseq
    %v1538 = vshrl.u32 %v1537, 7
    %v1539 = vsub.s32 %v1536, %v1538
    %v1540 = vrot.slane %v1524, %v1539
    %v1542 = vunpack.c.l.s4 1966171168
    %v1543 = vunpack.c.0.s8 %v1542
    %v1544 = vlaneseq
    %v1545 = vshrl.u32 %v1544, 7
    %v1546 = vsub.s32 %v1543, %v1545
    %v1547 = vrot.slane %v1525, %v1546
    %v1549 = vunpack.c.l.s4 1966171168
    %v1550 = vunpack.c.0.s8 %v1549
    %v1551 = vlaneseq
    %v1552 = vshrl.u32 %v1551, 7
    %v1553 = vsub.s32 %v1550, %v1552
    %v1554 = vrot.slane %v1526, %v1553
    %v1555 = vcombine.high %v1533, %v1533
    %v1556 = vcombine.high %v1540, %v1540
    %v1557 = vcombine.high %v1547, %v1547
    %v1558 = vcombine.high %v1554, %v1554
    %1567 = vst [vmem:[#allocation8 + $0x1] sm:$0x1] %v1533
    %1568 = vst [vmem:[#allocation8 + $0x9] sm:$0x1] %v1547
    %1569 = vst [vmem:[#allocation8 + $0x11] sm:$0x1] %v1555
    %1570 = vst [vmem:[#allocation8 + $0x19] sm:$0x1] %v1557
    %1571 = vst [vmem:[#allocation8 + $0x21] sm:$0x1] %v1540
    %1572 = vst [vmem:[#allocation8 + $0x29] sm:$0x1] %v1554
    %1573 = vst [vmem:[#allocation8 + $0x31] sm:$0x1] %v1556
    %1574 = vst [vmem:[#allocation8 + $0x39] sm:$0x1] %v1558
    %1575 = vmatprep.subr.mxu0 %v387
    %1576 = vmatpush1.msra.mxu0 %v386
    %1577 = vmatprep.subr.mxu0 %v391
    %1578 = vmatpush1.msra.mxu0 %v390
    %1579 = vmatprep.subr.mxu0 %v395
    %1580 = vmatpush1.msra.mxu0 %v394
    %1581 = vmatprep.subr.mxu0 %v399
    %1582 = vmatpush1.msra.mxu0 %v398
    %1583 = vmatprep.subr.mxu0 %v403
    %1584 = vmatpush1.msra.mxu0 %v402
    %1585 = vmatprep.subr.mxu0 %v407
    %1586 = vmatpush1.msra.mxu0 %v406
    %1587 = vmatprep.subr.mxu0 %v411
    %1588 = vmatpush1.msra.mxu0 %v410
    %1589 = vmatprep.subr.mxu0 %v415
    %1590 = vmatpush1.msra.mxu0 %v414
    %1591 = vmatprep.subr.mxu0 %v419
    %1592 = vmatpush1.msra.mxu0 %v418
    %1593 = vmatprep.subr.mxu0 %v423
    %1594 = vmatpush1.msra.mxu0 %v422
    %1595 = vmatprep.subr.mxu0 %v427
    %1596 = vmatpush1.msra.mxu0 %v426
    %1597 = vmatprep.subr.mxu0 %v431
    %1598 = vmatpush1.msra.mxu0 %v430
    %1599 = vmatprep.subr.mxu0 %v435
    %1600 = vmatpush1.msra.mxu0 %v434
    %1601 = vmatprep.subr.mxu0 %v439
    %1602 = vmatpush1.msra.mxu0 %v438
    %1603 = vmatprep.subr.mxu0 %v443
    %1604 = vmatpush1.msra.mxu0 %v442
    %1605 = vmatprep.subr.mxu0 %v447
    %1606 = vmatpush1.msra.mxu0 %v446
    %1607 = vmatprep.subr.mxu0 0.0
    %1608 = vmatpush1.msra.mxu0 0.0
    %1609 = vmatprep.subr.mxu0 0.0
    %1610 = vmatpush1.msra.mxu0 0.0
    %1611 = vmatprep.subr.mxu0 0.0
    %1612 = vmatpush1.msra.mxu0 0.0
    %1613 = vmatprep.subr.mxu0 0.0
    %1614 = vmatpush1.msra.mxu0 0.0
    %1615 = vmatprep.subr.mxu0 0.0
    %1616 = vmatpush1.msra.mxu0 0.0
    %1617 = vmatprep.subr.mxu0 0.0
    %1618 = vmatpush1.msra.mxu0 0.0
    %1619 = vmatprep.subr.mxu0 0.0
    %1620 = vmatpush1.msra.mxu0 0.0
    %1621 = vmatprep.subr.mxu0 0.0
    %1622 = vmatpush1.msra.mxu0 0.0
    %1623 = vmatprep.subr.mxu0 0.0
    %1624 = vmatpush1.msra.mxu0 0.0
    %1625 = vmatprep.subr.mxu0 0.0
    %1626 = vmatpush1.msra.mxu0 0.0
    %1627 = vmatprep.subr.mxu0 0.0
    %1628 = vmatpush1.msra.mxu0 0.0
    %1629 = vmatprep.subr.mxu0 0.0
    %1630 = vmatpush1.msra.mxu0 0.0
    %1631 = vmatprep.subr.mxu0 0.0
    %1632 = vmatpush1.msra.mxu0 0.0
    %1633 = vmatprep.subr.mxu0 0.0
    %1634 = vmatpush1.msra.mxu0 0.0
    %1635 = vmatprep.subr.mxu0 0.0
    %1636 = vmatpush1.msra.mxu0 0.0
    %1637 = vmatprep.subr.mxu0 0.0
    %1638 = vmatpush1.msra.mxu0 0.0
    %1639 = vmatprep.mubr.f32.mxu0 0.0
    %1640 = vmatmul.mubr.f32.gmra.mrb[0].mxu0 %v1483
    %v1641 = vpop.f32.mrb[0].mxu0
    %v1642 = vadd.f32 0.0, %v1641
    %v1643 = vpop.f32.mrb[0].mxu0
    %v1644 = vadd.f32 0.0, %v1643
    %1645 = vdwg.mxu0
    %1646 = vmatprep.subr.mxu0 %v389
    %1647 = vmatpush1.msra.mxu0 %v388
    %1648 = vmatprep.subr.mxu0 %v393
    %1649 = vmatpush1.msra.mxu0 %v392
    %1650 = vmatprep.subr.mxu0 %v397
    %1651 = vmatpush1.msra.mxu0 %v396
    %1652 = vmatprep.subr.mxu0 %v401
    %1653 = vmatpush1.msra.mxu0 %v400
    %1654 = vmatprep.subr.mxu0 %v405
    %1655 = vmatpush1.msra.mxu0 %v404
    %1656 = vmatprep.subr.mxu0 %v409
    %1657 = vmatpush1.msra.mxu0 %v408
    %1658 = vmatprep.subr.mxu0 %v413
    %1659 = vmatpush1.msra.mxu0 %v412
    %1660 = vmatprep.subr.mxu0 %v417
    %1661 = vmatpush1.msra.mxu0 %v416
    %1662 = vmatprep.subr.mxu0 %v421
    %1663 = vmatpush1.msra.mxu0 %v420
    %1664 = vmatprep.subr.mxu0 %v425
    %1665 = vmatpush1.msra.mxu0 %v424
    %1666 = vmatprep.subr.mxu0 %v429
    %1667 = vmatpush1.msra.mxu0 %v428
    %1668 = vmatprep.subr.mxu0 %v433
    %1669 = vmatpush1.msra.mxu0 %v432
    %1670 = vmatprep.subr.mxu0 %v437
    %1671 = vmatpush1.msra.mxu0 %v436
    %1672 = vmatprep.subr.mxu0 %v441
    %1673 = vmatpush1.msra.mxu0 %v440
    %1674 = vmatprep.subr.mxu0 %v445
    %1675 = vmatpush1.msra.mxu0 %v444
    %1676 = vmatprep.subr.mxu0 %v449
    %1677 = vmatpush1.msra.mxu0 %v448
    %1678 = vmatprep.subr.mxu0 0.0
    %1679 = vmatpush1.msra.mxu0 0.0
    %1680 = vmatprep.subr.mxu0 0.0
    %1681 = vmatpush1.msra.mxu0 0.0
    %1682 = vmatprep.subr.mxu0 0.0
    %1683 = vmatpush1.msra.mxu0 0.0
    %1684 = vmatprep.subr.mxu0 0.0
    %1685 = vmatpush1.msra.mxu0 0.0
    %1686 = vmatprep.subr.mxu0 0.0
    %1687 = vmatpush1.msra.mxu0 0.0
    %1688 = vmatprep.subr.mxu0 0.0
    %1689 = vmatpush1.msra.mxu0 0.0
    %1690 = vmatprep.subr.mxu0 0.0
    %1691 = vmatpush1.msra.mxu0 0.0
    %1692 = vmatprep.subr.mxu0 0.0
    %1693 = vmatpush1.msra.mxu0 0.0
    %1694 = vmatprep.subr.mxu0 0.0
    %1695 = vmatpush1.msra.mxu0 0.0
    %1696 = vmatprep.subr.mxu0 0.0
    %1697 = vmatpush1.msra.mxu0 0.0
    %1698 = vmatprep.subr.mxu0 0.0
    %1699 = vmatpush1.msra.mxu0 0.0
    %1700 = vmatprep.subr.mxu0 0.0
    %1701 = vmatpush1.msra.mxu0 0.0
    %1702 = vmatprep.subr.mxu0 0.0
    %1703 = vmatpush1.msra.mxu0 0.0
    %1704 = vmatprep.subr.mxu0 0.0
    %1705 = vmatpush1.msra.mxu0 0.0
    %1706 = vmatprep.subr.mxu0 0.0
    %1707 = vmatpush1.msra.mxu0 0.0
    %1708 = vmatprep.subr.mxu0 0.0
    %1709 = vmatpush1.msra.mxu0 0.0
    %1710 = vmatprep.mubr.f32.mxu0 0.0
    %1711 = vmatmul.mubr.f32.gmra.mrb[0].mxu0 %v1483
    %v1712 = vpop.f32.mrb[0].mxu0
    %v1713 = vadd.f32 0.0, %v1712
    %v1714 = vpop.f32.mrb[0].mxu0
    %v1715 = vadd.f32 0.0, %v1714
    %1716 = vdwg.mxu0
    %v1721 = vrot.slane %v1642, 6
    %v1722 = vrot.slane %v1644, 6
    %v1723 = vrot.slane %v1713, 6
    %v1724 = vrot.slane %v1715, 6
    %v1725 = vrot.slane %v1642, 7
    %v1726 = vrot.slane %v1644, 7
    %v1727 = vrot.slane %v1713, 7
    %v1728 = vrot.slane %v1715, 7
    %v1729 = vrot.slane %v1642, 1
    %v1730 = vrot.slane %v1644, 1
    %v1731 = vrot.slane %v1713, 1
    %v1732 = vrot.slane %v1715, 1
    %v1733 = vrot.slane %v1642, 2
    %v1734 = vrot.slane %v1644, 2
    %v1735 = vrot.slane %v1713, 2
    %v1736 = vrot.slane %v1715, 2
    %v1737 = vrot.slane %v1642, 3
    %v1738 = vrot.slane %v1644, 3
    %v1739 = vrot.slane %v1713, 3
    %v1740 = vrot.slane %v1715, 3
    %v1741 = vrot.slane %v1642, 4
    %v1742 = vrot.slane %v1644, 4
    %v1743 = vrot.slane %v1713, 4
    %v1744 = vrot.slane %v1715, 4
    %v1745 = vrot.slane %v1642, 5
    %v1746 = vrot.slane %v1644, 5
    %v1747 = vrot.slane %v1713, 5
    %v1748 = vrot.slane %v1715, 5
    %v1781 = vadd.f32 %v227, %v1721
    %v1782 = vadd.f32 %v229, %v1722
    %v1783 = vadd.f32 %v340, %v1723
    %v1784 = vadd.f32 %v342, %v1724
    %v1785 = vadd.f32 %v233, %v1725
    %v1786 = vadd.f32 %v235, %v1726
    %v1787 = vadd.f32 %v346, %v1727
    %v1788 = vadd.f32 %v348, %v1728
    %v1789 = vadd.f32 %v239, %v1642
    %v1790 = vadd.f32 %v241, %v1644
    %v1791 = vadd.f32 %v352, %v1713
    %v1792 = vadd.f32 %v354, %v1715
    %v1793 = vadd.f32 %v245, %v1729
    %v1794 = vadd.f32 %v247, %v1730
    %v1795 = vadd.f32 %v358, %v1731
    %v1796 = vadd.f32 %v360, %v1732
    %v1797 = vadd.f32 %v251, %v1733
    %v1798 = vadd.f32 %v253, %v1734
    %v1799 = vadd.f32 %v364, %v1735
    %v1800 = vadd.f32 %v366, %v1736
    %v1801 = vadd.f32 %v257, %v1737
    %v1802 = vadd.f32 %v259, %v1738
    %v1803 = vadd.f32 %v370, %v1739
    %v1804 = vadd.f32 %v372, %v1740
    %v1805 = vadd.f32 %v263, %v1741
    %v1806 = vadd.f32 %v265, %v1742
    %v1807 = vadd.f32 %v376, %v1743
    %v1808 = vadd.f32 %v378, %v1744
    %v1809 = vadd.f32 %v269, %v1745
    %v1810 = vadd.f32 %v271, %v1746
    %v1811 = vadd.f32 %v382, %v1747
    %v1812 = vadd.f32 %v384, %v1748
    %v1813 = vxor.u32 %v1781, 2147483648
    %v1814 = vxor.u32 %v1785, 2147483648
    %v1815 = vxor.u32 %v1789, 2147483648
    %v1816 = vxor.u32 %v1793, 2147483648
    %v1817 = vxor.u32 %v1797, 2147483648
    %v1818 = vxor.u32 %v1801, 2147483648
    %v1819 = vxor.u32 %v1805, 2147483648
    %v1820 = vxor.u32 %v1809, 2147483648
    %v1821 = vmul.f32 %v1813, 1.442695
    %v1822 = vpow.pop %v1821
    %v1823 = vmul.f32 %v1814, 1.442695
    %v1824 = vpow.pop %v1823
    %v1825 = vmul.f32 %v1815, 1.442695
    %v1826 = vpow.pop %v1825
    %v1827 = vmul.f32 %v1816, 1.442695
    %v1828 = vpow.pop %v1827
    %v1829 = vmul.f32 %v1817, 1.442695
    %v1830 = vpow.pop %v1829
    %v1831 = vmul.f32 %v1818, 1.442695
    %v1832 = vpow.pop %v1831
    %v1833 = vmul.f32 %v1819, 1.442695
    %v1834 = vpow.pop %v1833
    %v1835 = vmul.f32 %v1820, 1.442695
    %v1836 = vpow.pop %v1835
    %v1837 = vadd.f32 %v1822, 1.0
    %v1838 = vadd.f32 %v1824, 1.0
    %v1839 = vadd.f32 %v1826, 1.0
    %v1840 = vadd.f32 %v1828, 1.0
    %v1841 = vadd.f32 %v1830, 1.0
    %v1842 = vadd.f32 %v1832, 1.0
    %v1843 = vadd.f32 %v1834, 1.0
    %v1844 = vadd.f32 %v1836, 1.0
    %v1845 = vrcp.pop %v1837
    %v1846 = vmul.f32 1.0, %v1845
    %v1847 = vrcp.pop %v1838
    %v1848 = vmul.f32 1.0, %v1847
    %v1849 = vrcp.pop %v1839
    %v1850 = vmul.f32 1.0, %v1849
    %v1851 = vrcp.pop %v1840
    %v1852 = vmul.f32 1.0, %v1851
    %v1853 = vrcp.pop %v1841
    %v1854 = vmul.f32 1.0, %v1853
    %v1855 = vrcp.pop %v1842
    %v1856 = vmul.f32 1.0, %v1855
    %v1857 = vrcp.pop %v1843
    %v1858 = vmul.f32 1.0, %v1857
    %v1859 = vrcp.pop %v1844
    %v1860 = vmul.f32 1.0, %v1859
    %v1861 = vxor.u32 %v1782, 2147483648
    %v1862 = vxor.u32 %v1786, 2147483648
    %v1863 = vxor.u32 %v1790, 2147483648
    %v1864 = vxor.u32 %v1794, 2147483648
    %v1865 = vxor.u32 %v1798, 2147483648
    %v1866 = vxor.u32 %v1802, 2147483648
    %v1867 = vxor.u32 %v1806, 2147483648
    %v1868 = vxor.u32 %v1810, 2147483648
    %v1869 = vmul.f32 %v1861, 1.442695
    %v1870 = vpow.pop %v1869
    %v1871 = vmul.f32 %v1862, 1.442695
    %v1872 = vpow.pop %v1871
    %v1873 = vmul.f32 %v1863, 1.442695
    %v1874 = vpow.pop %v1873
    %v1875 = vmul.f32 %v1864, 1.442695
    %v1876 = vpow.pop %v1875
    %v1877 = vmul.f32 %v1865, 1.442695
    %v1878 = vpow.pop %v1877
    %v1879 = vmul.f32 %v1866, 1.442695
    %v1880 = vpow.pop %v1879
    %v1881 = vmul.f32 %v1867, 1.442695
    %v1882 = vpow.pop %v1881
    %v1883 = vmul.f32 %v1868, 1.442695
    %v1884 = vpow.pop %v1883
    %v1885 = vadd.f32 %v1870, 1.0
    %v1886 = vadd.f32 %v1872, 1.0
    %v1887 = vadd.f32 %v1874, 1.0
    %v1888 = vadd.f32 %v1876, 1.0
    %v1889 = vadd.f32 %v1878, 1.0
    %v1890 = vadd.f32 %v1880, 1.0
    %v1891 = vadd.f32 %v1882, 1.0
    %v1892 = vadd.f32 %v1884, 1.0
    %v1893 = vrcp.pop %v1885
    %v1894 = vmul.f32 1.0, %v1893
    %v1895 = vrcp.pop %v1886
    %v1896 = vmul.f32 1.0, %v1895
    %v1897 = vrcp.pop %v1887
    %v1898 = vmul.f32 1.0, %v1897
    %v1899 = vrcp.pop %v1888
    %v1900 = vmul.f32 1.0, %v1899
    %v1901 = vrcp.pop %v1889
    %v1902 = vmul.f32 1.0, %v1901
    %v1903 = vrcp.pop %v1890
    %v1904 = vmul.f32 1.0, %v1903
    %v1905 = vrcp.pop %v1891
    %v1906 = vmul.f32 1.0, %v1905
    %v1907 = vrcp.pop %v1892
    %v1908 = vmul.f32 1.0, %v1907
    %v1909 = vtanh.pop %v1783
    %v1910 = vtanh.pop %v1787
    %v1911 = vtanh.pop %v1791
    %v1912 = vtanh.pop %v1795
    %v1913 = vtanh.pop %v1799
    %v1914 = vtanh.pop %v1803
    %v1915 = vtanh.pop %v1807
    %v1916 = vtanh.pop %v1811
    %v1917 = vxor.u32 %v1784, 2147483648
    %v1918 = vxor.u32 %v1788, 2147483648
    %v1919 = vxor.u32 %v1792, 2147483648
    %v1920 = vxor.u32 %v1796, 2147483648
    %v1921 = vxor.u32 %v1800, 2147483648
    %v1922 = vxor.u32 %v1804, 2147483648
    %v1923 = vxor.u32 %v1808, 2147483648
    %v1924 = vxor.u32 %v1812, 2147483648
    %v1925 = vmul.f32 %v1917, 1.442695
    %v1926 = vpow.pop %v1925
    %v1927 = vmul.f32 %v1918, 1.442695
    %v1928 = vpow.pop %v1927
    %v1929 = vmul.f32 %v1919, 1.442695
    %v1930 = vpow.pop %v1929
    %v1931 = vmul.f32 %v1920, 1.442695
    %v1932 = vpow.pop %v1931
    %v1933 = vmul.f32 %v1921, 1.442695
    %v1934 = vpow.pop %v1933
    %v1935 = vmul.f32 %v1922, 1.442695
    %v1936 = vpow.pop %v1935
    %v1937 = vmul.f32 %v1923, 1.442695
    %v1938 = vpow.pop %v1937
    %v1939 = vmul.f32 %v1924, 1.442695
    %v1940 = vpow.pop %v1939
    %v1941 = vadd.f32 %v1926, 1.0
    %v1942 = vadd.f32 %v1928, 1.0
    %v1943 = vadd.f32 %v1930, 1.0
    %v1944 = vadd.f32 %v1932, 1.0
    %v1945 = vadd.f32 %v1934, 1.0
    %v1946 = vadd.f32 %v1936, 1.0
    %v1947 = vadd.f32 %v1938, 1.0
    %v1948 = vadd.f32 %v1940, 1.0
    %v1949 = vrcp.pop %v1941
    %v1950 = vmul.f32 1.0, %v1949
    %v1951 = vrcp.pop %v1942
    %v1952 = vmul.f32 1.0, %v1951
    %v1953 = vrcp.pop %v1943
    %v1954 = vmul.f32 1.0, %v1953
    %v1955 = vrcp.pop %v1944
    %v1956 = vmul.f32 1.0, %v1955
    %v1957 = vrcp.pop %v1945
    %v1958 = vmul.f32 1.0, %v1957
    %v1959 = vrcp.pop %v1946
    %v1960 = vmul.f32 1.0, %v1959
    %v1961 = vrcp.pop %v1947
    %v1962 = vmul.f32 1.0, %v1961
    %v1963 = vrcp.pop %v1948
    %v1964 = vmul.f32 1.0, %v1963
    %v1966 = vrot.slane %v1507, 6
    %v1967 = vrot.slane %v1507, 7
    %v1968 = vrot.slane %v1507, 1
    %v1969 = vrot.slane %v1507, 2
    %v1970 = vrot.slane %v1507, 3
    %v1971 = vrot.slane %v1507, 4
    %v1972 = vrot.slane %v1507, 5
    %v1981 = vmul.f32 %v1894, %v1966
    %v1982 = vmul.f32 %v1896, %v1967
    %v1983 = vmul.f32 %v1898, %v1507
    %v1984 = vmul.f32 %v1900, %v1968
    %v1985 = vmul.f32 %v1902, %v1969
    %v1986 = vmul.f32 %v1904, %v1970
    %v1987 = vmul.f32 %v1906, %v1971
    %v1988 = vmul.f32 %v1908, %v1972
    %v1989 = vmul.f32 %v1846, %v1909
    %v1990 = vmul.f32 %v1848, %v1910
    %v1991 = vmul.f32 %v1850, %v1911
    %v1992 = vmul.f32 %v1852, %v1912
    %v1993 = vmul.f32 %v1854, %v1913
    %v1994 = vmul.f32 %v1856, %v1914
    %v1995 = vmul.f32 %v1858, %v1915
    %v1996 = vmul.f32 %v1860, %v1916
    %v1997 = vadd.f32 %v1981, %v1989
    %v1998 = vadd.f32 %v1982, %v1990
    %v1999 = vadd.f32 %v1983, %v1991
    %v2000 = vadd.f32 %v1984, %v1992
    %v2001 = vadd.f32 %v1985, %v1993
    %v2002 = vadd.f32 %v1986, %v1994
    %v2003 = vadd.f32 %v1987, %v1995
    %v2004 = vadd.f32 %v1988, %v1996
    %v2005 = vtanh.pop %v1997
    %v2006 = vtanh.pop %v1998
    %v2007 = vtanh.pop %v1999
    %v2008 = vtanh.pop %v2000
    %v2009 = vtanh.pop %v2001
    %v2010 = vtanh.pop %v2002
    %v2011 = vtanh.pop %v2003
    %v2012 = vtanh.pop %v2004
    %v2013 = vmul.f32 %v1950, %v2005
    %v2014 = vmul.f32 %v1952, %v2006
    %v2015 = vmul.f32 %v1954, %v2007
    %v2016 = vmul.f32 %v1956, %v2008
    %v2017 = vmul.f32 %v1958, %v2009
    %v2018 = vmul.f32 %v1960, %v2010
    %v2019 = vmul.f32 %v1962, %v2011
    %v2020 = vmul.f32 %v1964, %v2012
    %vm2021 = vcmp.gt.s32.totalorder %v450, 2
    %v2022 = vsel %vm2021, 1, 0
    %2023 = vset.pattern.permute.xlu0 0
    %2024 = vperm.xlu0 %2023, %v2022
    %v2025 = vpop.permute.xlu0 %2024
    %vm2026 = vcmp.eq.s32.totalorder %v2025, 1
    %v2035 = vrot.slane %v2013, 2
    %v2036 = vrot.slane %v2014, 1
    %v2037 = vsel %vm896, %v2036, %v2035
    %v2038 = vsel %vm899, %v2015, %v2037
    %v2039 = vrot.slane %v2016, 7
    %v2040 = vsel %vm902, %v2039, %v2038
    %v2041 = vrot.slane %v2017, 6
    %v2042 = vsel %vm905, %v2041, %v2040
    %v2043 = vrot.slane %v2018, 5
    %v2044 = vsel %vm908, %v2043, %v2042
    %v2045 = vrot.slane %v2019, 4
    %v2046 = vsel %vm911, %v2045, %v2044
    %v2047 = vrot.slane %v2020, 3
    %v2048 = vsel %vm914, %v2047, %v2046
    %v2050 = vsel %vm2026, %v2048, %v1483
    %v2059 = vrot.slane %v1997, 2
    %v2060 = vrot.slane %v1998, 1
    %v2061 = vsel %vm896, %v2060, %v2059
    %v2062 = vsel %vm899, %v1999, %v2061
    %v2063 = vrot.slane %v2000, 7
    %v2064 = vsel %vm902, %v2063, %v2062
    %v2065 = vrot.slane %v2001, 6
    %v2066 = vsel %vm905, %v2065, %v2064
    %v2067 = vrot.slane %v2002, 5
    %v2068 = vsel %vm908, %v2067, %v2066
    %v2069 = vrot.slane %v2003, 4
    %v2070 = vsel %vm911, %v2069, %v2068
    %v2071 = vrot.slane %v2004, 3
    %v2072 = vsel %vm914, %v2071, %v2070
    %v2074 = vsel %vm2026, %v2072, %v1507
    %v2075 = vsel %vm2026, %v2048, 0.0
    %v2077 = vcombine.high %v2075, %v2075
    %v2079 = vunpack.c.l.s4 1966171168
    %v2080 = vunpack.c.0.s8 %v2079
    %v2081 = vlaneseq
    %v2082 = vshrl.u32 %v2081, 7
    %v2083 = vsub.s32 %v2080, %v2082
    %v2084 = vrot.slane %v2075, %v2083
    %v2086 = vunpack.c.l.s4 1966171168
    %v2087 = vunpack.c.0.s8 %v2086
    %v2088 = vlaneseq
    %v2089 = vshrl.u32 %v2088, 7
    %v2090 = vsub.s32 %v2087, %v2089
    %v2091 = vrot.slane %v2077, %v2090
    %v2092 = vcombine.high %v2084, %v2084
    %v2093 = vcombine.high %v2091, %v2091
    %v2095 = vunpack.c.l.s4 1966171168
    %v2096 = vunpack.c.0.s8 %v2095
    %v2097 = vlaneseq
    %v2098 = vshrl.u32 %v2097, 7
    %v2099 = vsub.s32 %v2096, %v2098
    %v2100 = vrot.slane %v2084, %v2099
    %v2102 = vunpack.c.l.s4 1966171168
    %v2103 = vunpack.c.0.s8 %v2102
    %v2104 = vlaneseq
    %v2105 = vshrl.u32 %v2104, 7
    %v2106 = vsub.s32 %v2103, %v2105
    %v2107 = vrot.slane %v2091, %v2106
    %v2109 = vunpack.c.l.s4 1966171168
    %v2110 = vunpack.c.0.s8 %v2109
    %v2111 = vlaneseq
    %v2112 = vshrl.u32 %v2111, 7
    %v2113 = vsub.s32 %v2110, %v2112
    %v2114 = vrot.slane %v2092, %v2113
    %v2116 = vunpack.c.l.s4 1966171168
    %v2117 = vunpack.c.0.s8 %v2116
    %v2118 = vlaneseq
    %v2119 = vshrl.u32 %v2118, 7
    %v2120 = vsub.s32 %v2117, %v2119
    %v2121 = vrot.slane %v2093, %v2120
    %v2122 = vcombine.high %v2100, %v2100
    %v2123 = vcombine.high %v2107, %v2107
    %v2124 = vcombine.high %v2114, %v2114
    %v2125 = vcombine.high %v2121, %v2121
    %2134 = vst [vmem:[#allocation8 + $0x2] sm:$0x1] %v2100
    %2135 = vst [vmem:[#allocation8 + $0xa] sm:$0x1] %v2114
    %2136 = vst [vmem:[#allocation8 + $0x12] sm:$0x1] %v2122
    %2137 = vst [vmem:[#allocation8 + $0x1a] sm:$0x1] %v2124
    %2138 = vst [vmem:[#allocation8 + $0x22] sm:$0x1] %v2107
    %2139 = vst [vmem:[#allocation8 + $0x2a] sm:$0x1] %v2121
    %2140 = vst [vmem:[#allocation8 + $0x32] sm:$0x1] %v2123
    %2141 = vst [vmem:[#allocation8 + $0x3a] sm:$0x1] %v2125
    %2142 = vmatprep.subr.mxu0 %v387
    %2143 = vmatpush1.msra.mxu0 %v386
    %2144 = vmatprep.subr.mxu0 %v391
    %2145 = vmatpush1.msra.mxu0 %v390
    %2146 = vmatprep.subr.mxu0 %v395
    %2147 = vmatpush1.msra.mxu0 %v394
    %2148 = vmatprep.subr.mxu0 %v399
    %2149 = vmatpush1.msra.mxu0 %v398
    %2150 = vmatprep.subr.mxu0 %v403
    %2151 = vmatpush1.msra.mxu0 %v402
    %2152 = vmatprep.subr.mxu0 %v407
    %2153 = vmatpush1.msra.mxu0 %v406
    %2154 = vmatprep.subr.mxu0 %v411
    %2155 = vmatpush1.msra.mxu0 %v410
    %2156 = vmatprep.subr.mxu0 %v415
    %2157 = vmatpush1.msra.mxu0 %v414
    %2158 = vmatprep.subr.mxu0 %v419
    %2159 = vmatpush1.msra.mxu0 %v418
    %2160 = vmatprep.subr.mxu0 %v423
    %2161 = vmatpush1.msra.mxu0 %v422
    %2162 = vmatprep.subr.mxu0 %v427
    %2163 = vmatpush1.msra.mxu0 %v426
    %2164 = vmatprep.subr.mxu0 %v431
    %2165 = vmatpush1.msra.mxu0 %v430
    %2166 = vmatprep.subr.mxu0 %v435
    %2167 = vmatpush1.msra.mxu0 %v434
    %2168 = vmatprep.subr.mxu0 %v439
    %2169 = vmatpush1.msra.mxu0 %v438
    %2170 = vmatprep.subr.mxu0 %v443
    %2171 = vmatpush1.msra.mxu0 %v442
    %2172 = vmatprep.subr.mxu0 %v447
    %2173 = vmatpush1.msra.mxu0 %v446
    %2174 = vmatprep.subr.mxu0 0.0
    %2175 = vmatpush1.msra.mxu0 0.0
    %2176 = vmatprep.subr.mxu0 0.0
    %2177 = vmatpush1.msra.mxu0 0.0
    %2178 = vmatprep.subr.mxu0 0.0
    %2179 = vmatpush1.msra.mxu0 0.0
    %2180 = vmatprep.subr.mxu0 0.0
    %2181 = vmatpush1.msra.mxu0 0.0
    %2182 = vmatprep.subr.mxu0 0.0
    %2183 = vmatpush1.msra.mxu0 0.0
    %2184 = vmatprep.subr.mxu0 0.0
    %2185 = vmatpush1.msra.mxu0 0.0
    %2186 = vmatprep.subr.mxu0 0.0
    %2187 = vmatpush1.msra.mxu0 0.0
    %2188 = vmatprep.subr.mxu0 0.0
    %2189 = vmatpush1.msra.mxu0 0.0
    %2190 = vmatprep.subr.mxu0 0.0
    %2191 = vmatpush1.msra.mxu0 0.0
    %2192 = vmatprep.subr.mxu0 0.0
    %2193 = vmatpush1.msra.mxu0 0.0
    %2194 = vmatprep.subr.mxu0 0.0
    %2195 = vmatpush1.msra.mxu0 0.0
    %2196 = vmatprep.subr.mxu0 0.0
    %2197 = vmatpush1.msra.mxu0 0.0
    %2198 = vmatprep.subr.mxu0 0.0
    %2199 = vmatpush1.msra.mxu0 0.0
    %2200 = vmatprep.subr.mxu0 0.0
    %2201 = vmatpush1.msra.mxu0 0.0
    %2202 = vmatprep.subr.mxu0 0.0
    %2203 = vmatpush1.msra.mxu0 0.0
    %2204 = vmatprep.subr.mxu0 0.0
    %2205 = vmatpush1.msra.mxu0 0.0
    %2206 = vmatprep.mubr.f32.mxu0 0.0
    %2207 = vmatmul.mubr.f32.gmra.mrb[0].mxu0 %v2050
    %v2208 = vpop.f32.mrb[0].mxu0
    %v2209 = vadd.f32 0.0, %v2208
    %v2210 = vpop.f32.mrb[0].mxu0
    %v2211 = vadd.f32 0.0, %v2210
    %2212 = vdwg.mxu0
    %2213 = vmatprep.subr.mxu0 %v389
    %2214 = vmatpush1.msra.mxu0 %v388
    %2215 = vmatprep.subr.mxu0 %v393
    %2216 = vmatpush1.msra.mxu0 %v392
    %2217 = vmatprep.subr.mxu0 %v397
    %2218 = vmatpush1.msra.mxu0 %v396
    %2219 = vmatprep.subr.mxu0 %v401
    %2220 = vmatpush1.msra.mxu0 %v400
    %2221 = vmatprep.subr.mxu0 %v405
    %2222 = vmatpush1.msra.mxu0 %v404
    %2223 = vmatprep.subr.mxu0 %v409
    %2224 = vmatpush1.msra.mxu0 %v408
    %2225 = vmatprep.subr.mxu0 %v413
    %2226 = vmatpush1.msra.mxu0 %v412
    %2227 = vmatprep.subr.mxu0 %v417
    %2228 = vmatpush1.msra.mxu0 %v416
    %2229 = vmatprep.subr.mxu0 %v421
    %2230 = vmatpush1.msra.mxu0 %v420
    %2231 = vmatprep.subr.mxu0 %v425
    %2232 = vmatpush1.msra.mxu0 %v424
    %2233 = vmatprep.subr.mxu0 %v429
    %2234 = vmatpush1.msra.mxu0 %v428
    %2235 = vmatprep.subr.mxu0 %v433
    %2236 = vmatpush1.msra.mxu0 %v432
    %2237 = vmatprep.subr.mxu0 %v437
    %2238 = vmatpush1.msra.mxu0 %v436
    %2239 = vmatprep.subr.mxu0 %v441
    %2240 = vmatpush1.msra.mxu0 %v440
    %2241 = vmatprep.subr.mxu0 %v445
    %2242 = vmatpush1.msra.mxu0 %v444
    %2243 = vmatprep.subr.mxu0 %v449
    %2244 = vmatpush1.msra.mxu0 %v448
    %2245 = vmatprep.subr.mxu0 0.0
    %2246 = vmatpush1.msra.mxu0 0.0
    %2247 = vmatprep.subr.mxu0 0.0
    %2248 = vmatpush1.msra.mxu0 0.0
    %2249 = vmatprep.subr.mxu0 0.0
    %2250 = vmatpush1.msra.mxu0 0.0
    %2251 = vmatprep.subr.mxu0 0.0
    %2252 = vmatpush1.msra.mxu0 0.0
    %2253 = vmatprep.subr.mxu0 0.0
    %2254 = vmatpush1.msra.mxu0 0.0
    %2255 = vmatprep.subr.mxu0 0.0
    %2256 = vmatpush1.msra.mxu0 0.0
    %2257 = vmatprep.subr.mxu0 0.0
    %2258 = vmatpush1.msra.mxu0 0.0
    %2259 = vmatprep.subr.mxu0 0.0
    %2260 = vmatpush1.msra.mxu0 0.0
    %2261 = vmatprep.subr.mxu0 0.0
    %2262 = vmatpush1.msra.mxu0 0.0
    %2263 = vmatprep.subr.mxu0 0.0
    %2264 = vmatpush1.msra.mxu0 0.0
    %2265 = vmatprep.subr.mxu0 0.0
    %2266 = vmatpush1.msra.mxu0 0.0
    %2267 = vmatprep.subr.mxu0 0.0
    %2268 = vmatpush1.msra.mxu0 0.0
    %2269 = vmatprep.subr.mxu0 0.0
    %2270 = vmatpush1.msra.mxu0 0.0
    %2271 = vmatprep.subr.mxu0 0.0
    %2272 = vmatpush1.msra.mxu0 0.0
    %2273 = vmatprep.subr.mxu0 0.0
    %2274 = vmatpush1.msra.mxu0 0.0
    %2275 = vmatprep.subr.mxu0 0.0
    %2276 = vmatpush1.msra.mxu0 0.0
    %2277 = vmatprep.mubr.f32.mxu0 0.0
    %2278 = vmatmul.mubr.f32.gmra.mrb[0].mxu0 %v2050
    %v2279 = vpop.f32.mrb[0].mxu0
    %v2280 = vadd.f32 0.0, %v2279
    %v2281 = vpop.f32.mrb[0].mxu0
    %v2282 = vadd.f32 0.0, %v2281
    %2283 = vdwg.mxu0
    %v2288 = vrot.slane %v2209, 5
    %v2289 = vrot.slane %v2211, 5
    %v2290 = vrot.slane %v2280, 5
    %v2291 = vrot.slane %v2282, 5
    %v2292 = vrot.slane %v2209, 6
    %v2293 = vrot.slane %v2211, 6
    %v2294 = vrot.slane %v2280, 6
    %v2295 = vrot.slane %v2282, 6
    %v2296 = vrot.slane %v2209, 7
    %v2297 = vrot.slane %v2211, 7
    %v2298 = vrot.slane %v2280, 7
    %v2299 = vrot.slane %v2282, 7
    %v2300 = vrot.slane %v2209, 1
    %v2301 = vrot.slane %v2211, 1
    %v2302 = vrot.slane %v2280, 1
    %v2303 = vrot.slane %v2282, 1
    %v2304 = vrot.slane %v2209, 2
    %v2305 = vrot.slane %v2211, 2
    %v2306 = vrot.slane %v2280, 2
    %v2307 = vrot.slane %v2282, 2
    %v2308 = vrot.slane %v2209, 3
    %v2309 = vrot.slane %v2211, 3
    %v2310 = vrot.slane %v2280, 3
    %v2311 = vrot.slane %v2282, 3
    %v2312 = vrot.slane %v2209, 4
    %v2313 = vrot.slane %v2211, 4
    %v2314 = vrot.slane %v2280, 4
    %v2315 = vrot.slane %v2282, 4
    %v2348 = vadd.f32 %v227, %v2288
    %v2349 = vadd.f32 %v229, %v2289
    %v2350 = vadd.f32 %v340, %v2290
    %v2351 = vadd.f32 %v342, %v2291
    %v2352 = vadd.f32 %v233, %v2292
    %v2353 = vadd.f32 %v235, %v2293
    %v2354 = vadd.f32 %v346, %v2294
    %v2355 = vadd.f32 %v348, %v2295
    %v2356 = vadd.f32 %v239, %v2296
    %v2357 = vadd.f32 %v241, %v2297
    %v2358 = vadd.f32 %v352, %v2298
    %v2359 = vadd.f32 %v354, %v2299
    %v2360 = vadd.f32 %v245, %v2209
    %v2361 = vadd.f32 %v247, %v2211
    %v2362 = vadd.f32 %v358, %v2280
    %v2363 = vadd.f32 %v360, %v2282
    %v2364 = vadd.f32 %v251, %v2300
    %v2365 = vadd.f32 %v253, %v2301
    %v2366 = vadd.f32 %v364, %v2302
    %v2367 = vadd.f32 %v366, %v2303
    %v2368 = vadd.f32 %v257, %v2304
    %v2369 = vadd.f32 %v259, %v2305
    %v2370 = vadd.f32 %v370, %v2306
    %v2371 = vadd.f32 %v372, %v2307
    %v2372 = vadd.f32 %v263, %v2308
    %v2373 = vadd.f32 %v265, %v2309
    %v2374 = vadd.f32 %v376, %v2310
    %v2375 = vadd.f32 %v378, %v2311
    %v2376 = vadd.f32 %v269, %v2312
    %v2377 = vadd.f32 %v271, %v2313
    %v2378 = vadd.f32 %v382, %v2314
    %v2379 = vadd.f32 %v384, %v2315
    %v2380 = vxor.u32 %v2348, 2147483648
    %v2381 = vxor.u32 %v2352, 2147483648
    %v2382 = vxor.u32 %v2356, 2147483648
    %v2383 = vxor.u32 %v2360, 2147483648
    %v2384 = vxor.u32 %v2364, 2147483648
    %v2385 = vxor.u32 %v2368, 2147483648
    %v2386 = vxor.u32 %v2372, 2147483648
    %v2387 = vxor.u32 %v2376, 2147483648
    %v2388 = vmul.f32 %v2380, 1.442695
    %v2389 = vpow.pop %v2388
    %v2390 = vmul.f32 %v2381, 1.442695
    %v2391 = vpow.pop %v2390
    %v2392 = vmul.f32 %v2382, 1.442695
    %v2393 = vpow.pop %v2392
    %v2394 = vmul.f32 %v2383, 1.442695
    %v2395 = vpow.pop %v2394
    %v2396 = vmul.f32 %v2384, 1.442695
    %v2397 = vpow.pop %v2396
    %v2398 = vmul.f32 %v2385, 1.442695
    %v2399 = vpow.pop %v2398
    %v2400 = vmul.f32 %v2386, 1.442695
    %v2401 = vpow.pop %v2400
    %v2402 = vmul.f32 %v2387, 1.442695
    %v2403 = vpow.pop %v2402
    %v2404 = vadd.f32 %v2389, 1.0
    %v2405 = vadd.f32 %v2391, 1.0
    %v2406 = vadd.f32 %v2393, 1.0
    %v2407 = vadd.f32 %v2395, 1.0
    %v2408 = vadd.f32 %v2397, 1.0
    %v2409 = vadd.f32 %v2399, 1.0
    %v2410 = vadd.f32 %v2401, 1.0
    %v2411 = vadd.f32 %v2403, 1.0
    %v2412 = vrcp.pop %v2404
    %v2413 = vmul.f32 1.0, %v2412
    %v2414 = vrcp.pop %v2405
    %v2415 = vmul.f32 1.0, %v2414
    %v2416 = vrcp.pop %v2406
    %v2417 = vmul.f32 1.0, %v2416
    %v2418 = vrcp.pop %v2407
    %v2419 = vmul.f32 1.0, %v2418
    %v2420 = vrcp.pop %v2408
    %v2421 = vmul.f32 1.0, %v2420
    %v2422 = vrcp.pop %v2409
    %v2423 = vmul.f32 1.0, %v2422
    %v2424 = vrcp.pop %v2410
    %v2425 = vmul.f32 1.0, %v2424
    %v2426 = vrcp.pop %v2411
    %v2427 = vmul.f32 1.0, %v2426
    %v2428 = vxor.u32 %v2349, 2147483648
    %v2429 = vxor.u32 %v2353, 2147483648
    %v2430 = vxor.u32 %v2357, 2147483648
    %v2431 = vxor.u32 %v2361, 2147483648
    %v2432 = vxor.u32 %v2365, 2147483648
    %v2433 = vxor.u32 %v2369, 2147483648
    %v2434 = vxor.u32 %v2373, 2147483648
    %v2435 = vxor.u32 %v2377, 2147483648
    %v2436 = vmul.f32 %v2428, 1.442695
    %v2437 = vpow.pop %v2436
    %v2438 = vmul.f32 %v2429, 1.442695
    %v2439 = vpow.pop %v2438
    %v2440 = vmul.f32 %v2430, 1.442695
    %v2441 = vpow.pop %v2440
    %v2442 = vmul.f32 %v2431, 1.442695
    %v2443 = vpow.pop %v2442
    %v2444 = vmul.f32 %v2432, 1.442695
    %v2445 = vpow.pop %v2444
    %v2446 = vmul.f32 %v2433, 1.442695
    %v2447 = vpow.pop %v2446
    %v2448 = vmul.f32 %v2434, 1.442695
    %v2449 = vpow.pop %v2448
    %v2450 = vmul.f32 %v2435, 1.442695
    %v2451 = vpow.pop %v2450
    %v2452 = vadd.f32 %v2437, 1.0
    %v2453 = vadd.f32 %v2439, 1.0
    %v2454 = vadd.f32 %v2441, 1.0
    %v2455 = vadd.f32 %v2443, 1.0
    %v2456 = vadd.f32 %v2445, 1.0
    %v2457 = vadd.f32 %v2447, 1.0
    %v2458 = vadd.f32 %v2449, 1.0
    %v2459 = vadd.f32 %v2451, 1.0
    %v2460 = vrcp.pop %v2452
    %v2461 = vmul.f32 1.0, %v2460
    %v2462 = vrcp.pop %v2453
    %v2463 = vmul.f32 1.0, %v2462
    %v2464 = vrcp.pop %v2454
    %v2465 = vmul.f32 1.0, %v2464
    %v2466 = vrcp.pop %v2455
    %v2467 = vmul.f32 1.0, %v2466
    %v2468 = vrcp.pop %v2456
    %v2469 = vmul.f32 1.0, %v2468
    %v2470 = vrcp.pop %v2457
    %v2471 = vmul.f32 1.0, %v2470
    %v2472 = vrcp.pop %v2458
    %v2473 = vmul.f32 1.0, %v2472
    %v2474 = vrcp.pop %v2459
    %v2475 = vmul.f32 1.0, %v2474
    %v2476 = vtanh.pop %v2350
    %v2477 = vtanh.pop %v2354
    %v2478 = vtanh.pop %v2358
    %v2479 = vtanh.pop %v2362
    %v2480 = vtanh.pop %v2366
    %v2481 = vtanh.pop %v2370
    %v2482 = vtanh.pop %v2374
    %v2483 = vtanh.pop %v2378
    %v2484 = vxor.u32 %v2351, 2147483648
    %v2485 = vxor.u32 %v2355, 2147483648
    %v2486 = vxor.u32 %v2359, 2147483648
    %v2487 = vxor.u32 %v2363, 2147483648
    %v2488 = vxor.u32 %v2367, 2147483648
    %v2489 = vxor.u32 %v2371, 2147483648
    %v2490 = vxor.u32 %v2375, 2147483648
    %v2491 = vxor.u32 %v2379, 2147483648
    %v2492 = vmul.f32 %v2484, 1.442695
    %v2493 = vpow.pop %v2492
    %v2494 = vmul.f32 %v2485, 1.442695
    %v2495 = vpow.pop %v2494
    %v2496 = vmul.f32 %v2486, 1.442695
    %v2497 = vpow.pop %v2496
    %v2498 = vmul.f32 %v2487, 1.442695
    %v2499 = vpow.pop %v2498
    %v2500 = vmul.f32 %v2488, 1.442695
    %v2501 = vpow.pop %v2500
    %v2502 = vmul.f32 %v2489, 1.442695
    %v2503 = vpow.pop %v2502
    %v2504 = vmul.f32 %v2490, 1.442695
    %v2505 = vpow.pop %v2504
    %v2506 = vmul.f32 %v2491, 1.442695
    %v2507 = vpow.pop %v2506
    %v2508 = vadd.f32 %v2493, 1.0
    %v2509 = vadd.f32 %v2495, 1.0
    %v2510 = vadd.f32 %v2497, 1.0
    %v2511 = vadd.f32 %v2499, 1.0
    %v2512 = vadd.f32 %v2501, 1.0
    %v2513 = vadd.f32 %v2503, 1.0
    %v2514 = vadd.f32 %v2505, 1.0
    %v2515 = vadd.f32 %v2507, 1.0
    %v2516 = vrcp.pop %v2508
    %v2517 = vmul.f32 1.0, %v2516
    %v2518 = vrcp.pop %v2509
    %v2519 = vmul.f32 1.0, %v2518
    %v2520 = vrcp.pop %v2510
    %v2521 = vmul.f32 1.0, %v2520
    %v2522 = vrcp.pop %v2511
    %v2523 = vmul.f32 1.0, %v2522
    %v2524 = vrcp.pop %v2512
    %v2525 = vmul.f32 1.0, %v2524
    %v2526 = vrcp.pop %v2513
    %v2527 = vmul.f32 1.0, %v2526
    %v2528 = vrcp.pop %v2514
    %v2529 = vmul.f32 1.0, %v2528
    %v2530 = vrcp.pop %v2515
    %v2531 = vmul.f32 1.0, %v2530
    %v2533 = vrot.slane %v2074, 5
    %v2534 = vrot.slane %v2074, 6
    %v2535 = vrot.slane %v2074, 7
    %v2536 = vrot.slane %v2074, 1
    %v2537 = vrot.slane %v2074, 2
    %v2538 = vrot.slane %v2074, 3
    %v2539 = vrot.slane %v2074, 4
    %v2548 = vmul.f32 %v2461, %v2533
    %v2549 = vmul.f32 %v2463, %v2534
    %v2550 = vmul.f32 %v2465, %v2535
    %v2551 = vmul.f32 %v2467, %v2074
    %v2552 = vmul.f32 %v2469, %v2536
    %v2553 = vmul.f32 %v2471, %v2537
    %v2554 = vmul.f32 %v2473, %v2538
    %v2555 = vmul.f32 %v2475, %v2539
    %v2556 = vmul.f32 %v2413, %v2476
    %v2557 = vmul.f32 %v2415, %v2477
    %v2558 = vmul.f32 %v2417, %v2478
    %v2559 = vmul.f32 %v2419, %v2479
    %v2560 = vmul.f32 %v2421, %v2480
    %v2561 = vmul.f32 %v2423, %v2481
    %v2562 = vmul.f32 %v2425, %v2482
    %v2563 = vmul.f32 %v2427, %v2483
    %v2564 = vadd.f32 %v2548, %v2556
    %v2565 = vadd.f32 %v2549, %v2557
    %v2566 = vadd.f32 %v2550, %v2558
    %v2567 = vadd.f32 %v2551, %v2559
    %v2568 = vadd.f32 %v2552, %v2560
    %v2569 = vadd.f32 %v2553, %v2561
    %v2570 = vadd.f32 %v2554, %v2562
    %v2571 = vadd.f32 %v2555, %v2563
    %v2572 = vtanh.pop %v2564
    %v2573 = vtanh.pop %v2565
    %v2574 = vtanh.pop %v2566
    %v2575 = vtanh.pop %v2567
    %v2576 = vtanh.pop %v2568
    %v2577 = vtanh.pop %v2569
    %v2578 = vtanh.pop %v2570
    %v2579 = vtanh.pop %v2571
    %v2580 = vmul.f32 %v2517, %v2572
    %v2581 = vmul.f32 %v2519, %v2573
    %v2582 = vmul.f32 %v2521, %v2574
    %v2583 = vmul.f32 %v2523, %v2575
    %v2584 = vmul.f32 %v2525, %v2576
    %v2585 = vmul.f32 %v2527, %v2577
    %v2586 = vmul.f32 %v2529, %v2578
    %v2587 = vmul.f32 %v2531, %v2579
    %vm2588 = vcmp.gt.s32.totalorder %v450, 3
    %v2589 = vsel %vm2588, 1, 0
    %2590 = vset.pattern.permute.xlu0 0
    %2591 = vperm.xlu0 %2590, %v2589
    %v2592 = vpop.permute.xlu0 %2591
    %vm2593 = vcmp.eq.s32.totalorder %v2592, 1
    %v2602 = vrot.slane %v2580, 3
    %v2603 = vrot.slane %v2581, 2
    %v2604 = vsel %vm896, %v2603, %v2602
    %v2605 = vrot.slane %v2582, 1
    %v2606 = vsel %vm899, %v2605, %v2604
    %v2607 = vsel %vm902, %v2583, %v2606
    %v2608 = vrot.slane %v2584, 7
    %v2609 = vsel %vm905, %v2608, %v2607
    %v2610 = vrot.slane %v2585, 6
    %v2611 = vsel %vm908, %v2610, %v2609
    %v2612 = vrot.slane %v2586, 5
    %v2613 = vsel %vm911, %v2612, %v2611
    %v2614 = vrot.slane %v2587, 4
    %v2615 = vsel %vm914, %v2614, %v2613
    %v2617 = vsel %vm2593, %v2615, %v2050
    %v2626 = vrot.slane %v2564, 3
    %v2627 = vrot.slane %v2565, 2
    %v2628 = vsel %vm896, %v2627, %v2626
    %v2629 = vrot.slane %v2566, 1
    %v2630 = vsel %vm899, %v2629, %v2628
    %v2631 = vsel %vm902, %v2567, %v2630
    %v2632 = vrot.slane %v2568, 7
    %v2633 = vsel %vm905, %v2632, %v2631
    %v2634 = vrot.slane %v2569, 6
    %v2635 = vsel %vm908, %v2634, %v2633
    %v2636 = vrot.slane %v2570, 5
    %v2637 = vsel %vm911, %v2636, %v2635
    %v2638 = vrot.slane %v2571, 4
    %v2639 = vsel %vm914, %v2638, %v2637
    %v2641 = vsel %vm2593, %v2639, %v2074
    %v2642 = vsel %vm2593, %v2615, 0.0
    %v2644 = vcombine.high %v2642, %v2642
    %v2646 = vunpack.c.l.s4 1966171168
    %v2647 = vunpack.c.0.s8 %v2646
    %v2648 = vlaneseq
    %v2649 = vshrl.u32 %v2648, 7
    %v2650 = vsub.s32 %v2647, %v2649
    %v2651 = vrot.slane %v2642, %v2650
    %v2653 = vunpack.c.l.s4 1966171168
    %v2654 = vunpack.c.0.s8 %v2653
    %v2655 = vlaneseq
    %v2656 = vshrl.u32 %v2655, 7
    %v2657 = vsub.s32 %v2654, %v2656
    %v2658 = vrot.slane %v2644, %v2657
    %v2659 = vcombine.high %v2651, %v2651
    %v2660 = vcombine.high %v2658, %v2658
    %v2662 = vunpack.c.l.s4 1966171168
    %v2663 = vunpack.c.0.s8 %v2662
    %v2664 = vlaneseq
    %v2665 = vshrl.u32 %v2664, 7
    %v2666 = vsub.s32 %v2663, %v2665
    %v2667 = vrot.slane %v2651, %v2666
    %v2669 = vunpack.c.l.s4 1966171168
    %v2670 = vunpack.c.0.s8 %v2669
    %v2671 = vlaneseq
    %v2672 = vshrl.u32 %v2671, 7
    %v2673 = vsub.s32 %v2670, %v2672
    %v2674 = vrot.slane %v2658, %v2673
    %v2676 = vunpack.c.l.s4 1966171168
    %v2677 = vunpack.c.0.s8 %v2676
    %v2678 = vlaneseq
    %v2679 = vshrl.u32 %v2678, 7
    %v2680 = vsub.s32 %v2677, %v2679
    %v2681 = vrot.slane %v2659, %v2680
    %v2683 = vunpack.c.l.s4 1966171168
    %v2684 = vunpack.c.0.s8 %v2683
    %v2685 = vlaneseq
    %v2686 = vshrl.u32 %v2685, 7
    %v2687 = vsub.s32 %v2684, %v2686
    %v2688 = vrot.slane %v2660, %v2687
    %v2689 = vcombine.high %v2667, %v2667
    %v2690 = vcombine.high %v2674, %v2674
    %v2691 = vcombine.high %v2681, %v2681
    %v2692 = vcombine.high %v2688, %v2688
    %2701 = vst [vmem:[#allocation8 + $0x3] sm:$0x1] %v2667
    %2702 = vst [vmem:[#allocation8 + $0xb] sm:$0x1] %v2681
    %2703 = vst [vmem:[#allocation8 + $0x13] sm:$0x1] %v2689
    %2704 = vst [vmem:[#allocation8 + $0x1b] sm:$0x1] %v2691
    %2705 = vst [vmem:[#allocation8 + $0x23] sm:$0x1] %v2674
    %2706 = vst [vmem:[#allocation8 + $0x2b] sm:$0x1] %v2688
    %2707 = vst [vmem:[#allocation8 + $0x33] sm:$0x1] %v2690
    %2708 = vst [vmem:[#allocation8 + $0x3b] sm:$0x1] %v2692
    %2709 = vmatprep.subr.mxu0 %v387
    %2710 = vmatpush1.msra.mxu0 %v386
    %2711 = vmatprep.subr.mxu0 %v391
    %2712 = vmatpush1.msra.mxu0 %v390
    %2713 = vmatprep.subr.mxu0 %v395
    %2714 = vmatpush1.msra.mxu0 %v394
    %2715 = vmatprep.subr.mxu0 %v399
    %2716 = vmatpush1.msra.mxu0 %v398
    %2717 = vmatprep.subr.mxu0 %v403
    %2718 = vmatpush1.msra.mxu0 %v402
    %2719 = vmatprep.subr.mxu0 %v407
    %2720 = vmatpush1.msra.mxu0 %v406
    %2721 = vmatprep.subr.mxu0 %v411
    %2722 = vmatpush1.msra.mxu0 %v410
    %2723 = vmatprep.subr.mxu0 %v415
    %2724 = vmatpush1.msra.mxu0 %v414
    %2725 = vmatprep.subr.mxu0 %v419
    %2726 = vmatpush1.msra.mxu0 %v418
    %2727 = vmatprep.subr.mxu0 %v423
    %2728 = vmatpush1.msra.mxu0 %v422
    %2729 = vmatprep.subr.mxu0 %v427
    %2730 = vmatpush1.msra.mxu0 %v426
    %2731 = vmatprep.subr.mxu0 %v431
    %2732 = vmatpush1.msra.mxu0 %v430
    %2733 = vmatprep.subr.mxu0 %v435
    %2734 = vmatpush1.msra.mxu0 %v434
    %2735 = vmatprep.subr.mxu0 %v439
    %2736 = vmatpush1.msra.mxu0 %v438
    %2737 = vmatprep.subr.mxu0 %v443
    %2738 = vmatpush1.msra.mxu0 %v442
    %2739 = vmatprep.subr.mxu0 %v447
    %2740 = vmatpush1.msra.mxu0 %v446
    %2741 = vmatprep.subr.mxu0 0.0
    %2742 = vmatpush1.msra.mxu0 0.0
    %2743 = vmatprep.subr.mxu0 0.0
    %2744 = vmatpush1.msra.mxu0 0.0
    %2745 = vmatprep.subr.mxu0 0.0
    %2746 = vmatpush1.msra.mxu0 0.0
    %2747 = vmatprep.subr.mxu0 0.0
    %2748 = vmatpush1.msra.mxu0 0.0
    %2749 = vmatprep.subr.mxu0 0.0
    %2750 = vmatpush1.msra.mxu0 0.0
    %2751 = vmatprep.subr.mxu0 0.0
    %2752 = vmatpush1.msra.mxu0 0.0
    %2753 = vmatprep.subr.mxu0 0.0
    %2754 = vmatpush1.msra.mxu0 0.0
    %2755 = vmatprep.subr.mxu0 0.0
    %2756 = vmatpush1.msra.mxu0 0.0
    %2757 = vmatprep.subr.mxu0 0.0
    %2758 = vmatpush1.msra.mxu0 0.0
    %2759 = vmatprep.subr.mxu0 0.0
    %2760 = vmatpush1.msra.mxu0 0.0
    %2761 = vmatprep.subr.mxu0 0.0
    %2762 = vmatpush1.msra.mxu0 0.0
    %2763 = vmatprep.subr.mxu0 0.0
    %2764 = vmatpush1.msra.mxu0 0.0
    %2765 = vmatprep.subr.mxu0 0.0
    %2766 = vmatpush1.msra.mxu0 0.0
    %2767 = vmatprep.subr.mxu0 0.0
    %2768 = vmatpush1.msra.mxu0 0.0
    %2769 = vmatprep.subr.mxu0 0.0
    %2770 = vmatpush1.msra.mxu0 0.0
    %2771 = vmatprep.subr.mxu0 0.0
    %2772 = vmatpush1.msra.mxu0 0.0
    %2773 = vmatprep.mubr.f32.mxu0 0.0
    %2774 = vmatmul.mubr.f32.gmra.mrb[0].mxu0 %v2617
    %v2775 = vpop.f32.mrb[0].mxu0
    %v2776 = vadd.f32 0.0, %v2775
    %v2777 = vpop.f32.mrb[0].mxu0
    %v2778 = vadd.f32 0.0, %v2777
    %2779 = vdwg.mxu0
    %2780 = vmatprep.subr.mxu0 %v389
    %2781 = vmatpush1.msra.mxu0 %v388
    %2782 = vmatprep.subr.mxu0 %v393
    %2783 = vmatpush1.msra.mxu0 %v392
    %2784 = vmatprep.subr.mxu0 %v397
    %2785 = vmatpush1.msra.mxu0 %v396
    %2786 = vmatprep.subr.mxu0 %v401
    %2787 = vmatpush1.msra.mxu0 %v400
    %2788 = vmatprep.subr.mxu0 %v405
    %2789 = vmatpush1.msra.mxu0 %v404
    %2790 = vmatprep.subr.mxu0 %v409
    %2791 = vmatpush1.msra.mxu0 %v408
    %2792 = vmatprep.subr.mxu0 %v413
    %2793 = vmatpush1.msra.mxu0 %v412
    %2794 = vmatprep.subr.mxu0 %v417
    %2795 = vmatpush1.msra.mxu0 %v416
    %2796 = vmatprep.subr.mxu0 %v421
    %2797 = vmatpush1.msra.mxu0 %v420
    %2798 = vmatprep.subr.mxu0 %v425
    %2799 = vmatpush1.msra.mxu0 %v424
    %2800 = vmatprep.subr.mxu0 %v429
    %2801 = vmatpush1.msra.mxu0 %v428
    %2802 = vmatprep.subr.mxu0 %v433
    %2803 = vmatpush1.msra.mxu0 %v432
    %2804 = vmatprep.subr.mxu0 %v437
    %2805 = vmatpush1.msra.mxu0 %v436
    %2806 = vmatprep.subr.mxu0 %v441
    %2807 = vmatpush1.msra.mxu0 %v440
    %2808 = vmatprep.subr.mxu0 %v445
    %2809 = vmatpush1.msra.mxu0 %v444
    %2810 = vmatprep.subr.mxu0 %v449
    %2811 = vmatpush1.msra.mxu0 %v448
    %2812 = vmatprep.subr.mxu0 0.0
    %2813 = vmatpush1.msra.mxu0 0.0
    %2814 = vmatprep.subr.mxu0 0.0
    %2815 = vmatpush1.msra.mxu0 0.0
    %2816 = vmatprep.subr.mxu0 0.0
    %2817 = vmatpush1.msra.mxu0 0.0
    %2818 = vmatprep.subr.mxu0 0.0
    %2819 = vmatpush1.msra.mxu0 0.0
    %2820 = vmatprep.subr.mxu0 0.0
    %2821 = vmatpush1.msra.mxu0 0.0
    %2822 = vmatprep.subr.mxu0 0.0
    %2823 = vmatpush1.msra.mxu0 0.0
    %2824 = vmatprep.subr.mxu0 0.0
    %2825 = vmatpush1.msra.mxu0 0.0
    %2826 = vmatprep.subr.mxu0 0.0
    %2827 = vmatpush1.msra.mxu0 0.0
    %2828 = vmatprep.subr.mxu0 0.0
    %2829 = vmatpush1.msra.mxu0 0.0
    %2830 = vmatprep.subr.mxu0 0.0
    %2831 = vmatpush1.msra.mxu0 0.0
    %2832 = vmatprep.subr.mxu0 0.0
    %2833 = vmatpush1.msra.mxu0 0.0
    %2834 = vmatprep.subr.mxu0 0.0
    %2835 = vmatpush1.msra.mxu0 0.0
    %2836 = vmatprep.subr.mxu0 0.0
    %2837 = vmatpush1.msra.mxu0 0.0
    %2838 = vmatprep.subr.mxu0 0.0
    %2839 = vmatpush1.msra.mxu0 0.0
    %2840 = vmatprep.subr.mxu0 0.0
    %2841 = vmatpush1.msra.mxu0 0.0
    %2842 = vmatprep.subr.mxu0 0.0
    %2843 = vmatpush1.msra.mxu0 0.0
    %2844 = vmatprep.mubr.f32.mxu0 0.0
    %2845 = vmatmul.mubr.f32.gmra.mrb[0].mxu0 %v2617
    %v2846 = vpop.f32.mrb[0].mxu0
    %v2847 = vadd.f32 0.0, %v2846
    %v2848 = vpop.f32.mrb[0].mxu0
    %v2849 = vadd.f32 0.0, %v2848
    %2850 = vdwg.mxu0
    %v2855 = vrot.slane %v2776, 4
    %v2856 = vrot.slane %v2778, 4
    %v2857 = vrot.slane %v2847, 4
    %v2858 = vrot.slane %v2849, 4
    %v2859 = vrot.slane %v2776, 5
    %v2860 = vrot.slane %v2778, 5
    %v2861 = vrot.slane %v2847, 5
    %v2862 = vrot.slane %v2849, 5
    %v2863 = vrot.slane %v2776, 6
    %v2864 = vrot.slane %v2778, 6
    %v2865 = vrot.slane %v2847, 6
    %v2866 = vrot.slane %v2849, 6
    %v2867 = vrot.slane %v2776, 7
    %v2868 = vrot.slane %v2778, 7
    %v2869 = vrot.slane %v2847, 7
    %v2870 = vrot.slane %v2849, 7
    %v2871 = vrot.slane %v2776, 1
    %v2872 = vrot.slane %v2778, 1
    %v2873 = vrot.slane %v2847, 1
    %v2874 = vrot.slane %v2849, 1
    %v2875 = vrot.slane %v2776, 2
    %v2876 = vrot.slane %v2778, 2
    %v2877 = vrot.slane %v2847, 2
    %v2878 = vrot.slane %v2849, 2
    %v2879 = vrot.slane %v2776, 3
    %v2880 = vrot.slane %v2778, 3
    %v2881 = vrot.slane %v2847, 3
    %v2882 = vrot.slane %v2849, 3
    %v2915 = vadd.f32 %v227, %v2855
    %v2916 = vadd.f32 %v229, %v2856
    %v2917 = vadd.f32 %v340, %v2857
    %v2918 = vadd.f32 %v342, %v2858
    %v2919 = vadd.f32 %v233, %v2859
    %v2920 = vadd.f32 %v235, %v2860
    %v2921 = vadd.f32 %v346, %v2861
    %v2922 = vadd.f32 %v348, %v2862
    %v2923 = vadd.f32 %v239, %v2863
    %v2924 = vadd.f32 %v241, %v2864
    %v2925 = vadd.f32 %v352, %v2865
    %v2926 = vadd.f32 %v354, %v2866
    %v2927 = vadd.f32 %v245, %v2867
    %v2928 = vadd.f32 %v247, %v2868
    %v2929 = vadd.f32 %v358, %v2869
    %v2930 = vadd.f32 %v360, %v2870
    %v2931 = vadd.f32 %v251, %v2776
    %v2932 = vadd.f32 %v253, %v2778
    %v2933 = vadd.f32 %v364, %v2847
    %v2934 = vadd.f32 %v366, %v2849
    %v2935 = vadd.f32 %v257, %v2871
    %v2936 = vadd.f32 %v259, %v2872
    %v2937 = vadd.f32 %v370, %v2873
    %v2938 = vadd.f32 %v372, %v2874
    %v2939 = vadd.f32 %v263, %v2875
    %v2940 = vadd.f32 %v265, %v2876
    %v2941 = vadd.f32 %v376, %v2877
    %v2942 = vadd.f32 %v378, %v2878
    %v2943 = vadd.f32 %v269, %v2879
    %v2944 = vadd.f32 %v271, %v2880
    %v2945 = vadd.f32 %v382, %v2881
    %v2946 = vadd.f32 %v384, %v2882
    %v2947 = vxor.u32 %v2915, 2147483648
    %v2948 = vxor.u32 %v2919, 2147483648
    %v2949 = vxor.u32 %v2923, 2147483648
    %v2950 = vxor.u32 %v2927, 2147483648
    %v2951 = vxor.u32 %v2931, 2147483648
    %v2952 = vxor.u32 %v2935, 2147483648
    %v2953 = vxor.u32 %v2939, 2147483648
    %v2954 = vxor.u32 %v2943, 2147483648
    %v2955 = vmul.f32 %v2947, 1.442695
    %v2956 = vpow.pop %v2955
    %v2957 = vmul.f32 %v2948, 1.442695
    %v2958 = vpow.pop %v2957
    %v2959 = vmul.f32 %v2949, 1.442695
    %v2960 = vpow.pop %v2959
    %v2961 = vmul.f32 %v2950, 1.442695
    %v2962 = vpow.pop %v2961
    %v2963 = vmul.f32 %v2951, 1.442695
    %v2964 = vpow.pop %v2963
    %v2965 = vmul.f32 %v2952, 1.442695
    %v2966 = vpow.pop %v2965
    %v2967 = vmul.f32 %v2953, 1.442695
    %v2968 = vpow.pop %v2967
    %v2969 = vmul.f32 %v2954, 1.442695
    %v2970 = vpow.pop %v2969
    %v2971 = vadd.f32 %v2956, 1.0
    %v2972 = vadd.f32 %v2958, 1.0
    %v2973 = vadd.f32 %v2960, 1.0
    %v2974 = vadd.f32 %v2962, 1.0
    %v2975 = vadd.f32 %v2964, 1.0
    %v2976 = vadd.f32 %v2966, 1.0
    %v2977 = vadd.f32 %v2968, 1.0
    %v2978 = vadd.f32 %v2970, 1.0
    %v2979 = vrcp.pop %v2971
    %v2980 = vmul.f32 1.0, %v2979
    %v2981 = vrcp.pop %v2972
    %v2982 = vmul.f32 1.0, %v2981
    %v2983 = vrcp.pop %v2973
    %v2984 = vmul.f32 1.0, %v2983
    %v2985 = vrcp.pop %v2974
    %v2986 = vmul.f32 1.0, %v2985
    %v2987 = vrcp.pop %v2975
    %v2988 = vmul.f32 1.0, %v2987
    %v2989 = vrcp.pop %v2976
    %v2990 = vmul.f32 1.0, %v2989
    %v2991 = vrcp.pop %v2977
    %v2992 = vmul.f32 1.0, %v2991
    %v2993 = vrcp.pop %v2978
    %v2994 = vmul.f32 1.0, %v2993
    %v2995 = vxor.u32 %v2916, 2147483648
    %v2996 = vxor.u32 %v2920, 2147483648
    %v2997 = vxor.u32 %v2924, 2147483648
    %v2998 = vxor.u32 %v2928, 2147483648
    %v2999 = vxor.u32 %v2932, 2147483648
    %v3000 = vxor.u32 %v2936, 2147483648
    %v3001 = vxor.u32 %v2940, 2147483648
    %v3002 = vxor.u32 %v2944, 2147483648
    %v3003 = vmul.f32 %v2995, 1.442695
    %v3004 = vpow.pop %v3003
    %v3005 = vmul.f32 %v2996, 1.442695
    %v3006 = vpow.pop %v3005
    %v3007 = vmul.f32 %v2997, 1.442695
    %v3008 = vpow.pop %v3007
    %v3009 = vmul.f32 %v2998, 1.442695
    %v3010 = vpow.pop %v3009
    %v3011 = vmul.f32 %v2999, 1.442695
    %v3012 = vpow.pop %v3011
    %v3013 = vmul.f32 %v3000, 1.442695
    %v3014 = vpow.pop %v3013
    %v3015 = vmul.f32 %v3001, 1.442695
    %v3016 = vpow.pop %v3015
    %v3017 = vmul.f32 %v3002, 1.442695
    %v3018 = vpow.pop %v3017
    %v3019 = vadd.f32 %v3004, 1.0
    %v3020 = vadd.f32 %v3006, 1.0
    %v3021 = vadd.f32 %v3008, 1.0
    %v3022 = vadd.f32 %v3010, 1.0
    %v3023 = vadd.f32 %v3012, 1.0
    %v3024 = vadd.f32 %v3014, 1.0
    %v3025 = vadd.f32 %v3016, 1.0
    %v3026 = vadd.f32 %v3018, 1.0
    %v3027 = vrcp.pop %v3019
    %v3028 = vmul.f32 1.0, %v3027
    %v3029 = vrcp.pop %v3020
    %v3030 = vmul.f32 1.0, %v3029
    %v3031 = vrcp.pop %v3021
    %v3032 = vmul.f32 1.0, %v3031
    %v3033 = vrcp.pop %v3022
    %v3034 = vmul.f32 1.0, %v3033
    %v3035 = vrcp.pop %v3023
    %v3036 = vmul.f32 1.0, %v3035
    %v3037 = vrcp.pop %v3024
    %v3038 = vmul.f32 1.0, %v3037
    %v3039 = vrcp.pop %v3025
    %v3040 = vmul.f32 1.0, %v3039
    %v3041 = vrcp.pop %v3026
    %v3042 = vmul.f32 1.0, %v3041
    %v3043 = vtanh.pop %v2917
    %v3044 = vtanh.pop %v2921
    %v3045 = vtanh.pop %v2925
    %v3046 = vtanh.pop %v2929
    %v3047 = vtanh.pop %v2933
    %v3048 = vtanh.pop %v2937
    %v3049 = vtanh.pop %v2941
    %v3050 = vtanh.pop %v2945
    %v3051 = vxor.u32 %v2918, 2147483648
    %v3052 = vxor.u32 %v2922, 2147483648
    %v3053 = vxor.u32 %v2926, 2147483648
    %v3054 = vxor.u32 %v2930, 2147483648
    %v3055 = vxor.u32 %v2934, 2147483648
    %v3056 = vxor.u32 %v2938, 2147483648
    %v3057 = vxor.u32 %v2942, 2147483648
    %v3058 = vxor.u32 %v2946, 2147483648
    %v3059 = vmul.f32 %v3051, 1.442695
    %v3060 = vpow.pop %v3059
    %v3061 = vmul.f32 %v3052, 1.442695
    %v3062 = vpow.pop %v3061
    %v3063 = vmul.f32 %v3053, 1.442695
    %v3064 = vpow.pop %v3063
    %v3065 = vmul.f32 %v3054, 1.442695
    %v3066 = vpow.pop %v3065
    %v3067 = vmul.f32 %v3055, 1.442695
    %v3068 = vpow.pop %v3067
    %v3069 = vmul.f32 %v3056, 1.442695
    %v3070 = vpow.pop %v3069
    %v3071 = vmul.f32 %v3057, 1.442695
    %v3072 = vpow.pop %v3071
    %v3073 = vmul.f32 %v3058, 1.442695
    %v3074 = vpow.pop %v3073
    %v3075 = vadd.f32 %v3060, 1.0
    %v3076 = vadd.f32 %v3062, 1.0
    %v3077 = vadd.f32 %v3064, 1.0
    %v3078 = vadd.f32 %v3066, 1.0
    %v3079 = vadd.f32 %v3068, 1.0
    %v3080 = vadd.f32 %v3070, 1.0
    %v3081 = vadd.f32 %v3072, 1.0
    %v3082 = vadd.f32 %v3074, 1.0
    %v3083 = vrcp.pop %v3075
    %v3084 = vmul.f32 1.0, %v3083
    %v3085 = vrcp.pop %v3076
    %v3086 = vmul.f32 1.0, %v3085
    %v3087 = vrcp.pop %v3077
    %v3088 = vmul.f32 1.0, %v3087
    %v3089 = vrcp.pop %v3078
    %v3090 = vmul.f32 1.0, %v3089
    %v3091 = vrcp.pop %v3079
    %v3092 = vmul.f32 1.0, %v3091
    %v3093 = vrcp.pop %v3080
    %v3094 = vmul.f32 1.0, %v3093
    %v3095 = vrcp.pop %v3081
    %v3096 = vmul.f32 1.0, %v3095
    %v3097 = vrcp.pop %v3082
    %v3098 = vmul.f32 1.0, %v3097
    %v3100 = vrot.slane %v2641, 4
    %v3101 = vrot.slane %v2641, 5
    %v3102 = vrot.slane %v2641, 6
    %v3103 = vrot.slane %v2641, 7
    %v3104 = vrot.slane %v2641, 1
    %v3105 = vrot.slane %v2641, 2
    %v3106 = vrot.slane %v2641, 3
    %v3115 = vmul.f32 %v3028, %v3100
    %v3116 = vmul.f32 %v3030, %v3101
    %v3117 = vmul.f32 %v3032, %v3102
    %v3118 = vmul.f32 %v3034, %v3103
    %v3119 = vmul.f32 %v3036, %v2641
    %v3120 = vmul.f32 %v3038, %v3104
    %v3121 = vmul.f32 %v3040, %v3105
    %v3122 = vmul.f32 %v3042, %v3106
    %v3123 = vmul.f32 %v2980, %v3043
    %v3124 = vmul.f32 %v2982, %v3044
    %v3125 = vmul.f32 %v2984, %v3045
    %v3126 = vmul.f32 %v2986, %v3046
    %v3127 = vmul.f32 %v2988, %v3047
    %v3128 = vmul.f32 %v2990, %v3048
    %v3129 = vmul.f32 %v2992, %v3049
    %v3130 = vmul.f32 %v2994, %v3050
    %v3131 = vadd.f32 %v3115, %v3123
    %v3132 = vadd.f32 %v3116, %v3124
    %v3133 = vadd.f32 %v3117, %v3125
    %v3134 = vadd.f32 %v3118, %v3126
    %v3135 = vadd.f32 %v3119, %v3127
    %v3136 = vadd.f32 %v3120, %v3128
    %v3137 = vadd.f32 %v3121, %v3129
    %v3138 = vadd.f32 %v3122, %v3130
    %v3139 = vtanh.pop %v3131
    %v3140 = vtanh.pop %v3132
    %v3141 = vtanh.pop %v3133
    %v3142 = vtanh.pop %v3134
    %v3143 = vtanh.pop %v3135
    %v3144 = vtanh.pop %v3136
    %v3145 = vtanh.pop %v3137
    %v3146 = vtanh.pop %v3138
    %v3147 = vmul.f32 %v3084, %v3139
    %v3148 = vmul.f32 %v3086, %v3140
    %v3149 = vmul.f32 %v3088, %v3141
    %v3150 = vmul.f32 %v3090, %v3142
    %v3151 = vmul.f32 %v3092, %v3143
    %v3152 = vmul.f32 %v3094, %v3144
    %v3153 = vmul.f32 %v3096, %v3145
    %v3154 = vmul.f32 %v3098, %v3146
    %vm3155 = vcmp.gt.s32.totalorder %v450, 4
    %v3156 = vsel %vm3155, 1, 0
    %3157 = vset.pattern.permute.xlu0 0
    %3158 = vperm.xlu0 %3157, %v3156
    %v3159 = vpop.permute.xlu0 %3158
    %vm3160 = vcmp.eq.s32.totalorder %v3159, 1
    %v3169 = vrot.slane %v3147, 4
    %v3170 = vrot.slane %v3148, 3
    %v3171 = vsel %vm896, %v3170, %v3169
    %v3172 = vrot.slane %v3149, 2
    %v3173 = vsel %vm899, %v3172, %v3171
    %v3174 = vrot.slane %v3150, 1
    %v3175 = vsel %vm902, %v3174, %v3173
    %v3176 = vsel %vm905, %v3151, %v3175
    %v3177 = vrot.slane %v3152, 7
    %v3178 = vsel %vm908, %v3177, %v3176
    %v3179 = vrot.slane %v3153, 6
    %v3180 = vsel %vm911, %v3179, %v3178
    %v3181 = vrot.slane %v3154, 5
    %v3182 = vsel %vm914, %v3181, %v3180
    %v3184 = vsel %vm3160, %v3182, %v2617
    %v3193 = vrot.slane %v3131, 4
    %v3194 = vrot.slane %v3132, 3
    %v3195 = vsel %vm896, %v3194, %v3193
    %v3196 = vrot.slane %v3133, 2
    %v3197 = vsel %vm899, %v3196, %v3195
    %v3198 = vrot.slane %v3134, 1
    %v3199 = vsel %vm902, %v3198, %v3197
    %v3200 = vsel %vm905, %v3135, %v3199
    %v3201 = vrot.slane %v3136, 7
    %v3202 = vsel %vm908, %v3201, %v3200
    %v3203 = vrot.slane %v3137, 6
    %v3204 = vsel %vm911, %v3203, %v3202
    %v3205 = vrot.slane %v3138, 5
    %v3206 = vsel %vm914, %v3205, %v3204
    %v3208 = vsel %vm3160, %v3206, %v2641
    %v3209 = vsel %vm3160, %v3182, 0.0
    %v3211 = vcombine.high %v3209, %v3209
    %v3213 = vunpack.c.l.s4 1966171168
    %v3214 = vunpack.c.0.s8 %v3213
    %v3215 = vlaneseq
    %v3216 = vshrl.u32 %v3215, 7
    %v3217 = vsub.s32 %v3214, %v3216
    %v3218 = vrot.slane %v3209, %v3217
    %v3220 = vunpack.c.l.s4 1966171168
    %v3221 = vunpack.c.0.s8 %v3220
    %v3222 = vlaneseq
    %v3223 = vshrl.u32 %v3222, 7
    %v3224 = vsub.s32 %v3221, %v3223
    %v3225 = vrot.slane %v3211, %v3224
    %v3226 = vcombine.high %v3218, %v3218
    %v3227 = vcombine.high %v3225, %v3225
    %v3229 = vunpack.c.l.s4 1966171168
    %v3230 = vunpack.c.0.s8 %v3229
    %v3231 = vlaneseq
    %v3232 = vshrl.u32 %v3231, 7
    %v3233 = vsub.s32 %v3230, %v3232
    %v3234 = vrot.slane %v3218, %v3233
    %v3236 = vunpack.c.l.s4 1966171168
    %v3237 = vunpack.c.0.s8 %v3236
    %v3238 = vlaneseq
    %v3239 = vshrl.u32 %v3238, 7
    %v3240 = vsub.s32 %v3237, %v3239
    %v3241 = vrot.slane %v3225, %v3240
    %v3243 = vunpack.c.l.s4 1966171168
    %v3244 = vunpack.c.0.s8 %v3243
    %v3245 = vlaneseq
    %v3246 = vshrl.u32 %v3245, 7
    %v3247 = vsub.s32 %v3244, %v3246
    %v3248 = vrot.slane %v3226, %v3247
    %v3250 = vunpack.c.l.s4 1966171168
    %v3251 = vunpack.c.0.s8 %v3250
    %v3252 = vlaneseq
    %v3253 = vshrl.u32 %v3252, 7
    %v3254 = vsub.s32 %v3251, %v3253
    %v3255 = vrot.slane %v3227, %v3254
    %v3256 = vcombine.high %v3234, %v3234
    %v3257 = vcombine.high %v3241, %v3241
    %v3258 = vcombine.high %v3248, %v3248
    %v3259 = vcombine.high %v3255, %v3255
    %3268 = vst [vmem:[#allocation8 + $0x4] sm:$0x1] %v3234
    %3269 = vst [vmem:[#allocation8 + $0xc] sm:$0x1] %v3248
    %3270 = vst [vmem:[#allocation8 + $0x14] sm:$0x1] %v3256
    %3271 = vst [vmem:[#allocation8 + $0x1c] sm:$0x1] %v3258
    %3272 = vst [vmem:[#allocation8 + $0x24] sm:$0x1] %v3241
    %3273 = vst [vmem:[#allocation8 + $0x2c] sm:$0x1] %v3255
    %3274 = vst [vmem:[#allocation8 + $0x34] sm:$0x1] %v3257
    %3275 = vst [vmem:[#allocation8 + $0x3c] sm:$0x1] %v3259
    %3276 = vmatprep.subr.mxu0 %v387
    %3277 = vmatpush1.msra.mxu0 %v386
    %3278 = vmatprep.subr.mxu0 %v391
    %3279 = vmatpush1.msra.mxu0 %v390
    %3280 = vmatprep.subr.mxu0 %v395
    %3281 = vmatpush1.msra.mxu0 %v394
    %3282 = vmatprep.subr.mxu0 %v399
    %3283 = vmatpush1.msra.mxu0 %v398
    %3284 = vmatprep.subr.mxu0 %v403
    %3285 = vmatpush1.msra.mxu0 %v402
    %3286 = vmatprep.subr.mxu0 %v407
    %3287 = vmatpush1.msra.mxu0 %v406
    %3288 = vmatprep.subr.mxu0 %v411
    %3289 = vmatpush1.msra.mxu0 %v410
    %3290 = vmatprep.subr.mxu0 %v415
    %3291 = vmatpush1.msra.mxu0 %v414
    %3292 = vmatprep.subr.mxu0 %v419
    %3293 = vmatpush1.msra.mxu0 %v418
    %3294 = vmatprep.subr.mxu0 %v423
    %3295 = vmatpush1.msra.mxu0 %v422
    %3296 = vmatprep.subr.mxu0 %v427
    %3297 = vmatpush1.msra.mxu0 %v426
    %3298 = vmatprep.subr.mxu0 %v431
    %3299 = vmatpush1.msra.mxu0 %v430
    %3300 = vmatprep.subr.mxu0 %v435
    %3301 = vmatpush1.msra.mxu0 %v434
    %3302 = vmatprep.subr.mxu0 %v439
    %3303 = vmatpush1.msra.mxu0 %v438
    %3304 = vmatprep.subr.mxu0 %v443
    %3305 = vmatpush1.msra.mxu0 %v442
    %3306 = vmatprep.subr.mxu0 %v447
    %3307 = vmatpush1.msra.mxu0 %v446
    %3308 = vmatprep.subr.mxu0 0.0
    %3309 = vmatpush1.msra.mxu0 0.0
    %3310 = vmatprep.subr.mxu0 0.0
    %3311 = vmatpush1.msra.mxu0 0.0
    %3312 = vmatprep.subr.mxu0 0.0
    %3313 = vmatpush1.msra.mxu0 0.0
    %3314 = vmatprep.subr.mxu0 0.0
    %3315 = vmatpush1.msra.mxu0 0.0
    %3316 = vmatprep.subr.mxu0 0.0
    %3317 = vmatpush1.msra.mxu0 0.0
    %3318 = vmatprep.subr.mxu0 0.0
    %3319 = vmatpush1.msra.mxu0 0.0
    %3320 = vmatprep.subr.mxu0 0.0
    %3321 = vmatpush1.msra.mxu0 0.0
    %3322 = vmatprep.subr.mxu0 0.0
    %3323 = vmatpush1.msra.mxu0 0.0
    %3324 = vmatprep.subr.mxu0 0.0
    %3325 = vmatpush1.msra.mxu0 0.0
    %3326 = vmatprep.subr.mxu0 0.0
    %3327 = vmatpush1.msra.mxu0 0.0
    %3328 = vmatprep.subr.mxu0 0.0
    %3329 = vmatpush1.msra.mxu0 0.0
    %3330 = vmatprep.subr.mxu0 0.0
    %3331 = vmatpush1.msra.mxu0 0.0
    %3332 = vmatprep.subr.mxu0 0.0
    %3333 = vmatpush1.msra.mxu0 0.0
    %3334 = vmatprep.subr.mxu0 0.0
    %3335 = vmatpush1.msra.mxu0 0.0
    %3336 = vmatprep.subr.mxu0 0.0
    %3337 = vmatpush1.msra.mxu0 0.0
    %3338 = vmatprep.subr.mxu0 0.0
    %3339 = vmatpush1.msra.mxu0 0.0
    %3340 = vmatprep.mubr.f32.mxu0 0.0
    %3341 = vmatmul.mubr.f32.gmra.mrb[0].mxu0 %v3184
    %v3342 = vpop.f32.mrb[0].mxu0
    %v3343 = vadd.f32 0.0, %v3342
    %v3344 = vpop.f32.mrb[0].mxu0
    %v3345 = vadd.f32 0.0, %v3344
    %3346 = vdwg.mxu0
    %3347 = vmatprep.subr.mxu0 %v389
    %3348 = vmatpush1.msra.mxu0 %v388
    %3349 = vmatprep.subr.mxu0 %v393
    %3350 = vmatpush1.msra.mxu0 %v392
    %3351 = vmatprep.subr.mxu0 %v397
    %3352 = vmatpush1.msra.mxu0 %v396
    %3353 = vmatprep.subr.mxu0 %v401
    %3354 = vmatpush1.msra.mxu0 %v400
    %3355 = vmatprep.subr.mxu0 %v405
    %3356 = vmatpush1.msra.mxu0 %v404
    %3357 = vmatprep.subr.mxu0 %v409
    %3358 = vmatpush1.msra.mxu0 %v408
    %3359 = vmatprep.subr.mxu0 %v413
    %3360 = vmatpush1.msra.mxu0 %v412
    %3361 = vmatprep.subr.mxu0 %v417
    %3362 = vmatpush1.msra.mxu0 %v416
    %3363 = vmatprep.subr.mxu0 %v421
    %3364 = vmatpush1.msra.mxu0 %v420
    %3365 = vmatprep.subr.mxu0 %v425
    %3366 = vmatpush1.msra.mxu0 %v424
    %3367 = vmatprep.subr.mxu0 %v429
    %3368 = vmatpush1.msra.mxu0 %v428
    %3369 = vmatprep.subr.mxu0 %v433
    %3370 = vmatpush1.msra.mxu0 %v432
    %3371 = vmatprep.subr.mxu0 %v437
    %3372 = vmatpush1.msra.mxu0 %v436
    %3373 = vmatprep.subr.mxu0 %v441
    %3374 = vmatpush1.msra.mxu0 %v440
    %3375 = vmatprep.subr.mxu0 %v445
    %3376 = vmatpush1.msra.mxu0 %v444
    %3377 = vmatprep.subr.mxu0 %v449
    %3378 = vmatpush1.msra.mxu0 %v448
    %3379 = vmatprep.subr.mxu0 0.0
    %3380 = vmatpush1.msra.mxu0 0.0
    %3381 = vmatprep.subr.mxu0 0.0
    %3382 = vmatpush1.msra.mxu0 0.0
    %3383 = vmatprep.subr.mxu0 0.0
    %3384 = vmatpush1.msra.mxu0 0.0
    %3385 = vmatprep.subr.mxu0 0.0
    %3386 = vmatpush1.msra.mxu0 0.0
    %3387 = vmatprep.subr.mxu0 0.0
    %3388 = vmatpush1.msra.mxu0 0.0
    %3389 = vmatprep.subr.mxu0 0.0
    %3390 = vmatpush1.msra.mxu0 0.0
    %3391 = vmatprep.subr.mxu0 0.0
    %3392 = vmatpush1.msra.mxu0 0.0
    %3393 = vmatprep.subr.mxu0 0.0
    %3394 = vmatpush1.msra.mxu0 0.0
    %3395 = vmatprep.subr.mxu0 0.0
    %3396 = vmatpush1.msra.mxu0 0.0
    %3397 = vmatprep.subr.mxu0 0.0
    %3398 = vmatpush1.msra.mxu0 0.0
    %3399 = vmatprep.subr.mxu0 0.0
    %3400 = vmatpush1.msra.mxu0 0.0
    %3401 = vmatprep.subr.mxu0 0.0
    %3402 = vmatpush1.msra.mxu0 0.0
    %3403 = vmatprep.subr.mxu0 0.0
    %3404 = vmatpush1.msra.mxu0 0.0
    %3405 = vmatprep.subr.mxu0 0.0
    %3406 = vmatpush1.msra.mxu0 0.0
    %3407 = vmatprep.subr.mxu0 0.0
    %3408 = vmatpush1.msra.mxu0 0.0
    %3409 = vmatprep.subr.mxu0 0.0
    %3410 = vmatpush1.msra.mxu0 0.0
    %3411 = vmatprep.mubr.f32.mxu0 0.0
    %3412 = vmatmul.mubr.f32.gmra.mrb[0].mxu0 %v3184
    %v3413 = vpop.f32.mrb[0].mxu0
    %v3414 = vadd.f32 0.0, %v3413
    %v3415 = vpop.f32.mrb[0].mxu0
    %v3416 = vadd.f32 0.0, %v3415
    %3417 = vdwg.mxu0
    %v3422 = vrot.slane %v3343, 3
    %v3423 = vrot.slane %v3345, 3
    %v3424 = vrot.slane %v3414, 3
    %v3425 = vrot.slane %v3416, 3
    %v3426 = vrot.slane %v3343, 4
    %v3427 = vrot.slane %v3345, 4
    %v3428 = vrot.slane %v3414, 4
    %v3429 = vrot.slane %v3416, 4
    %v3430 = vrot.slane %v3343, 5
    %v3431 = vrot.slane %v3345, 5
    %v3432 = vrot.slane %v3414, 5
    %v3433 = vrot.slane %v3416, 5
    %v3434 = vrot.slane %v3343, 6
    %v3435 = vrot.slane %v3345, 6
    %v3436 = vrot.slane %v3414, 6
    %v3437 = vrot.slane %v3416, 6
    %v3438 = vrot.slane %v3343, 7
    %v3439 = vrot.slane %v3345, 7
    %v3440 = vrot.slane %v3414, 7
    %v3441 = vrot.slane %v3416, 7
    %v3442 = vrot.slane %v3343, 1
    %v3443 = vrot.slane %v3345, 1
    %v3444 = vrot.slane %v3414, 1
    %v3445 = vrot.slane %v3416, 1
    %v3446 = vrot.slane %v3343, 2
    %v3447 = vrot.slane %v3345, 2
    %v3448 = vrot.slane %v3414, 2
    %v3449 = vrot.slane %v3416, 2
    %v3482 = vadd.f32 %v227, %v3422
    %v3483 = vadd.f32 %v229, %v3423
    %v3484 = vadd.f32 %v340, %v3424
    %v3485 = vadd.f32 %v342, %v3425
    %v3486 = vadd.f32 %v233, %v3426
    %v3487 = vadd.f32 %v235, %v3427
    %v3488 = vadd.f32 %v346, %v3428
    %v3489 = vadd.f32 %v348, %v3429
    %v3490 = vadd.f32 %v239, %v3430
    %v3491 = vadd.f32 %v241, %v3431
    %v3492 = vadd.f32 %v352, %v3432
    %v3493 = vadd.f32 %v354, %v3433
    %v3494 = vadd.f32 %v245, %v3434
    %v3495 = vadd.f32 %v247, %v3435
    %v3496 = vadd.f32 %v358, %v3436
    %v3497 = vadd.f32 %v360, %v3437
    %v3498 = vadd.f32 %v251, %v3438
    %v3499 = vadd.f32 %v253, %v3439
    %v3500 = vadd.f32 %v364, %v3440
    %v3501 = vadd.f32 %v366, %v3441
    %v3502 = vadd.f32 %v257, %v3343
    %v3503 = vadd.f32 %v259, %v3345
    %v3504 = vadd.f32 %v370, %v3414
    %v3505 = vadd.f32 %v372, %v3416
    %v3506 = vadd.f32 %v263, %v3442
    %v3507 = vadd.f32 %v265, %v3443
    %v3508 = vadd.f32 %v376, %v3444
    %v3509 = vadd.f32 %v378, %v3445
    %v3510 = vadd.f32 %v269, %v3446
    %v3511 = vadd.f32 %v271, %v3447
    %v3512 = vadd.f32 %v382, %v3448
    %v3513 = vadd.f32 %v384, %v3449
    %v3514 = vxor.u32 %v3482, 2147483648
    %v3515 = vxor.u32 %v3486, 2147483648
    %v3516 = vxor.u32 %v3490, 2147483648
    %v3517 = vxor.u32 %v3494, 2147483648
    %v3518 = vxor.u32 %v3498, 2147483648
    %v3519 = vxor.u32 %v3502, 2147483648
    %v3520 = vxor.u32 %v3506, 2147483648
    %v3521 = vxor.u32 %v3510, 2147483648
    %v3522 = vmul.f32 %v3514, 1.442695
    %v3523 = vpow.pop %v3522
    %v3524 = vmul.f32 %v3515, 1.442695
    %v3525 = vpow.pop %v3524
    %v3526 = vmul.f32 %v3516, 1.442695
    %v3527 = vpow.pop %v3526
    %v3528 = vmul.f32 %v3517, 1.442695
    %v3529 = vpow.pop %v3528
    %v3530 = vmul.f32 %v3518, 1.442695
    %v3531 = vpow.pop %v3530
    %v3532 = vmul.f32 %v3519, 1.442695
    %v3533 = vpow.pop %v3532
    %v3534 = vmul.f32 %v3520, 1.442695
    %v3535 = vpow.pop %v3534
    %v3536 = vmul.f32 %v3521, 1.442695
    %v3537 = vpow.pop %v3536
    %v3538 = vadd.f32 %v3523, 1.0
    %v3539 = vadd.f32 %v3525, 1.0
    %v3540 = vadd.f32 %v3527, 1.0
    %v3541 = vadd.f32 %v3529, 1.0
    %v3542 = vadd.f32 %v3531, 1.0
    %v3543 = vadd.f32 %v3533, 1.0
    %v3544 = vadd.f32 %v3535, 1.0
    %v3545 = vadd.f32 %v3537, 1.0
    %v3546 = vrcp.pop %v3538
    %v3547 = vmul.f32 1.0, %v3546
    %v3548 = vrcp.pop %v3539
    %v3549 = vmul.f32 1.0, %v3548
    %v3550 = vrcp.pop %v3540
    %v3551 = vmul.f32 1.0, %v3550
    %v3552 = vrcp.pop %v3541
    %v3553 = vmul.f32 1.0, %v3552
    %v3554 = vrcp.pop %v3542
    %v3555 = vmul.f32 1.0, %v3554
    %v3556 = vrcp.pop %v3543
    %v3557 = vmul.f32 1.0, %v3556
    %v3558 = vrcp.pop %v3544
    %v3559 = vmul.f32 1.0, %v3558
    %v3560 = vrcp.pop %v3545
    %v3561 = vmul.f32 1.0, %v3560
    %v3562 = vxor.u32 %v3483, 2147483648
    %v3563 = vxor.u32 %v3487, 2147483648
    %v3564 = vxor.u32 %v3491, 2147483648
    %v3565 = vxor.u32 %v3495, 2147483648
    %v3566 = vxor.u32 %v3499, 2147483648
    %v3567 = vxor.u32 %v3503, 2147483648
    %v3568 = vxor.u32 %v3507, 2147483648
    %v3569 = vxor.u32 %v3511, 2147483648
    %v3570 = vmul.f32 %v3562, 1.442695
    %v3571 = vpow.pop %v3570
    %v3572 = vmul.f32 %v3563, 1.442695
    %v3573 = vpow.pop %v3572
    %v3574 = vmul.f32 %v3564, 1.442695
    %v3575 = vpow.pop %v3574
    %v3576 = vmul.f32 %v3565, 1.442695
    %v3577 = vpow.pop %v3576
    %v3578 = vmul.f32 %v3566, 1.442695
    %v3579 = vpow.pop %v3578
    %v3580 = vmul.f32 %v3567, 1.442695
    %v3581 = vpow.pop %v3580
    %v3582 = vmul.f32 %v3568, 1.442695
    %v3583 = vpow.pop %v3582
    %v3584 = vmul.f32 %v3569, 1.442695
    %v3585 = vpow.pop %v3584
    %v3586 = vadd.f32 %v3571, 1.0
    %v3587 = vadd.f32 %v3573, 1.0
    %v3588 = vadd.f32 %v3575, 1.0
    %v3589 = vadd.f32 %v3577, 1.0
    %v3590 = vadd.f32 %v3579, 1.0
    %v3591 = vadd.f32 %v3581, 1.0
    %v3592 = vadd.f32 %v3583, 1.0
    %v3593 = vadd.f32 %v3585, 1.0
    %v3594 = vrcp.pop %v3586
    %v3595 = vmul.f32 1.0, %v3594
    %v3596 = vrcp.pop %v3587
    %v3597 = vmul.f32 1.0, %v3596
    %v3598 = vrcp.pop %v3588
    %v3599 = vmul.f32 1.0, %v3598
    %v3600 = vrcp.pop %v3589
    %v3601 = vmul.f32 1.0, %v3600
    %v3602 = vrcp.pop %v3590
    %v3603 = vmul.f32 1.0, %v3602
    %v3604 = vrcp.pop %v3591
    %v3605 = vmul.f32 1.0, %v3604
    %v3606 = vrcp.pop %v3592
    %v3607 = vmul.f32 1.0, %v3606
    %v3608 = vrcp.pop %v3593
    %v3609 = vmul.f32 1.0, %v3608
    %v3610 = vtanh.pop %v3484
    %v3611 = vtanh.pop %v3488
    %v3612 = vtanh.pop %v3492
    %v3613 = vtanh.pop %v3496
    %v3614 = vtanh.pop %v3500
    %v3615 = vtanh.pop %v3504
    %v3616 = vtanh.pop %v3508
    %v3617 = vtanh.pop %v3512
    %v3618 = vxor.u32 %v3485, 2147483648
    %v3619 = vxor.u32 %v3489, 2147483648
    %v3620 = vxor.u32 %v3493, 2147483648
    %v3621 = vxor.u32 %v3497, 2147483648
    %v3622 = vxor.u32 %v3501, 2147483648
    %v3623 = vxor.u32 %v3505, 2147483648
    %v3624 = vxor.u32 %v3509, 2147483648
    %v3625 = vxor.u32 %v3513, 2147483648
    %v3626 = vmul.f32 %v3618, 1.442695
    %v3627 = vpow.pop %v3626
    %v3628 = vmul.f32 %v3619, 1.442695
    %v3629 = vpow.pop %v3628
    %v3630 = vmul.f32 %v3620, 1.442695
    %v3631 = vpow.pop %v3630
    %v3632 = vmul.f32 %v3621, 1.442695
    %v3633 = vpow.pop %v3632
    %v3634 = vmul.f32 %v3622, 1.442695
    %v3635 = vpow.pop %v3634
    %v3636 = vmul.f32 %v3623, 1.442695
    %v3637 = vpow.pop %v3636
    %v3638 = vmul.f32 %v3624, 1.442695
    %v3639 = vpow.pop %v3638
    %v3640 = vmul.f32 %v3625, 1.442695
    %v3641 = vpow.pop %v3640
    %v3642 = vadd.f32 %v3627, 1.0
    %v3643 = vadd.f32 %v3629, 1.0
    %v3644 = vadd.f32 %v3631, 1.0
    %v3645 = vadd.f32 %v3633, 1.0
    %v3646 = vadd.f32 %v3635, 1.0
    %v3647 = vadd.f32 %v3637, 1.0
    %v3648 = vadd.f32 %v3639, 1.0
    %v3649 = vadd.f32 %v3641, 1.0
    %v3650 = vrcp.pop %v3642
    %v3651 = vmul.f32 1.0, %v3650
    %v3652 = vrcp.pop %v3643
    %v3653 = vmul.f32 1.0, %v3652
    %v3654 = vrcp.pop %v3644
    %v3655 = vmul.f32 1.0, %v3654
    %v3656 = vrcp.pop %v3645
    %v3657 = vmul.f32 1.0, %v3656
    %v3658 = vrcp.pop %v3646
    %v3659 = vmul.f32 1.0, %v3658
    %v3660 = vrcp.pop %v3647
    %v3661 = vmul.f32 1.0, %v3660
    %v3662 = vrcp.pop %v3648
    %v3663 = vmul.f32 1.0, %v3662
    %v3664 = vrcp.pop %v3649
    %v3665 = vmul.f32 1.0, %v3664
    %v3667 = vrot.slane %v3208, 3
    %v3668 = vrot.slane %v3208, 4
    %v3669 = vrot.slane %v3208, 5
    %v3670 = vrot.slane %v3208, 6
    %v3671 = vrot.slane %v3208, 7
    %v3672 = vrot.slane %v3208, 1
    %v3673 = vrot.slane %v3208, 2
    %v3682 = vmul.f32 %v3595, %v3667
    %v3683 = vmul.f32 %v3597, %v3668
    %v3684 = vmul.f32 %v3599, %v3669
    %v3685 = vmul.f32 %v3601, %v3670
    %v3686 = vmul.f32 %v3603, %v3671
    %v3687 = vmul.f32 %v3605, %v3208
    %v3688 = vmul.f32 %v3607, %v3672
    %v3689 = vmul.f32 %v3609, %v3673
    %v3690 = vmul.f32 %v3547, %v3610
    %v3691 = vmul.f32 %v3549, %v3611
    %v3692 = vmul.f32 %v3551, %v3612
    %v3693 = vmul.f32 %v3553, %v3613
    %v3694 = vmul.f32 %v3555, %v3614
    %v3695 = vmul.f32 %v3557, %v3615
    %v3696 = vmul.f32 %v3559, %v3616
    %v3697 = vmul.f32 %v3561, %v3617
    %v3698 = vadd.f32 %v3682, %v3690
    %v3699 = vadd.f32 %v3683, %v3691
    %v3700 = vadd.f32 %v3684, %v3692
    %v3701 = vadd.f32 %v3685, %v3693
    %v3702 = vadd.f32 %v3686, %v3694
    %v3703 = vadd.f32 %v3687, %v3695
    %v3704 = vadd.f32 %v3688, %v3696
    %v3705 = vadd.f32 %v3689, %v3697
    %v3706 = vtanh.pop %v3698
    %v3707 = vtanh.pop %v3699
    %v3708 = vtanh.pop %v3700
    %v3709 = vtanh.pop %v3701
    %v3710 = vtanh.pop %v3702
    %v3711 = vtanh.pop %v3703
    %v3712 = vtanh.pop %v3704
    %v3713 = vtanh.pop %v3705
    %v3714 = vmul.f32 %v3651, %v3706
    %v3715 = vmul.f32 %v3653, %v3707
    %v3716 = vmul.f32 %v3655, %v3708
    %v3717 = vmul.f32 %v3657, %v3709
    %v3718 = vmul.f32 %v3659, %v3710
    %v3719 = vmul.f32 %v3661, %v3711
    %v3720 = vmul.f32 %v3663, %v3712
    %v3721 = vmul.f32 %v3665, %v3713
    %vm3722 = vcmp.gt.s32.totalorder %v450, 5
    %v3723 = vsel %vm3722, 1, 0
    %3724 = vset.pattern.permute.xlu0 0
    %3725 = vperm.xlu0 %3724, %v3723
    %v3726 = vpop.permute.xlu0 %3725
    %vm3727 = vcmp.eq.s32.totalorder %v3726, 1
    %v3736 = vrot.slane %v3714, 5
    %v3737 = vrot.slane %v3715, 4
    %v3738 = vsel %vm896, %v3737, %v3736
    %v3739 = vrot.slane %v3716, 3
    %v3740 = vsel %vm899, %v3739, %v3738
    %v3741 = vrot.slane %v3717, 2
    %v3742 = vsel %vm902, %v3741, %v3740
    %v3743 = vrot.slane %v3718, 1
    %v3744 = vsel %vm905, %v3743, %v3742
    %v3745 = vsel %vm908, %v3719, %v3744
    %v3746 = vrot.slane %v3720, 7
    %v3747 = vsel %vm911, %v3746, %v3745
    %v3748 = vrot.slane %v3721, 6
    %v3749 = vsel %vm914, %v3748, %v3747
    %v3751 = vsel %vm3727, %v3749, %v3184
    %v3760 = vrot.slane %v3698, 5
    %v3761 = vrot.slane %v3699, 4
    %v3762 = vsel %vm896, %v3761, %v3760
    %v3763 = vrot.slane %v3700, 3
    %v3764 = vsel %vm899, %v3763, %v3762
    %v3765 = vrot.slane %v3701, 2
    %v3766 = vsel %vm902, %v3765, %v3764
    %v3767 = vrot.slane %v3702, 1
    %v3768 = vsel %vm905, %v3767, %v3766
    %v3769 = vsel %vm908, %v3703, %v3768
    %v3770 = vrot.slane %v3704, 7
    %v3771 = vsel %vm911, %v3770, %v3769
    %v3772 = vrot.slane %v3705, 6
    %v3773 = vsel %vm914, %v3772, %v3771
    %v3775 = vsel %vm3727, %v3773, %v3208
    %v3776 = vsel %vm3727, %v3749, 0.0
    %v3778 = vcombine.high %v3776, %v3776
    %v3780 = vunpack.c.l.s4 1966171168
    %v3781 = vunpack.c.0.s8 %v3780
    %v3782 = vlaneseq
    %v3783 = vshrl.u32 %v3782, 7
    %v3784 = vsub.s32 %v3781, %v3783
    %v3785 = vrot.slane %v3776, %v3784
    %v3787 = vunpack.c.l.s4 1966171168
    %v3788 = vunpack.c.0.s8 %v3787
    %v3789 = vlaneseq
    %v3790 = vshrl.u32 %v3789, 7
    %v3791 = vsub.s32 %v3788, %v3790
    %v3792 = vrot.slane %v3778, %v3791
    %v3793 = vcombine.high %v3785, %v3785
    %v3794 = vcombine.high %v3792, %v3792
    %v3796 = vunpack.c.l.s4 1966171168
    %v3797 = vunpack.c.0.s8 %v3796
    %v3798 = vlaneseq
    %v3799 = vshrl.u32 %v3798, 7
    %v3800 = vsub.s32 %v3797, %v3799
    %v3801 = vrot.slane %v3785, %v3800
    %v3803 = vunpack.c.l.s4 1966171168
    %v3804 = vunpack.c.0.s8 %v3803
    %v3805 = vlaneseq
    %v3806 = vshrl.u32 %v3805, 7
    %v3807 = vsub.s32 %v3804, %v3806
    %v3808 = vrot.slane %v3792, %v3807
    %v3810 = vunpack.c.l.s4 1966171168
    %v3811 = vunpack.c.0.s8 %v3810
    %v3812 = vlaneseq
    %v3813 = vshrl.u32 %v3812, 7
    %v3814 = vsub.s32 %v3811, %v3813
    %v3815 = vrot.slane %v3793, %v3814
    %v3817 = vunpack.c.l.s4 1966171168
    %v3818 = vunpack.c.0.s8 %v3817
    %v3819 = vlaneseq
    %v3820 = vshrl.u32 %v3819, 7
    %v3821 = vsub.s32 %v3818, %v3820
    %v3822 = vrot.slane %v3794, %v3821
    %v3823 = vcombine.high %v3801, %v3801
    %v3824 = vcombine.high %v3808, %v3808
    %v3825 = vcombine.high %v3815, %v3815
    %v3826 = vcombine.high %v3822, %v3822
    %3835 = vst [vmem:[#allocation8 + $0x5] sm:$0x1] %v3801
    %3836 = vst [vmem:[#allocation8 + $0xd] sm:$0x1] %v3815
    %3837 = vst [vmem:[#allocation8 + $0x15] sm:$0x1] %v3823
    %3838 = vst [vmem:[#allocation8 + $0x1d] sm:$0x1] %v3825
    %3839 = vst [vmem:[#allocation8 + $0x25] sm:$0x1] %v3808
    %3840 = vst [vmem:[#allocation8 + $0x2d] sm:$0x1] %v3822
    %3841 = vst [vmem:[#allocation8 + $0x35] sm:$0x1] %v3824
    %3842 = vst [vmem:[#allocation8 + $0x3d] sm:$0x1] %v3826
    %3843 = vmatprep.subr.mxu0 %v387
    %3844 = vmatpush1.msra.mxu0 %v386
    %3845 = vmatprep.subr.mxu0 %v391
    %3846 = vmatpush1.msra.mxu0 %v390
    %3847 = vmatprep.subr.mxu0 %v395
    %3848 = vmatpush1.msra.mxu0 %v394
    %3849 = vmatprep.subr.mxu0 %v399
    %3850 = vmatpush1.msra.mxu0 %v398
    %3851 = vmatprep.subr.mxu0 %v403
    %3852 = vmatpush1.msra.mxu0 %v402
    %3853 = vmatprep.subr.mxu0 %v407
    %3854 = vmatpush1.msra.mxu0 %v406
    %3855 = vmatprep.subr.mxu0 %v411
    %3856 = vmatpush1.msra.mxu0 %v410
    %3857 = vmatprep.subr.mxu0 %v415
    %3858 = vmatpush1.msra.mxu0 %v414
    %3859 = vmatprep.subr.mxu0 %v419
    %3860 = vmatpush1.msra.mxu0 %v418
    %3861 = vmatprep.subr.mxu0 %v423
    %3862 = vmatpush1.msra.mxu0 %v422
    %3863 = vmatprep.subr.mxu0 %v427
    %3864 = vmatpush1.msra.mxu0 %v426
    %3865 = vmatprep.subr.mxu0 %v431
    %3866 = vmatpush1.msra.mxu0 %v430
    %3867 = vmatprep.subr.mxu0 %v435
    %3868 = vmatpush1.msra.mxu0 %v434
    %3869 = vmatprep.subr.mxu0 %v439
    %3870 = vmatpush1.msra.mxu0 %v438
    %3871 = vmatprep.subr.mxu0 %v443
    %3872 = vmatpush1.msra.mxu0 %v442
    %3873 = vmatprep.subr.mxu0 %v447
    %3874 = vmatpush1.msra.mxu0 %v446
    %3875 = vmatprep.subr.mxu0 0.0
    %3876 = vmatpush1.msra.mxu0 0.0
    %3877 = vmatprep.subr.mxu0 0.0
    %3878 = vmatpush1.msra.mxu0 0.0
    %3879 = vmatprep.subr.mxu0 0.0
    %3880 = vmatpush1.msra.mxu0 0.0
    %3881 = vmatprep.subr.mxu0 0.0
    %3882 = vmatpush1.msra.mxu0 0.0
    %3883 = vmatprep.subr.mxu0 0.0
    %3884 = vmatpush1.msra.mxu0 0.0
    %3885 = vmatprep.subr.mxu0 0.0
    %3886 = vmatpush1.msra.mxu0 0.0
    %3887 = vmatprep.subr.mxu0 0.0
    %3888 = vmatpush1.msra.mxu0 0.0
    %3889 = vmatprep.subr.mxu0 0.0
    %3890 = vmatpush1.msra.mxu0 0.0
    %3891 = vmatprep.subr.mxu0 0.0
    %3892 = vmatpush1.msra.mxu0 0.0
    %3893 = vmatprep.subr.mxu0 0.0
    %3894 = vmatpush1.msra.mxu0 0.0
    %3895 = vmatprep.subr.mxu0 0.0
    %3896 = vmatpush1.msra.mxu0 0.0
    %3897 = vmatprep.subr.mxu0 0.0
    %3898 = vmatpush1.msra.mxu0 0.0
    %3899 = vmatprep.subr.mxu0 0.0
    %3900 = vmatpush1.msra.mxu0 0.0
    %3901 = vmatprep.subr.mxu0 0.0
    %3902 = vmatpush1.msra.mxu0 0.0
    %3903 = vmatprep.subr.mxu0 0.0
    %3904 = vmatpush1.msra.mxu0 0.0
    %3905 = vmatprep.subr.mxu0 0.0
    %3906 = vmatpush1.msra.mxu0 0.0
    %3907 = vmatprep.mubr.f32.mxu0 0.0
    %3908 = vmatmul.mubr.f32.gmra.mrb[0].mxu0 %v3751
    %v3909 = vpop.f32.mrb[0].mxu0
    %v3910 = vadd.f32 0.0, %v3909
    %v3911 = vpop.f32.mrb[0].mxu0
    %v3912 = vadd.f32 0.0, %v3911
    %3913 = vdwg.mxu0
    %3914 = vmatprep.subr.mxu0 %v389
    %3915 = vmatpush1.msra.mxu0 %v388
    %3916 = vmatprep.subr.mxu0 %v393
    %3917 = vmatpush1.msra.mxu0 %v392
    %3918 = vmatprep.subr.mxu0 %v397
    %3919 = vmatpush1.msra.mxu0 %v396
    %3920 = vmatprep.subr.mxu0 %v401
    %3921 = vmatpush1.msra.mxu0 %v400
    %3922 = vmatprep.subr.mxu0 %v405
    %3923 = vmatpush1.msra.mxu0 %v404
    %3924 = vmatprep.subr.mxu0 %v409
    %3925 = vmatpush1.msra.mxu0 %v408
    %3926 = vmatprep.subr.mxu0 %v413
    %3927 = vmatpush1.msra.mxu0 %v412
    %3928 = vmatprep.subr.mxu0 %v417
    %3929 = vmatpush1.msra.mxu0 %v416
    %3930 = vmatprep.subr.mxu0 %v421
    %3931 = vmatpush1.msra.mxu0 %v420
    %3932 = vmatprep.subr.mxu0 %v425
    %3933 = vmatpush1.msra.mxu0 %v424
    %3934 = vmatprep.subr.mxu0 %v429
    %3935 = vmatpush1.msra.mxu0 %v428
    %3936 = vmatprep.subr.mxu0 %v433
    %3937 = vmatpush1.msra.mxu0 %v432
    %3938 = vmatprep.subr.mxu0 %v437
    %3939 = vmatpush1.msra.mxu0 %v436
    %3940 = vmatprep.subr.mxu0 %v441
    %3941 = vmatpush1.msra.mxu0 %v440
    %3942 = vmatprep.subr.mxu0 %v445
    %3943 = vmatpush1.msra.mxu0 %v444
    %3944 = vmatprep.subr.mxu0 %v449
    %3945 = vmatpush1.msra.mxu0 %v448
    %3946 = vmatprep.subr.mxu0 0.0
    %3947 = vmatpush1.msra.mxu0 0.0
    %3948 = vmatprep.subr.mxu0 0.0
    %3949 = vmatpush1.msra.mxu0 0.0
    %3950 = vmatprep.subr.mxu0 0.0
    %3951 = vmatpush1.msra.mxu0 0.0
    %3952 = vmatprep.subr.mxu0 0.0
    %3953 = vmatpush1.msra.mxu0 0.0
    %3954 = vmatprep.subr.mxu0 0.0
    %3955 = vmatpush1.msra.mxu0 0.0
    %3956 = vmatprep.subr.mxu0 0.0
    %3957 = vmatpush1.msra.mxu0 0.0
    %3958 = vmatprep.subr.mxu0 0.0
    %3959 = vmatpush1.msra.mxu0 0.0
    %3960 = vmatprep.subr.mxu0 0.0
    %3961 = vmatpush1.msra.mxu0 0.0
    %3962 = vmatprep.subr.mxu0 0.0
    %3963 = vmatpush1.msra.mxu0 0.0
    %3964 = vmatprep.subr.mxu0 0.0
    %3965 = vmatpush1.msra.mxu0 0.0
    %3966 = vmatprep.subr.mxu0 0.0
    %3967 = vmatpush1.msra.mxu0 0.0
    %3968 = vmatprep.subr.mxu0 0.0
    %3969 = vmatpush1.msra.mxu0 0.0
    %3970 = vmatprep.subr.mxu0 0.0
    %3971 = vmatpush1.msra.mxu0 0.0
    %3972 = vmatprep.subr.mxu0 0.0
    %3973 = vmatpush1.msra.mxu0 0.0
    %3974 = vmatprep.subr.mxu0 0.0
    %3975 = vmatpush1.msra.mxu0 0.0
    %3976 = vmatprep.subr.mxu0 0.0
    %3977 = vmatpush1.msra.mxu0 0.0
    %3978 = vmatprep.mubr.f32.mxu0 0.0
    %3979 = vmatmul.mubr.f32.gmra.mrb[0].mxu0 %v3751
    %v3980 = vpop.f32.mrb[0].mxu0
    %v3981 = vadd.f32 0.0, %v3980
    %v3982 = vpop.f32.mrb[0].mxu0
    %v3983 = vadd.f32 0.0, %v3982
    %3984 = vdwg.mxu0
    %v3989 = vrot.slane %v3910, 2
    %v3990 = vrot.slane %v3912, 2
    %v3991 = vrot.slane %v3981, 2
    %v3992 = vrot.slane %v3983, 2
    %v3993 = vrot.slane %v3910, 3
    %v3994 = vrot.slane %v3912, 3
    %v3995 = vrot.slane %v3981, 3
    %v3996 = vrot.slane %v3983, 3
    %v3997 = vrot.slane %v3910, 4
    %v3998 = vrot.slane %v3912, 4
    %v3999 = vrot.slane %v3981, 4
    %v4000 = vrot.slane %v3983, 4
    %v4001 = vrot.slane %v3910, 5
    %v4002 = vrot.slane %v3912, 5
    %v4003 = vrot.slane %v3981, 5
    %v4004 = vrot.slane %v3983, 5
    %v4005 = vrot.slane %v3910, 6
    %v4006 = vrot.slane %v3912, 6
    %v4007 = vrot.slane %v3981, 6
    %v4008 = vrot.slane %v3983, 6
    %v4009 = vrot.slane %v3910, 7
    %v4010 = vrot.slane %v3912, 7
    %v4011 = vrot.slane %v3981, 7
    %v4012 = vrot.slane %v3983, 7
    %v4013 = vrot.slane %v3910, 1
    %v4014 = vrot.slane %v3912, 1
    %v4015 = vrot.slane %v3981, 1
    %v4016 = vrot.slane %v3983, 1
    %v4049 = vadd.f32 %v227, %v3989
    %v4050 = vadd.f32 %v229, %v3990
    %v4051 = vadd.f32 %v340, %v3991
    %v4052 = vadd.f32 %v342, %v3992
    %v4053 = vadd.f32 %v233, %v3993
    %v4054 = vadd.f32 %v235, %v3994
    %v4055 = vadd.f32 %v346, %v3995
    %v4056 = vadd.f32 %v348, %v3996
    %v4057 = vadd.f32 %v239, %v3997
    %v4058 = vadd.f32 %v241, %v3998
    %v4059 = vadd.f32 %v352, %v3999
    %v4060 = vadd.f32 %v354, %v4000
    %v4061 = vadd.f32 %v245, %v4001
    %v4062 = vadd.f32 %v247, %v4002
    %v4063 = vadd.f32 %v358, %v4003
    %v4064 = vadd.f32 %v360, %v4004
    %v4065 = vadd.f32 %v251, %v4005
    %v4066 = vadd.f32 %v253, %v4006
    %v4067 = vadd.f32 %v364, %v4007
    %v4068 = vadd.f32 %v366, %v4008
    %v4069 = vadd.f32 %v257, %v4009
    %v4070 = vadd.f32 %v259, %v4010
    %v4071 = vadd.f32 %v370, %v4011
    %v4072 = vadd.f32 %v372, %v4012
    %v4073 = vadd.f32 %v263, %v3910
    %v4074 = vadd.f32 %v265, %v3912
    %v4075 = vadd.f32 %v376, %v3981
    %v4076 = vadd.f32 %v378, %v3983
    %v4077 = vadd.f32 %v269, %v4013
    %v4078 = vadd.f32 %v271, %v4014
    %v4079 = vadd.f32 %v382, %v4015
    %v4080 = vadd.f32 %v384, %v4016
    %v4081 = vxor.u32 %v4049, 2147483648
    %v4082 = vxor.u32 %v4053, 2147483648
    %v4083 = vxor.u32 %v4057, 2147483648
    %v4084 = vxor.u32 %v4061, 2147483648
    %v4085 = vxor.u32 %v4065, 2147483648
    %v4086 = vxor.u32 %v4069, 2147483648
    %v4087 = vxor.u32 %v4073, 2147483648
    %v4088 = vxor.u32 %v4077, 2147483648
    %v4089 = vmul.f32 %v4081, 1.442695
    %v4090 = vpow.pop %v4089
    %v4091 = vmul.f32 %v4082, 1.442695
    %v4092 = vpow.pop %v4091
    %v4093 = vmul.f32 %v4083, 1.442695
    %v4094 = vpow.pop %v4093
    %v4095 = vmul.f32 %v4084, 1.442695
    %v4096 = vpow.pop %v4095
    %v4097 = vmul.f32 %v4085, 1.442695
    %v4098 = vpow.pop %v4097
    %v4099 = vmul.f32 %v4086, 1.442695
    %v4100 = vpow.pop %v4099
    %v4101 = vmul.f32 %v4087, 1.442695
    %v4102 = vpow.pop %v4101
    %v4103 = vmul.f32 %v4088, 1.442695
    %v4104 = vpow.pop %v4103
    %v4105 = vadd.f32 %v4090, 1.0
    %v4106 = vadd.f32 %v4092, 1.0
    %v4107 = vadd.f32 %v4094, 1.0
    %v4108 = vadd.f32 %v4096, 1.0
    %v4109 = vadd.f32 %v4098, 1.0
    %v4110 = vadd.f32 %v4100, 1.0
    %v4111 = vadd.f32 %v4102, 1.0
    %v4112 = vadd.f32 %v4104, 1.0
    %v4113 = vrcp.pop %v4105
    %v4114 = vmul.f32 1.0, %v4113
    %v4115 = vrcp.pop %v4106
    %v4116 = vmul.f32 1.0, %v4115
    %v4117 = vrcp.pop %v4107
    %v4118 = vmul.f32 1.0, %v4117
    %v4119 = vrcp.pop %v4108
    %v4120 = vmul.f32 1.0, %v4119
    %v4121 = vrcp.pop %v4109
    %v4122 = vmul.f32 1.0, %v4121
    %v4123 = vrcp.pop %v4110
    %v4124 = vmul.f32 1.0, %v4123
    %v4125 = vrcp.pop %v4111
    %v4126 = vmul.f32 1.0, %v4125
    %v4127 = vrcp.pop %v4112
    %v4128 = vmul.f32 1.0, %v4127
    %v4129 = vxor.u32 %v4050, 2147483648
    %v4130 = vxor.u32 %v4054, 2147483648
    %v4131 = vxor.u32 %v4058, 2147483648
    %v4132 = vxor.u32 %v4062, 2147483648
    %v4133 = vxor.u32 %v4066, 2147483648
    %v4134 = vxor.u32 %v4070, 2147483648
    %v4135 = vxor.u32 %v4074, 2147483648
    %v4136 = vxor.u32 %v4078, 2147483648
    %v4137 = vmul.f32 %v4129, 1.442695
    %v4138 = vpow.pop %v4137
    %v4139 = vmul.f32 %v4130, 1.442695
    %v4140 = vpow.pop %v4139
    %v4141 = vmul.f32 %v4131, 1.442695
    %v4142 = vpow.pop %v4141
    %v4143 = vmul.f32 %v4132, 1.442695
    %v4144 = vpow.pop %v4143
    %v4145 = vmul.f32 %v4133, 1.442695
    %v4146 = vpow.pop %v4145
    %v4147 = vmul.f32 %v4134, 1.442695
    %v4148 = vpow.pop %v4147
    %v4149 = vmul.f32 %v4135, 1.442695
    %v4150 = vpow.pop %v4149
    %v4151 = vmul.f32 %v4136, 1.442695
    %v4152 = vpow.pop %v4151
    %v4153 = vadd.f32 %v4138, 1.0
    %v4154 = vadd.f32 %v4140, 1.0
    %v4155 = vadd.f32 %v4142, 1.0
    %v4156 = vadd.f32 %v4144, 1.0
    %v4157 = vadd.f32 %v4146, 1.0
    %v4158 = vadd.f32 %v4148, 1.0
    %v4159 = vadd.f32 %v4150, 1.0
    %v4160 = vadd.f32 %v4152, 1.0
    %v4161 = vrcp.pop %v4153
    %v4162 = vmul.f32 1.0, %v4161
    %v4163 = vrcp.pop %v4154
    %v4164 = vmul.f32 1.0, %v4163
    %v4165 = vrcp.pop %v4155
    %v4166 = vmul.f32 1.0, %v4165
    %v4167 = vrcp.pop %v4156
    %v4168 = vmul.f32 1.0, %v4167
    %v4169 = vrcp.pop %v4157
    %v4170 = vmul.f32 1.0, %v4169
    %v4171 = vrcp.pop %v4158
    %v4172 = vmul.f32 1.0, %v4171
    %v4173 = vrcp.pop %v4159
    %v4174 = vmul.f32 1.0, %v4173
    %v4175 = vrcp.pop %v4160
    %v4176 = vmul.f32 1.0, %v4175
    %v4177 = vtanh.pop %v4051
    %v4178 = vtanh.pop %v4055
    %v4179 = vtanh.pop %v4059
    %v4180 = vtanh.pop %v4063
    %v4181 = vtanh.pop %v4067
    %v4182 = vtanh.pop %v4071
    %v4183 = vtanh.pop %v4075
    %v4184 = vtanh.pop %v4079
    %v4185 = vxor.u32 %v4052, 2147483648
    %v4186 = vxor.u32 %v4056, 2147483648
    %v4187 = vxor.u32 %v4060, 2147483648
    %v4188 = vxor.u32 %v4064, 2147483648
    %v4189 = vxor.u32 %v4068, 2147483648
    %v4190 = vxor.u32 %v4072, 2147483648
    %v4191 = vxor.u32 %v4076, 2147483648
    %v4192 = vxor.u32 %v4080, 2147483648
    %v4193 = vmul.f32 %v4185, 1.442695
    %v4194 = vpow.pop %v4193
    %v4195 = vmul.f32 %v4186, 1.442695
    %v4196 = vpow.pop %v4195
    %v4197 = vmul.f32 %v4187, 1.442695
    %v4198 = vpow.pop %v4197
    %v4199 = vmul.f32 %v4188, 1.442695
    %v4200 = vpow.pop %v4199
    %v4201 = vmul.f32 %v4189, 1.442695
    %v4202 = vpow.pop %v4201
    %v4203 = vmul.f32 %v4190, 1.442695
    %v4204 = vpow.pop %v4203
    %v4205 = vmul.f32 %v4191, 1.442695
    %v4206 = vpow.pop %v4205
    %v4207 = vmul.f32 %v4192, 1.442695
    %v4208 = vpow.pop %v4207
    %v4209 = vadd.f32 %v4194, 1.0
    %v4210 = vadd.f32 %v4196, 1.0
    %v4211 = vadd.f32 %v4198, 1.0
    %v4212 = vadd.f32 %v4200, 1.0
    %v4213 = vadd.f32 %v4202, 1.0
    %v4214 = vadd.f32 %v4204, 1.0
    %v4215 = vadd.f32 %v4206, 1.0
    %v4216 = vadd.f32 %v4208, 1.0
    %v4217 = vrcp.pop %v4209
    %v4218 = vmul.f32 1.0, %v4217
    %v4219 = vrcp.pop %v4210
    %v4220 = vmul.f32 1.0, %v4219
    %v4221 = vrcp.pop %v4211
    %v4222 = vmul.f32 1.0, %v4221
    %v4223 = vrcp.pop %v4212
    %v4224 = vmul.f32 1.0, %v4223
    %v4225 = vrcp.pop %v4213
    %v4226 = vmul.f32 1.0, %v4225
    %v4227 = vrcp.pop %v4214
    %v4228 = vmul.f32 1.0, %v4227
    %v4229 = vrcp.pop %v4215
    %v4230 = vmul.f32 1.0, %v4229
    %v4231 = vrcp.pop %v4216
    %v4232 = vmul.f32 1.0, %v4231
    %v4234 = vrot.slane %v3775, 2
    %v4235 = vrot.slane %v3775, 3
    %v4236 = vrot.slane %v3775, 4
    %v4237 = vrot.slane %v3775, 5
    %v4238 = vrot.slane %v3775, 6
    %v4239 = vrot.slane %v3775, 7
    %v4240 = vrot.slane %v3775, 1
    %v4249 = vmul.f32 %v4162, %v4234
    %v4250 = vmul.f32 %v4164, %v4235
    %v4251 = vmul.f32 %v4166, %v4236
    %v4252 = vmul.f32 %v4168, %v4237
    %v4253 = vmul.f32 %v4170, %v4238
    %v4254 = vmul.f32 %v4172, %v4239
    %v4255 = vmul.f32 %v4174, %v3775
    %v4256 = vmul.f32 %v4176, %v4240
    %v4257 = vmul.f32 %v4114, %v4177
    %v4258 = vmul.f32 %v4116, %v4178
    %v4259 = vmul.f32 %v4118, %v4179
    %v4260 = vmul.f32 %v4120, %v4180
    %v4261 = vmul.f32 %v4122, %v4181
    %v4262 = vmul.f32 %v4124, %v4182
    %v4263 = vmul.f32 %v4126, %v4183
    %v4264 = vmul.f32 %v4128, %v4184
    %v4265 = vadd.f32 %v4249, %v4257
    %v4266 = vadd.f32 %v4250, %v4258
    %v4267 = vadd.f32 %v4251, %v4259
    %v4268 = vadd.f32 %v4252, %v4260
    %v4269 = vadd.f32 %v4253, %v4261
    %v4270 = vadd.f32 %v4254, %v4262
    %v4271 = vadd.f32 %v4255, %v4263
    %v4272 = vadd.f32 %v4256, %v4264
    %v4273 = vtanh.pop %v4265
    %v4274 = vtanh.pop %v4266
    %v4275 = vtanh.pop %v4267
    %v4276 = vtanh.pop %v4268
    %v4277 = vtanh.pop %v4269
    %v4278 = vtanh.pop %v4270
    %v4279 = vtanh.pop %v4271
    %v4280 = vtanh.pop %v4272
    %v4281 = vmul.f32 %v4218, %v4273
    %v4282 = vmul.f32 %v4220, %v4274
    %v4283 = vmul.f32 %v4222, %v4275
    %v4284 = vmul.f32 %v4224, %v4276
    %v4285 = vmul.f32 %v4226, %v4277
    %v4286 = vmul.f32 %v4228, %v4278
    %v4287 = vmul.f32 %v4230, %v4279
    %v4288 = vmul.f32 %v4232, %v4280
    %vm4289 = vcmp.gt.s32.totalorder %v450, 6
    %v4290 = vsel %vm4289, 1, 0
    %4291 = vset.pattern.permute.xlu0 0
    %4292 = vperm.xlu0 %4291, %v4290
    %v4293 = vpop.permute.xlu0 %4292
    %vm4294 = vcmp.eq.s32.totalorder %v4293, 1
    %v4303 = vrot.slane %v4281, 6
    %v4304 = vrot.slane %v4282, 5
    %v4305 = vsel %vm896, %v4304, %v4303
    %v4306 = vrot.slane %v4283, 4
    %v4307 = vsel %vm899, %v4306, %v4305
    %v4308 = vrot.slane %v4284, 3
    %v4309 = vsel %vm902, %v4308, %v4307
    %v4310 = vrot.slane %v4285, 2
    %v4311 = vsel %vm905, %v4310, %v4309
    %v4312 = vrot.slane %v4286, 1
    %v4313 = vsel %vm908, %v4312, %v4311
    %v4314 = vsel %vm911, %v4287, %v4313
    %v4315 = vrot.slane %v4288, 7
    %v4316 = vsel %vm914, %v4315, %v4314
    %v4318 = vsel %vm4294, %v4316, %v3751
    %v4327 = vrot.slane %v4265, 6
    %v4328 = vrot.slane %v4266, 5
    %v4329 = vsel %vm896, %v4328, %v4327
    %v4330 = vrot.slane %v4267, 4
    %v4331 = vsel %vm899, %v4330, %v4329
    %v4332 = vrot.slane %v4268, 3
    %v4333 = vsel %vm902, %v4332, %v4331
    %v4334 = vrot.slane %v4269, 2
    %v4335 = vsel %vm905, %v4334, %v4333
    %v4336 = vrot.slane %v4270, 1
    %v4337 = vsel %vm908, %v4336, %v4335
    %v4338 = vsel %vm911, %v4271, %v4337
    %v4339 = vrot.slane %v4272, 7
    %v4340 = vsel %vm914, %v4339, %v4338
    %v4342 = vsel %vm4294, %v4340, %v3775
    %v4343 = vsel %vm4294, %v4316, 0.0
    %v4345 = vcombine.high %v4343, %v4343
    %v4347 = vunpack.c.l.s4 1966171168
    %v4348 = vunpack.c.0.s8 %v4347
    %v4349 = vlaneseq
    %v4350 = vshrl.u32 %v4349, 7
    %v4351 = vsub.s32 %v4348, %v4350
    %v4352 = vrot.slane %v4343, %v4351
    %v4354 = vunpack.c.l.s4 1966171168
    %v4355 = vunpack.c.0.s8 %v4354
    %v4356 = vlaneseq
    %v4357 = vshrl.u32 %v4356, 7
    %v4358 = vsub.s32 %v4355, %v4357
    %v4359 = vrot.slane %v4345, %v4358
    %v4360 = vcombine.high %v4352, %v4352
    %v4361 = vcombine.high %v4359, %v4359
    %v4363 = vunpack.c.l.s4 1966171168
    %v4364 = vunpack.c.0.s8 %v4363
    %v4365 = vlaneseq
    %v4366 = vshrl.u32 %v4365, 7
    %v4367 = vsub.s32 %v4364, %v4366
    %v4368 = vrot.slane %v4352, %v4367
    %v4370 = vunpack.c.l.s4 1966171168
    %v4371 = vunpack.c.0.s8 %v4370
    %v4372 = vlaneseq
    %v4373 = vshrl.u32 %v4372, 7
    %v4374 = vsub.s32 %v4371, %v4373
    %v4375 = vrot.slane %v4359, %v4374
    %v4377 = vunpack.c.l.s4 1966171168
    %v4378 = vunpack.c.0.s8 %v4377
    %v4379 = vlaneseq
    %v4380 = vshrl.u32 %v4379, 7
    %v4381 = vsub.s32 %v4378, %v4380
    %v4382 = vrot.slane %v4360, %v4381
    %v4384 = vunpack.c.l.s4 1966171168
    %v4385 = vunpack.c.0.s8 %v4384
    %v4386 = vlaneseq
    %v4387 = vshrl.u32 %v4386, 7
    %v4388 = vsub.s32 %v4385, %v4387
    %v4389 = vrot.slane %v4361, %v4388
    %v4390 = vcombine.high %v4368, %v4368
    %v4391 = vcombine.high %v4375, %v4375
    %v4392 = vcombine.high %v4382, %v4382
    %v4393 = vcombine.high %v4389, %v4389
    %4402 = vst [vmem:[#allocation8 + $0x6] sm:$0x1] %v4368
    %4403 = vst [vmem:[#allocation8 + $0xe] sm:$0x1] %v4382
    %4404 = vst [vmem:[#allocation8 + $0x16] sm:$0x1] %v4390
    %4405 = vst [vmem:[#allocation8 + $0x1e] sm:$0x1] %v4392
    %4406 = vst [vmem:[#allocation8 + $0x26] sm:$0x1] %v4375
    %4407 = vst [vmem:[#allocation8 + $0x2e] sm:$0x1] %v4389
    %4408 = vst [vmem:[#allocation8 + $0x36] sm:$0x1] %v4391
    %4409 = vst [vmem:[#allocation8 + $0x3e] sm:$0x1] %v4393
    %4410 = vmatprep.subr.mxu0 %v387
    %4411 = vmatpush1.msra.mxu0 %v386
    %4412 = vmatprep.subr.mxu0 %v391
    %4413 = vmatpush1.msra.mxu0 %v390
    %4414 = vmatprep.subr.mxu0 %v395
    %4415 = vmatpush1.msra.mxu0 %v394
    %4416 = vmatprep.subr.mxu0 %v399
    %4417 = vmatpush1.msra.mxu0 %v398
    %4418 = vmatprep.subr.mxu0 %v403
    %4419 = vmatpush1.msra.mxu0 %v402
    %4420 = vmatprep.subr.mxu0 %v407
    %4421 = vmatpush1.msra.mxu0 %v406
    %4422 = vmatprep.subr.mxu0 %v411
    %4423 = vmatpush1.msra.mxu0 %v410
    %4424 = vmatprep.subr.mxu0 %v415
    %4425 = vmatpush1.msra.mxu0 %v414
    %4426 = vmatprep.subr.mxu0 %v419
    %4427 = vmatpush1.msra.mxu0 %v418
    %4428 = vmatprep.subr.mxu0 %v423
    %4429 = vmatpush1.msra.mxu0 %v422
    %4430 = vmatprep.subr.mxu0 %v427
    %4431 = vmatpush1.msra.mxu0 %v426
    %4432 = vmatprep.subr.mxu0 %v431
    %4433 = vmatpush1.msra.mxu0 %v430
    %4434 = vmatprep.subr.mxu0 %v435
    %4435 = vmatpush1.msra.mxu0 %v434
    %4436 = vmatprep.subr.mxu0 %v439
    %4437 = vmatpush1.msra.mxu0 %v438
    %4438 = vmatprep.subr.mxu0 %v443
    %4439 = vmatpush1.msra.mxu0 %v442
    %4440 = vmatprep.subr.mxu0 %v447
    %4441 = vmatpush1.msra.mxu0 %v446
    %4442 = vmatprep.subr.mxu0 0.0
    %4443 = vmatpush1.msra.mxu0 0.0
    %4444 = vmatprep.subr.mxu0 0.0
    %4445 = vmatpush1.msra.mxu0 0.0
    %4446 = vmatprep.subr.mxu0 0.0
    %4447 = vmatpush1.msra.mxu0 0.0
    %4448 = vmatprep.subr.mxu0 0.0
    %4449 = vmatpush1.msra.mxu0 0.0
    %4450 = vmatprep.subr.mxu0 0.0
    %4451 = vmatpush1.msra.mxu0 0.0
    %4452 = vmatprep.subr.mxu0 0.0
    %4453 = vmatpush1.msra.mxu0 0.0
    %4454 = vmatprep.subr.mxu0 0.0
    %4455 = vmatpush1.msra.mxu0 0.0
    %4456 = vmatprep.subr.mxu0 0.0
    %4457 = vmatpush1.msra.mxu0 0.0
    %4458 = vmatprep.subr.mxu0 0.0
    %4459 = vmatpush1.msra.mxu0 0.0
    %4460 = vmatprep.subr.mxu0 0.0
    %4461 = vmatpush1.msra.mxu0 0.0
    %4462 = vmatprep.subr.mxu0 0.0
    %4463 = vmatpush1.msra.mxu0 0.0
    %4464 = vmatprep.subr.mxu0 0.0
    %4465 = vmatpush1.msra.mxu0 0.0
    %4466 = vmatprep.subr.mxu0 0.0
    %4467 = vmatpush1.msra.mxu0 0.0
    %4468 = vmatprep.subr.mxu0 0.0
    %4469 = vmatpush1.msra.mxu0 0.0
    %4470 = vmatprep.subr.mxu0 0.0
    %4471 = vmatpush1.msra.mxu0 0.0
    %4472 = vmatprep.subr.mxu0 0.0
    %4473 = vmatpush1.msra.mxu0 0.0
    %4474 = vmatprep.mubr.f32.mxu0 0.0
    %4475 = vmatmul.mubr.f32.gmra.mrb[0].mxu0 %v4318
    %v4476 = vpop.f32.mrb[0].mxu0
    %v4477 = vadd.f32 0.0, %v4476
    %v4478 = vpop.f32.mrb[0].mxu0
    %v4479 = vadd.f32 0.0, %v4478
    %4480 = vdwg.mxu0
    %4481 = vmatprep.subr.mxu0 %v389
    %4482 = vmatpush1.msra.mxu0 %v388
    %4483 = vmatprep.subr.mxu0 %v393
    %4484 = vmatpush1.msra.mxu0 %v392
    %4485 = vmatprep.subr.mxu0 %v397
    %4486 = vmatpush1.msra.mxu0 %v396
    %4487 = vmatprep.subr.mxu0 %v401
    %4488 = vmatpush1.msra.mxu0 %v400
    %4489 = vmatprep.subr.mxu0 %v405
    %4490 = vmatpush1.msra.mxu0 %v404
    %4491 = vmatprep.subr.mxu0 %v409
    %4492 = vmatpush1.msra.mxu0 %v408
    %4493 = vmatprep.subr.mxu0 %v413
    %4494 = vmatpush1.msra.mxu0 %v412
    %4495 = vmatprep.subr.mxu0 %v417
    %4496 = vmatpush1.msra.mxu0 %v416
    %4497 = vmatprep.subr.mxu0 %v421
    %4498 = vmatpush1.msra.mxu0 %v420
    %4499 = vmatprep.subr.mxu0 %v425
    %4500 = vmatpush1.msra.mxu0 %v424
    %4501 = vmatprep.subr.mxu0 %v429
    %4502 = vmatpush1.msra.mxu0 %v428
    %4503 = vmatprep.subr.mxu0 %v433
    %4504 = vmatpush1.msra.mxu0 %v432
    %4505 = vmatprep.subr.mxu0 %v437
    %4506 = vmatpush1.msra.mxu0 %v436
    %4507 = vmatprep.subr.mxu0 %v441
    %4508 = vmatpush1.msra.mxu0 %v440
    %4509 = vmatprep.subr.mxu0 %v445
    %4510 = vmatpush1.msra.mxu0 %v444
    %4511 = vmatprep.subr.mxu0 %v449
    %4512 = vmatpush1.msra.mxu0 %v448
    %4513 = vmatprep.subr.mxu0 0.0
    %4514 = vmatpush1.msra.mxu0 0.0
    %4515 = vmatprep.subr.mxu0 0.0
    %4516 = vmatpush1.msra.mxu0 0.0
    %4517 = vmatprep.subr.mxu0 0.0
    %4518 = vmatpush1.msra.mxu0 0.0
    %4519 = vmatprep.subr.mxu0 0.0
    %4520 = vmatpush1.msra.mxu0 0.0
    %4521 = vmatprep.subr.mxu0 0.0
    %4522 = vmatpush1.msra.mxu0 0.0
    %4523 = vmatprep.subr.mxu0 0.0
    %4524 = vmatpush1.msra.mxu0 0.0
    %4525 = vmatprep.subr.mxu0 0.0
    %4526 = vmatpush1.msra.mxu0 0.0
    %4527 = vmatprep.subr.mxu0 0.0
    %4528 = vmatpush1.msra.mxu0 0.0
    %4529 = vmatprep.subr.mxu0 0.0
    %4530 = vmatpush1.msra.mxu0 0.0
    %4531 = vmatprep.subr.mxu0 0.0
    %4532 = vmatpush1.msra.mxu0 0.0
    %4533 = vmatprep.subr.mxu0 0.0
    %4534 = vmatpush1.msra.mxu0 0.0
    %4535 = vmatprep.subr.mxu0 0.0
    %4536 = vmatpush1.msra.mxu0 0.0
    %4537 = vmatprep.subr.mxu0 0.0
    %4538 = vmatpush1.msra.mxu0 0.0
    %4539 = vmatprep.subr.mxu0 0.0
    %4540 = vmatpush1.msra.mxu0 0.0
    %4541 = vmatprep.subr.mxu0 0.0
    %4542 = vmatpush1.msra.mxu0 0.0
    %4543 = vmatprep.subr.mxu0 0.0
    %4544 = vmatpush1.msra.mxu0 0.0
    %4545 = vmatprep.mubr.f32.mxu0 0.0
    %4546 = vmatmul.mubr.f32.gmra.mrb[0].mxu0 %v4318
    %v4547 = vpop.f32.mrb[0].mxu0
    %v4548 = vadd.f32 0.0, %v4547
    %v4549 = vpop.f32.mrb[0].mxu0
    %v4550 = vadd.f32 0.0, %v4549
    %4551 = vdwg.mxu0
    %v4556 = vrot.slane %v4477, 1
    %v4557 = vrot.slane %v4479, 1
    %v4558 = vrot.slane %v4548, 1
    %v4559 = vrot.slane %v4550, 1
    %v4560 = vrot.slane %v4477, 2
    %v4561 = vrot.slane %v4479, 2
    %v4562 = vrot.slane %v4548, 2
    %v4563 = vrot.slane %v4550, 2
    %v4564 = vrot.slane %v4477, 3
    %v4565 = vrot.slane %v4479, 3
    %v4566 = vrot.slane %v4548, 3
    %v4567 = vrot.slane %v4550, 3
    %v4568 = vrot.slane %v4477, 4
    %v4569 = vrot.slane %v4479, 4
    %v4570 = vrot.slane %v4548, 4
    %v4571 = vrot.slane %v4550, 4
    %v4572 = vrot.slane %v4477, 5
    %v4573 = vrot.slane %v4479, 5
    %v4574 = vrot.slane %v4548, 5
    %v4575 = vrot.slane %v4550, 5
    %v4576 = vrot.slane %v4477, 6
    %v4577 = vrot.slane %v4479, 6
    %v4578 = vrot.slane %v4548, 6
    %v4579 = vrot.slane %v4550, 6
    %v4580 = vrot.slane %v4477, 7
    %v4581 = vrot.slane %v4479, 7
    %v4582 = vrot.slane %v4548, 7
    %v4583 = vrot.slane %v4550, 7
    %v4616 = vadd.f32 %v227, %v4556
    %v4617 = vadd.f32 %v229, %v4557
    %v4618 = vadd.f32 %v340, %v4558
    %v4619 = vadd.f32 %v342, %v4559
    %v4620 = vadd.f32 %v233, %v4560
    %v4621 = vadd.f32 %v235, %v4561
    %v4622 = vadd.f32 %v346, %v4562
    %v4623 = vadd.f32 %v348, %v4563
    %v4624 = vadd.f32 %v239, %v4564
    %v4625 = vadd.f32 %v241, %v4565
    %v4626 = vadd.f32 %v352, %v4566
    %v4627 = vadd.f32 %v354, %v4567
    %v4628 = vadd.f32 %v245, %v4568
    %v4629 = vadd.f32 %v247, %v4569
    %v4630 = vadd.f32 %v358, %v4570
    %v4631 = vadd.f32 %v360, %v4571
    %v4632 = vadd.f32 %v251, %v4572
    %v4633 = vadd.f32 %v253, %v4573
    %v4634 = vadd.f32 %v364, %v4574
    %v4635 = vadd.f32 %v366, %v4575
    %v4636 = vadd.f32 %v257, %v4576
    %v4637 = vadd.f32 %v259, %v4577
    %v4638 = vadd.f32 %v370, %v4578
    %v4639 = vadd.f32 %v372, %v4579
    %v4640 = vadd.f32 %v263, %v4580
    %v4641 = vadd.f32 %v265, %v4581
    %v4642 = vadd.f32 %v376, %v4582
    %v4643 = vadd.f32 %v378, %v4583
    %v4644 = vadd.f32 %v269, %v4477
    %v4645 = vadd.f32 %v271, %v4479
    %v4646 = vadd.f32 %v382, %v4548
    %v4647 = vadd.f32 %v384, %v4550
    %v4648 = vxor.u32 %v4616, 2147483648
    %v4649 = vxor.u32 %v4620, 2147483648
    %v4650 = vxor.u32 %v4624, 2147483648
    %v4651 = vxor.u32 %v4628, 2147483648
    %v4652 = vxor.u32 %v4632, 2147483648
    %v4653 = vxor.u32 %v4636, 2147483648
    %v4654 = vxor.u32 %v4640, 2147483648
    %v4655 = vxor.u32 %v4644, 2147483648
    %v4656 = vmul.f32 %v4648, 1.442695
    %v4657 = vpow.pop %v4656
    %v4658 = vmul.f32 %v4649, 1.442695
    %v4659 = vpow.pop %v4658
    %v4660 = vmul.f32 %v4650, 1.442695
    %v4661 = vpow.pop %v4660
    %v4662 = vmul.f32 %v4651, 1.442695
    %v4663 = vpow.pop %v4662
    %v4664 = vmul.f32 %v4652, 1.442695
    %v4665 = vpow.pop %v4664
    %v4666 = vmul.f32 %v4653, 1.442695
    %v4667 = vpow.pop %v4666
    %v4668 = vmul.f32 %v4654, 1.442695
    %v4669 = vpow.pop %v4668
    %v4670 = vmul.f32 %v4655, 1.442695
    %v4671 = vpow.pop %v4670
    %v4672 = vadd.f32 %v4657, 1.0
    %v4673 = vadd.f32 %v4659, 1.0
    %v4674 = vadd.f32 %v4661, 1.0
    %v4675 = vadd.f32 %v4663, 1.0
    %v4676 = vadd.f32 %v4665, 1.0
    %v4677 = vadd.f32 %v4667, 1.0
    %v4678 = vadd.f32 %v4669, 1.0
    %v4679 = vadd.f32 %v4671, 1.0
    %v4680 = vrcp.pop %v4672
    %v4681 = vmul.f32 1.0, %v4680
    %v4682 = vrcp.pop %v4673
    %v4683 = vmul.f32 1.0, %v4682
    %v4684 = vrcp.pop %v4674
    %v4685 = vmul.f32 1.0, %v4684
    %v4686 = vrcp.pop %v4675
    %v4687 = vmul.f32 1.0, %v4686
    %v4688 = vrcp.pop %v4676
    %v4689 = vmul.f32 1.0, %v4688
    %v4690 = vrcp.pop %v4677
    %v4691 = vmul.f32 1.0, %v4690
    %v4692 = vrcp.pop %v4678
    %v4693 = vmul.f32 1.0, %v4692
    %v4694 = vrcp.pop %v4679
    %v4695 = vmul.f32 1.0, %v4694
    %v4696 = vxor.u32 %v4617, 2147483648
    %v4697 = vxor.u32 %v4621, 2147483648
    %v4698 = vxor.u32 %v4625, 2147483648
    %v4699 = vxor.u32 %v4629, 2147483648
    %v4700 = vxor.u32 %v4633, 2147483648
    %v4701 = vxor.u32 %v4637, 2147483648
    %v4702 = vxor.u32 %v4641, 2147483648
    %v4703 = vxor.u32 %v4645, 2147483648
    %v4704 = vmul.f32 %v4696, 1.442695
    %v4705 = vpow.pop %v4704
    %v4706 = vmul.f32 %v4697, 1.442695
    %v4707 = vpow.pop %v4706
    %v4708 = vmul.f32 %v4698, 1.442695
    %v4709 = vpow.pop %v4708
    %v4710 = vmul.f32 %v4699, 1.442695
    %v4711 = vpow.pop %v4710
    %v4712 = vmul.f32 %v4700, 1.442695
    %v4713 = vpow.pop %v4712
    %v4714 = vmul.f32 %v4701, 1.442695
    %v4715 = vpow.pop %v4714
    %v4716 = vmul.f32 %v4702, 1.442695
    %v4717 = vpow.pop %v4716
    %v4718 = vmul.f32 %v4703, 1.442695
    %v4719 = vpow.pop %v4718
    %v4720 = vadd.f32 %v4705, 1.0
    %v4721 = vadd.f32 %v4707, 1.0
    %v4722 = vadd.f32 %v4709, 1.0
    %v4723 = vadd.f32 %v4711, 1.0
    %v4724 = vadd.f32 %v4713, 1.0
    %v4725 = vadd.f32 %v4715, 1.0
    %v4726 = vadd.f32 %v4717, 1.0
    %v4727 = vadd.f32 %v4719, 1.0
    %v4728 = vrcp.pop %v4720
    %v4729 = vmul.f32 1.0, %v4728
    %v4730 = vrcp.pop %v4721
    %v4731 = vmul.f32 1.0, %v4730
    %v4732 = vrcp.pop %v4722
    %v4733 = vmul.f32 1.0, %v4732
    %v4734 = vrcp.pop %v4723
    %v4735 = vmul.f32 1.0, %v4734
    %v4736 = vrcp.pop %v4724
    %v4737 = vmul.f32 1.0, %v4736
    %v4738 = vrcp.pop %v4725
    %v4739 = vmul.f32 1.0, %v4738
    %v4740 = vrcp.pop %v4726
    %v4741 = vmul.f32 1.0, %v4740
    %v4742 = vrcp.pop %v4727
    %v4743 = vmul.f32 1.0, %v4742
    %v4744 = vtanh.pop %v4618
    %v4745 = vtanh.pop %v4622
    %v4746 = vtanh.pop %v4626
    %v4747 = vtanh.pop %v4630
    %v4748 = vtanh.pop %v4634
    %v4749 = vtanh.pop %v4638
    %v4750 = vtanh.pop %v4642
    %v4751 = vtanh.pop %v4646
    %v4752 = vxor.u32 %v4619, 2147483648
    %v4753 = vxor.u32 %v4623, 2147483648
    %v4754 = vxor.u32 %v4627, 2147483648
    %v4755 = vxor.u32 %v4631, 2147483648
    %v4756 = vxor.u32 %v4635, 2147483648
    %v4757 = vxor.u32 %v4639, 2147483648
    %v4758 = vxor.u32 %v4643, 2147483648
    %v4759 = vxor.u32 %v4647, 2147483648
    %v4760 = vmul.f32 %v4752, 1.442695
    %v4761 = vpow.pop %v4760
    %v4762 = vmul.f32 %v4753, 1.442695
    %v4763 = vpow.pop %v4762
    %v4764 = vmul.f32 %v4754, 1.442695
    %v4765 = vpow.pop %v4764
    %v4766 = vmul.f32 %v4755, 1.442695
    %v4767 = vpow.pop %v4766
    %v4768 = vmul.f32 %v4756, 1.442695
    %v4769 = vpow.pop %v4768
    %v4770 = vmul.f32 %v4757, 1.442695
    %v4771 = vpow.pop %v4770
    %v4772 = vmul.f32 %v4758, 1.442695
    %v4773 = vpow.pop %v4772
    %v4774 = vmul.f32 %v4759, 1.442695
    %v4775 = vpow.pop %v4774
    %v4776 = vadd.f32 %v4761, 1.0
    %v4777 = vadd.f32 %v4763, 1.0
    %v4778 = vadd.f32 %v4765, 1.0
    %v4779 = vadd.f32 %v4767, 1.0
    %v4780 = vadd.f32 %v4769, 1.0
    %v4781 = vadd.f32 %v4771, 1.0
    %v4782 = vadd.f32 %v4773, 1.0
    %v4783 = vadd.f32 %v4775, 1.0
    %v4784 = vrcp.pop %v4776
    %v4785 = vmul.f32 1.0, %v4784
    %v4786 = vrcp.pop %v4777
    %v4787 = vmul.f32 1.0, %v4786
    %v4788 = vrcp.pop %v4778
    %v4789 = vmul.f32 1.0, %v4788
    %v4790 = vrcp.pop %v4779
    %v4791 = vmul.f32 1.0, %v4790
    %v4792 = vrcp.pop %v4780
    %v4793 = vmul.f32 1.0, %v4792
    %v4794 = vrcp.pop %v4781
    %v4795 = vmul.f32 1.0, %v4794
    %v4796 = vrcp.pop %v4782
    %v4797 = vmul.f32 1.0, %v4796
    %v4798 = vrcp.pop %v4783
    %v4799 = vmul.f32 1.0, %v4798
    %v4801 = vrot.slane %v4342, 1
    %v4802 = vrot.slane %v4342, 2
    %v4803 = vrot.slane %v4342, 3
    %v4804 = vrot.slane %v4342, 4
    %v4805 = vrot.slane %v4342, 5
    %v4806 = vrot.slane %v4342, 6
    %v4807 = vrot.slane %v4342, 7
    %v4816 = vmul.f32 %v4729, %v4801
    %v4817 = vmul.f32 %v4731, %v4802
    %v4818 = vmul.f32 %v4733, %v4803
    %v4819 = vmul.f32 %v4735, %v4804
    %v4820 = vmul.f32 %v4737, %v4805
    %v4821 = vmul.f32 %v4739, %v4806
    %v4822 = vmul.f32 %v4741, %v4807
    %v4823 = vmul.f32 %v4743, %v4342
    %v4824 = vmul.f32 %v4681, %v4744
    %v4825 = vmul.f32 %v4683, %v4745
    %v4826 = vmul.f32 %v4685, %v4746
    %v4827 = vmul.f32 %v4687, %v4747
    %v4828 = vmul.f32 %v4689, %v4748
    %v4829 = vmul.f32 %v4691, %v4749
    %v4830 = vmul.f32 %v4693, %v4750
    %v4831 = vmul.f32 %v4695, %v4751
    %v4832 = vadd.f32 %v4816, %v4824
    %v4833 = vadd.f32 %v4817, %v4825
    %v4834 = vadd.f32 %v4818, %v4826
    %v4835 = vadd.f32 %v4819, %v4827
    %v4836 = vadd.f32 %v4820, %v4828
    %v4837 = vadd.f32 %v4821, %v4829
    %v4838 = vadd.f32 %v4822, %v4830
    %v4839 = vadd.f32 %v4823, %v4831
    %v4840 = vtanh.pop %v4832
    %v4841 = vtanh.pop %v4833
    %v4842 = vtanh.pop %v4834
    %v4843 = vtanh.pop %v4835
    %v4844 = vtanh.pop %v4836
    %v4845 = vtanh.pop %v4837
    %v4846 = vtanh.pop %v4838
    %v4847 = vtanh.pop %v4839
    %v4848 = vmul.f32 %v4785, %v4840
    %v4849 = vmul.f32 %v4787, %v4841
    %v4850 = vmul.f32 %v4789, %v4842
    %v4851 = vmul.f32 %v4791, %v4843
    %v4852 = vmul.f32 %v4793, %v4844
    %v4853 = vmul.f32 %v4795, %v4845
    %v4854 = vmul.f32 %v4797, %v4846
    %v4855 = vmul.f32 %v4799, %v4847
    %vm4856 = vcmp.gt.s32.totalorder %v450, 7
    %v4857 = vsel %vm4856, 1, 0
    %4858 = vset.pattern.permute.xlu0 0
    %4859 = vperm.xlu0 %4858, %v4857
    %v4860 = vpop.permute.xlu0 %4859
    %vm4861 = vcmp.eq.s32.totalorder %v4860, 1
    %v4870 = vrot.slane %v4848, 7
    %v4871 = vrot.slane %v4849, 6
    %v4872 = vsel %vm896, %v4871, %v4870
    %v4873 = vrot.slane %v4850, 5
    %v4874 = vsel %vm899, %v4873, %v4872
    %v4875 = vrot.slane %v4851, 4
    %v4876 = vsel %vm902, %v4875, %v4874
    %v4877 = vrot.slane %v4852, 3
    %v4878 = vsel %vm905, %v4877, %v4876
    %v4879 = vrot.slane %v4853, 2
    %v4880 = vsel %vm908, %v4879, %v4878
    %v4881 = vrot.slane %v4854, 1
    %v4882 = vsel %vm911, %v4881, %v4880
    %v4883 = vsel %vm914, %v4855, %v4882
    %v4885 = vsel %vm4861, %v4883, %v4318
    %v4894 = vrot.slane %v4832, 7
    %v4895 = vrot.slane %v4833, 6
    %v4896 = vsel %vm896, %v4895, %v4894
    %v4897 = vrot.slane %v4834, 5
    %v4898 = vsel %vm899, %v4897, %v4896
    %v4899 = vrot.slane %v4835, 4
    %v4900 = vsel %vm902, %v4899, %v4898
    %v4901 = vrot.slane %v4836, 3
    %v4902 = vsel %vm905, %v4901, %v4900
    %v4903 = vrot.slane %v4837, 2
    %v4904 = vsel %vm908, %v4903, %v4902
    %v4905 = vrot.slane %v4838, 1
    %v4906 = vsel %vm911, %v4905, %v4904
    %v4907 = vsel %vm914, %v4839, %v4906
    %v4909 = vsel %vm4861, %v4907, %v4342
    %v4910 = vsel %vm4861, %v4883, 0.0
    %v4912 = vcombine.high %v4910, %v4910
    %v4914 = vunpack.c.l.s4 1966171168
    %v4915 = vunpack.c.0.s8 %v4914
    %v4916 = vlaneseq
    %v4917 = vshrl.u32 %v4916, 7
    %v4918 = vsub.s32 %v4915, %v4917
    %v4919 = vrot.slane %v4910, %v4918
    %v4921 = vunpack.c.l.s4 1966171168
    %v4922 = vunpack.c.0.s8 %v4921
    %v4923 = vlaneseq
    %v4924 = vshrl.u32 %v4923, 7
    %v4925 = vsub.s32 %v4922, %v4924
    %v4926 = vrot.slane %v4912, %v4925
    %v4927 = vcombine.high %v4919, %v4919
    %v4928 = vcombine.high %v4926, %v4926
    %v4930 = vunpack.c.l.s4 1966171168
    %v4931 = vunpack.c.0.s8 %v4930
    %v4932 = vlaneseq
    %v4933 = vshrl.u32 %v4932, 7
    %v4934 = vsub.s32 %v4931, %v4933
    %v4935 = vrot.slane %v4919, %v4934
    %v4937 = vunpack.c.l.s4 1966171168
    %v4938 = vunpack.c.0.s8 %v4937
    %v4939 = vlaneseq
    %v4940 = vshrl.u32 %v4939, 7
    %v4941 = vsub.s32 %v4938, %v4940
    %v4942 = vrot.slane %v4926, %v4941
    %v4944 = vunpack.c.l.s4 1966171168
    %v4945 = vunpack.c.0.s8 %v4944
    %v4946 = vlaneseq
    %v4947 = vshrl.u32 %v4946, 7
    %v4948 = vsub.s32 %v4945, %v4947
    %v4949 = vrot.slane %v4927, %v4948
    %v4951 = vunpack.c.l.s4 1966171168
    %v4952 = vunpack.c.0.s8 %v4951
    %v4953 = vlaneseq
    %v4954 = vshrl.u32 %v4953, 7
    %v4955 = vsub.s32 %v4952, %v4954
    %v4956 = vrot.slane %v4928, %v4955
    %v4957 = vcombine.high %v4935, %v4935
    %v4958 = vcombine.high %v4942, %v4942
    %v4959 = vcombine.high %v4949, %v4949
    %v4960 = vcombine.high %v4956, %v4956
    %4969 = vst [vmem:[#allocation8 + $0x7] sm:$0x1] %v4935
    %4970 = vst [vmem:[#allocation8 + $0xf] sm:$0x1] %v4949
    %4971 = vst [vmem:[#allocation8 + $0x17] sm:$0x1] %v4957
    %4972 = vst [vmem:[#allocation8 + $0x1f] sm:$0x1] %v4959
    %4973 = vst [vmem:[#allocation8 + $0x27] sm:$0x1] %v4942
    %4974 = vst [vmem:[#allocation8 + $0x2f] sm:$0x1] %v4956
    %4975 = vst [vmem:[#allocation8 + $0x37] sm:$0x1] %v4958
    %4976 = vst [vmem:[#allocation8 + $0x3f] sm:$0x1] %v4960
    %4977 = vst [vmem:[#allocation9] sm:$0xff] %v4885
    %4978 = vst [vmem:[#allocation11] sm:$0xff] %v4909
    // Predicated region
    $region34: #{tpu_custom_call.1} parent=1 // pred_check
      _
    $region35: #{tpu_custom_call.1} parent=1 // pred_check_branch
      %4980 = sbr.rel (0) target = $region37
    $region36: #{tpu_custom_call.1} parent=1 // pred_region
      %s4982 = ssub.s32 1024, 1024
      %4983 = vsyncadd [#allocation4], %s4982
      %s4984 = sshll.u32 [#allocation8], 4
      %s4985 = int_to_ptr.vmem [resolvable:$true] %s4984
      %4990 = dma.vmem_to_hbm [thread:$0]  %s4985, 1024, %s5, [#allocation4], 128, 128, 8
    $region37: #{tpu_custom_call.1} parent=1 // pred_fallthru
      _
    // Predicated region
    $region38: #{tpu_custom_call.1} parent=1 // pred_check
      _
    $region39: #{tpu_custom_call.1} parent=1 // pred_check_branch
      %4992 = sbr.rel (0) target = $region41
    $region40: #{tpu_custom_call.1} parent=1 // pred_region
      %s4994 = ssub.s32 128, 128
      %4995 = vsyncadd [#allocation10], %s4994
      %s4997 = sshll.u32 [#allocation9], 4
      %s4998 = int_to_ptr.vmem [resolvable:$true] %s4997
      %5000 = dma.vmem_to_hbm [thread:$0]  %s4998, 128, %s6, [#allocation10]
    $region41: #{tpu_custom_call.1} parent=1 // pred_fallthru
      _
    // Predicated region
    $region42: #{tpu_custom_call.1} parent=1 // pred_check
      _
    $region43: #{tpu_custom_call.1} parent=1 // pred_check_branch
      %5002 = sbr.rel (0) target = $region45
    $region44: #{tpu_custom_call.1} parent=1 // pred_region
      %s5004 = ssub.s32 128, 128
      %5005 = vsyncadd [#allocation10], %s5004
      %s5007 = sshll.u32 [#allocation11], 4
      %s5008 = int_to_ptr.vmem [resolvable:$true] %s5007
      %5010 = dma.vmem_to_hbm [thread:$0]  %s5008, 128, %s7, [#allocation10]
    $region45: #{tpu_custom_call.1} parent=1 // pred_fallthru
      _
    // Predicated region
    $region46: #{tpu_custom_call.1} parent=1 // pred_check
      _
    $region47: #{tpu_custom_call.1} parent=1 // pred_check_branch
      %5012 = sbr.rel (0) target = $region49
    $region48: #{tpu_custom_call.1} parent=1 // pred_region
      %5013 = dma.done [#allocation4], 1024
    $region49: #{tpu_custom_call.1} parent=1 // pred_fallthru
      _
    // Predicated region
    $region50: #{tpu_custom_call.1} parent=1 // pred_check
      _
    $region51: #{tpu_custom_call.1} parent=1 // pred_check_branch
      %5015 = sbr.rel (0) target = $region53
    $region52: #{tpu_custom_call.1} parent=1 // pred_region
      %5016 = dma.done [#allocation10], 128
    $region53: #{tpu_custom_call.1} parent=1 // pred_fallthru
      _
    // Predicated region
    $region54: #{tpu_custom_call.1} parent=1 // pred_check
      _
    $region55: #{tpu_custom_call.1} parent=1 // pred_check_branch
      %5018 = sbr.rel (0) target = $region57
    $region56: #{tpu_custom_call.1} parent=1 // pred_region
      %5019 = dma.done [#allocation10], 128
    $region57: #{tpu_custom_call.1} parent=1 // pred_fallthru
      _
    %5020 = vsyncpa [#allocation3], 1
    %5021 = vsyncpa [#allocation6], 1
    %5022 = vsyncpa [#allocation4], 1
    %5023 = vsyncpa [#allocation10], 1

</llo_original>
